<compile_context>
chip_gen: v7x
topology: tpu7x:2x2x1
jax: 0.10.0
libtpu: 0.0.40
codegen_flags: <defaults>
</compile_context>

<pallas_src>
from functools import partial

import jax
import jax.numpy as jnp
from jax import lax
from jax.experimental import pallas as pl
from jax.experimental.pallas import tpu as pltpu


# ------------------------------------------------------------------
# In-kernel helpers (values in (C, S) layout: lane axis = flat spatial)
# ------------------------------------------------------------------
def _shift(x, offset):
    """Zero-fill lane shift: out[..., p] = x[..., p + offset] if in range else 0."""
    if offset == 0:
        return x
    s = x.shape[-1]
    k = abs(offset)
    pad = jnp.zeros(x.shape[:-1] + (k,), x.dtype)
    if offset > 0:
        return jnp.concatenate([x[..., k:], pad], axis=-1)
    return jnp.concatenate([pad, x[..., :s - k]], axis=-1)


def _dw3x3_s1(x, w9, w, m_left, m_right):
    """Depthwise 3x3, stride 1, zero-pad 1, on (C, H*W) row-major flat images.

    Row (dy) boundaries are handled for free by the zero-fill shift; only the
    hoisted (1, S) column masks are applied, and only for dx != 1.
    """
    acc = x * w9[:, 4:5]                       # centre tap: no shift, no mask
    for k in range(9):
        if k == 4:
            continue
        ro, co = k // 3 - 1, k % 3 - 1
        tap = _shift(x, ro * w + co)
        if co == -1:
            tap = jnp.where(m_left, tap, 0.0)
        elif co == 1:
            tap = jnp.where(m_right, tap, 0.0)
        acc = acc + tap * w9[:, k:k + 1]
    return acc


# kernel offset d in {0,1,2} -> (source parity, offset on the output grid)
_S2_SEL = {0: (1, -1), 1: (0, 0), 2: (1, 0)}


def _dw3x3_s2(phases, w9, wo, m_left):
    """Depthwise 3x3, stride 2, zero-pad 1, computed directly from the 4
    even/odd input phases (phases[2*py+px] = x[:, py::2, px::2] flattened).
    Only the col>=1 mask is ever needed (zero-fill handles the row boundary)."""
    acc = phases[0] * w9[:, 4:5]               # (dy,dx)=(1,1): phase (0,0), offset 0
    for k in range(9):
        if k == 4:
            continue
        dy, dx = k // 3, k % 3
        py, ro = _S2_SEL[dy]
        px, co = _S2_SEL[dx]
        tap = _shift(phases[2 * py + px], ro * wo + co)
        if dx == 0:                            # co == -1
            tap = jnp.where(m_left, tap, 0.0)
        acc = acc + tap * w9[:, k:k + 1]
    return acc


def _pw_bias_relu(x, w, b):
    """1x1 conv + bias + ReLU.  x: (Cin, S), w: (Cout, Cin), b: (Cout, 1)."""
    cout, cin = w.shape
    if cin <= 16:                              # small widths: unrolled VPU FMAs
        acc = w[:, 0:1] * x[0:1, :]
        for ci in range(1, cin):
            acc = acc + w[:, ci:ci + 1] * x[ci:ci + 1, :]
    else:                                      # real ShuffleNet widths: MXU matmul
        acc = jnp.dot(w, x, preferred_element_type=jnp.float32)
    return jnp.maximum(acc + b, 0.0)


def _pw_stage(y, w, b, imgs, cin):
    """Apply the 1x1 stage per image on a sublane-stacked (imgs*cin, S) input."""
    if imgs == 1:
        return _pw_bias_relu(y, w, b)
    outs = [_pw_bias_relu(y[m * cin:(m + 1) * cin], w, b) for m in range(imgs)]
    return jnp.concatenate(outs, axis=0)


# ------------------------------------------------------------------
# Fused kernels (one grid step = `imgs` images of the batch)
# ------------------------------------------------------------------
def _fused_s1_kernel(x_ref, wd_ref, b_ref, wp1_ref, wp2_ref, wp3_ref, o_ref,
                     *, h, w, imgs, inp, mid, outputs):
    s = h * w
    # hoisted column-boundary masks: computed once, reused by every tap/stage
    col = lax.broadcasted_iota(jnp.int32, (1, s), 1) % w
    m_left, m_right = col >= 1, col <= w - 2

    x = x_ref[0].astype(jnp.float32)           # (imgs*2*inp, S), interleaved channels
    # channel_shuffle split: even channel -> passthrough, odd channel -> branch_main
    proj_rows, main_rows = [], []
    for m in range(imgs):
        base = m * 2 * inp
        for i in range(inp):
            proj_rows.append(x[base + 2 * i: base + 2 * i + 1])
            main_rows.append(x[base + 2 * i + 1: base + 2 * i + 2])
    # TODO(synk): for very wide channels (>~32) replace this unrolled de-interleave
    # with a strided sublane ref load (ref[pl.ds(1, inp, stride=2)]) to bound trace size.
    y = jnp.concatenate(main_rows, axis=0)     # (imgs*inp, S)

    wd, bias = wd_ref[...], b_ref[...]
    ci, cm = imgs * inp, imgs * mid
    y = _dw3x3_s1(y, wd[0:ci], w, m_left, m_right)
    y = _pw_stage(y, wp1_ref[...], bias[0:mid], imgs, inp)
    y = _dw3x3_s1(y, wd[ci:ci + cm], w, m_left, m_right)
    y = _pw_stage(y, wp2_ref[...], bias[mid:2 * mid], imgs, mid)
    y = _dw3x3_s1(y, wd[ci + cm:ci + 2 * cm], w, m_left, m_right)
    y = _pw_stage(y, wp3_ref[...], bias[2 * mid:2 * mid + outputs], imgs, mid)

    # single full-tile output store: [shuffled passthrough | branch_main] per image
    rows = []
    for m in range(imgs):
        rows.extend(proj_rows[m * inp:(m + 1) * inp])
        rows.append(y[m * outputs:(m + 1) * outputs])
    o_ref[0] = jnp.concatenate(rows, axis=0).astype(o_ref.dtype)


def _fused_s2_kernel(x_ref, wd_ref, b_ref, wpp_ref, wp1_ref, wp2_ref, wp3_ref,
                     o_ref, *, ho, wo, imgs, inp, mid, outputs):
    s = ho * wo
    col = lax.broadcasted_iota(jnp.int32, (1, s), 1) % wo
    m_left, m_right = col >= 1, col <= wo - 2

    phases = tuple(x_ref[0, k].astype(jnp.float32) for k in range(4))  # 4x(imgs*inp, S)

    wd, bias = wd_ref[...], b_ref[...]
    ci, cm = imgs * inp, imgs * mid

    # branch_proj: dw3x3(stride 2)+BN -> 1x1+BN+ReLU
    p = _dw3x3_s2(phases, wd[0:ci], wo, m_left)
    p = _pw_stage(p, wpp_ref[...], bias[0:inp], imgs, inp)

    # branch_main: dw3x3(stride 2)+BN -> 1x1+BN+ReLU -> two more stride-1 stages
    y = _dw3x3_s2(phases, wd[ci:2 * ci], wo, m_left)
    y = _pw_stage(y, wp1_ref[...], bias[inp:inp + mid], imgs, inp)
    y = _dw3x3_s1(y, wd[2 * ci:2 * ci + cm], wo, m_left, m_right)
    y = _pw_stage(y, wp2_ref[...], bias[inp + mid:inp + 2 * mid], imgs, mid)
    y = _dw3x3_s1(y, wd[2 * ci + cm:2 * ci + 2 * cm], wo, m_left, m_right)
    y = _pw_stage(y, wp3_ref[...], bias[inp + 2 * mid:inp + 2 * mid + outputs],
                  imgs, mid)

    rows = []
    for m in range(imgs):
        rows.append(p[m * inp:(m + 1) * inp])
        rows.append(y[m * outputs:(m + 1) * outputs])
    o_ref[0] = jnp.concatenate(rows, axis=0).astype(o_ref.dtype)


# ------------------------------------------------------------------
# Host-side glue: BN folding, weight packing, pallas_call wrappers
# ------------------------------------------------------------------
def _fold_stage(dw_w, s1, b1, pw_w, s2, b2):
    """Fold the two eval-mode BNs of a [dw3x3+BN, 1x1+BN+ReLU] stage into the
    conv weights and a single output bias (exact algebraic rewrite)."""
    wd = (dw_w * s1[:, None, None]).reshape(dw_w.shape[0], 9).astype(jnp.float32)
    wp = (pw_w * s2[:, None]).astype(jnp.float32)
    bias = (s2 * (pw_w * b1[None, :]).sum(axis=1) + b2).astype(jnp.float32)[:, None]
    return wd, wp, bias


def _const_spec(arr):
    nd = arr.ndim
    return pl.BlockSpec(arr.shape, lambda b, _z=(0,) * nd: _z)


def _pick_images_per_step(n, chans, s, itemsize):
    """Images packed per grid step (fills sublanes at small C, amortizes the
    ~0.35us/step grid overhead) while keeping per-step VMEM modest (v7x: 64MiB)."""
    for cand in (8, 4, 2):
        if n % cand == 0 and cand * chans * s * max(itemsize, 4) <= (8 << 20):
            return cand
    return 1


def shuffle_xception_forward(old_x, params, stride):
    """Forward of Shuffle_Xception (inference-mode BatchNorm); NCHW in / out.
    Output dtype follows the input dtype (pass bf16 on v6e/v7x for half the HBM
    traffic); all in-kernel arithmetic is f32."""
    assert stride in (1, 2)
    n, c_in, h, w = old_x.shape
    io_dtype = old_x.dtype

    pm = params["main"]
    m1 = _fold_stage(pm["dw1_w"], pm["bn1_s"], pm["bn1_b"],
                     pm["pw1_w"], pm["bn2_s"], pm["bn2_b"])
    m2 = _fold_stage(pm["dw2_w"], pm["bn3_s"], pm["bn3_b"],
                     pm["pw2_w"], pm["bn4_s"], pm["bn4_b"])
    m3 = _fold_stage(pm["dw3_w"], pm["bn5_s"], pm["bn5_b"],
                     pm["pw3_w"], pm["bn6_s"], pm["bn6_b"])
    mid = m1[1].shape[0]
    outputs = m3[1].shape[0]
    cparams = pltpu.CompilerParams(dimension_semantics=("parallel",))
    # TODO(synk): at batch=1 on v7x add a second parallel grid axis (row blocks)
    # so both TensorCores are busy.

    if stride == 1:
        assert c_in % 4 == 0
        inp = c_in // 2
        oup = inp + outputs
        s = h * w
        imgs = _pick_images_per_step(n, 2 * inp + oup, s, old_x.dtype.itemsize)
        # free view: channels 2i / 2i+1 are the channel_shuffle halves; the
        # split happens inside the kernel (no host-side HBM copy).
        x_in = old_x.reshape(n // imgs, imgs * c_in, s)
        wd_all = jnp.concatenate([jnp.tile(m1[0], (imgs, 1)),
                                  jnp.tile(m2[0], (imgs, 1)),
                                  jnp.tile(m3[0], (imgs, 1))], axis=0)
        b_all = jnp.concatenate([m1[2], m2[2], m3[2]], axis=0)
        weights = [wd_all, b_all, m1[1], m2[1], m3[1]]
        out = pl.pallas_call(
            partial(_fused_s1_kernel, h=h, w=w, imgs=imgs, inp=inp, mid=mid,
                    outputs=outputs),
            out_shape=jax.ShapeDtypeStruct((n // imgs, imgs * oup, s), io_dtype),
            grid=(n // imgs,),
            in_specs=[pl.BlockSpec((1, imgs * c_in, s), lambda b: (b, 0, 0)),
                      *[_const_spec(a) for a in weights]],
            out_specs=pl.BlockSpec((1, imgs * oup, s), lambda b: (b, 0, 0)),
            compiler_params=cparams,
        )(x_in, *weights)
        return out.reshape(n, oup, h, w)

    # ---- stride == 2 ----
    assert h % 2 == 0 and w % 2 == 0
    inp = c_in
    oup = inp + outputs
    ho, wo = h // 2, w // 2
    s = ho * wo
    imgs = _pick_images_per_step(n, 4 * inp + oup, s, old_x.dtype.itemsize)
    pp = params["proj"]
    pr = _fold_stage(pp["dw_w"], pp["bn1_s"], pp["bn1_b"],
                     pp["pw_w"], pp["bn2_s"], pp["bn2_b"])
    # Even/odd phase repack = one fused XLA transpose (single extra HBM pass).
    # TODO(synk): fold this into the kernel with lane-strided ref loads once
    # pl.ds(..., stride=2) on the lane axis is validated on all target chips.
    xph = old_x.reshape(n // imgs, imgs, inp, ho, 2, wo, 2)
    xph = xph.transpose(0, 4, 6, 1, 2, 3, 5).reshape(n // imgs, 4, imgs * inp, s)
    wd_all = jnp.concatenate([jnp.tile(pr[0], (imgs, 1)), jnp.tile(m1[0], (imgs, 1)),
                              jnp.tile(m2[0], (imgs, 1)), jnp.tile(m3[0], (imgs, 1))],
                             axis=0)
    b_all = jnp.concatenate([pr[2], m1[2], m2[2], m3[2]], axis=0)
    weights = [wd_all, b_all, pr[1], m1[1], m2[1], m3[1]]
    out = pl.pallas_call(
        partial(_fused_s2_kernel, ho=ho, wo=wo, imgs=imgs, inp=inp, mid=mid,
                outputs=outputs),
        out_shape=jax.ShapeDtypeStruct((n // imgs, imgs * oup, s), io_dtype),
        grid=(n // imgs,),
        in_specs=[pl.BlockSpec((1, 4, imgs * inp, s), lambda b: (b, 0, 0, 0)),
                  *[_const_spec(a) for a in weights]],
        out_specs=pl.BlockSpec((1, imgs * oup, s), lambda b: (b, 0, 0)),
        compiler_params=cparams,
    )(xph, *weights)
    return out.reshape(n, oup, ho, wo)


# ------------------------------------------------------------------
# Deterministic parameter init (BN folded to eval-mode scale/bias)
# ------------------------------------------------------------------
def _fold_bn(gamma, beta, mean, var, eps=1e-5):
    scale = gamma / jnp.sqrt(var + eps)
    bias = beta - mean * scale
    return scale, bias


def _init_bn(key, c):
    k1, k2, k3, k4 = jax.random.split(key, 4)
    gamma = 1.0 + 0.1 * jax.random.normal(k1, (c,), jnp.float32)
    beta = 0.1 * jax.random.normal(k2, (c,), jnp.float32)
    mean = 0.1 * jax.random.normal(k3, (c,), jnp.float32)
    var = 1.0 + 0.1 * jax.random.uniform(k4, (c,), jnp.float32)
    return _fold_bn(gamma, beta, mean, var)


def init_main_params(key, inp, mid, outputs):
    ks = jax.random.split(key, 12)
    p = {}
    p["dw1_w"] = 0.3 * jax.random.normal(ks[0], (inp, 3, 3), jnp.float32)
    p["bn1_s"], p["bn1_b"] = _init_bn(ks[1], inp)
    p["pw1_w"] = jax.random.normal(ks[2], (mid, inp), jnp.float32) / jnp.sqrt(inp)
    p["bn2_s"], p["bn2_b"] = _init_bn(ks[3], mid)
    p["dw2_w"] = 0.3 * jax.random.normal(ks[4], (mid, 3, 3), jnp.float32)
    p["bn3_s"], p["bn3_b"] = _init_bn(ks[5], mid)
    p["pw2_w"] = jax.random.normal(ks[6], (mid, mid), jnp.float32) / jnp.sqrt(mid)
    p["bn4_s"], p["bn4_b"] = _init_bn(ks[7], mid)
    p["dw3_w"] = 0.3 * jax.random.normal(ks[8], (mid, 3, 3), jnp.float32)
    p["bn5_s"], p["bn5_b"] = _init_bn(ks[9], mid)
    p["pw3_w"] = jax.random.normal(ks[10], (outputs, mid), jnp.float32) / jnp.sqrt(mid)
    p["bn6_s"], p["bn6_b"] = _init_bn(ks[11], outputs)
    return p


def init_proj_params(key, inp):
    ks = jax.random.split(key, 4)
    p = {"dw_w": 0.3 * jax.random.normal(ks[0], (inp, 3, 3), jnp.float32)}
    p["bn1_s"], p["bn1_b"] = _init_bn(ks[1], inp)
    p["pw_w"] = jax.random.normal(ks[2], (inp, inp), jnp.float32) / jnp.sqrt(inp)
    p["bn2_s"], p["bn2_b"] = _init_bn(ks[3], inp)
    return p


# ------------------------------------------------------------------
# Pure-JAX reference (mirrors the PyTorch module literally)
# ------------------------------------------------------------------
def _ref_channel_shuffle(x):
    n, c, h, w = x.shape
    assert c % 4 == 0
    x = x.reshape(n * c // 2, 2, h * w)
    x = jnp.transpose(x, (1, 0, 2))
    x = x.reshape(2, n, c // 2, h, w)
    return x[0], x[1]


def _ref_dw3x3(x, wgt, stride):
    n, c, h, w = x.shape
    ho = (h + 2 - 3) // stride + 1
    wo = (w + 2 - 3) // stride + 1
    xp = jnp.pad(x, ((0, 0), (0, 0), (1, 1), (1, 1)))
    out = jnp.zeros((n, c, ho, wo), jnp.float32)
    for dy in range(3):
        for dx in range(3):
            win = xp[:, :, dy:dy + stride * (ho - 1) + 1:stride,
                           dx:dx + stride * (wo - 1) + 1:stride]
            out = out + wgt[None, :, dy, dx, None, None] * win
    return out


def _ref_pw(x, wgt):
    return jnp.einsum("oi,nihw->nohw", wgt, x, precision=lax.Precision.HIGHEST)


def _ref_bn(x, s, b):
    return x * s[None, :, None, None] + b[None, :, None, None]


def _ref_main_branch(x, p, stride):
    y = _ref_bn(_ref_dw3x3(x, p["dw1_w"], stride), p["bn1_s"], p["bn1_b"])
    y = jax.nn.relu(_ref_bn(_ref_pw(y, p["pw1_w"]), p["bn2_s"], p["bn2_b"]))
    y = _ref_bn(_ref_dw3x3(y, p["dw2_w"], 1), p["bn3_s"], p["bn3_b"])
    y = jax.nn.relu(_ref_bn(_ref_pw(y, p["pw2_w"]), p["bn4_s"], p["bn4_b"]))
    y = _ref_bn(_ref_dw3x3(y, p["dw3_w"], 1), p["bn5_s"], p["bn5_b"])
    y = jax.nn.relu(_ref_bn(_ref_pw(y, p["pw3_w"]), p["bn6_s"], p["bn6_b"]))
    return y


def _ref_proj_branch(x, p):
    y = _ref_bn(_ref_dw3x3(x, p["dw_w"], 2), p["bn1_s"], p["bn1_b"])
    return jax.nn.relu(_ref_bn(_ref_pw(y, p["pw_w"]), p["bn2_s"], p["bn2_b"]))


def reference_forward(old_x, params, stride):
    if stride == 1:
        x_proj, x = _ref_channel_shuffle(old_x)
        return jnp.concatenate(
            [x_proj, _ref_main_branch(x, params["main"], 1)], axis=1)
    return jnp.concatenate(
        [_ref_proj_branch(old_x, params["proj"]),
         _ref_main_branch(old_x, params["main"], 2)], axis=1)


# ------------------------------------------------------------------
if __name__ == "__main__":
    key = jax.random.PRNGKey(0)
    kx, kp_main, kp_proj = jax.random.split(key, 3)

    inp, oup, mid = 4, 8, 8            # outputs = oup - inp = 4
    outputs = oup - inp
    n, h, w = 2, 16, 32                # flat spatial sizes: 512 / 128

    params = {"main": init_main_params(kp_main, inp, mid, outputs),
              "proj": init_proj_params(kp_proj, inp)}

    fwd = jax.jit(shuffle_xception_forward, static_argnames=("stride",))

    # ---- stride = 1 (f32): input has 2*inp channels, channel_shuffle splits it
    x1 = jax.random.normal(kx, (n, 2 * inp, h, w), jnp.float32)
    out1 = jax.block_until_ready(fwd(x1, params, stride=1))
    ref1 = reference_forward(x1, params, 1)
    assert out1.shape == (n, oup, h, w), out1.shape
    err1 = float(jnp.max(jnp.abs(out1 - ref1)))
    assert err1 < 2e-3, f"stride-1 mismatch, max abs err = {err1}"

    # ---- stride = 2 (f32): proj + main branches, spatial halved
    x2 = x1[:, :inp]
    out2 = jax.block_until_ready(fwd(x2, params, stride=2))
    ref2 = reference_forward(x2, params, 2)
    assert out2.shape == (n, oup, h // 2, w // 2), out2.shape
    err2 = float(jnp.max(jnp.abs(out2 - ref2)))
    assert err2 < 2e-3, f"stride-2 mismatch, max abs err = {err2}"

    # ---- bf16 I/O path (bandwidth-bound lever for v6e/v7x); compute stays f32
    x1_bf = x1.astype(jnp.bfloat16)
    out1_bf = jax.block_until_ready(fwd(x1_bf, params, stride=1))
    assert out1_bf.dtype == jnp.bfloat16
    ref1_bf = reference_forward(x1_bf.astype(jnp.float32), params, 1)
    err3 = float(jnp.max(jnp.abs(out1_bf.astype(jnp.float32) - ref1_bf)))
    assert err3 < 1e-1, f"bf16 stride-1 mismatch, max abs err = {err3}"

    print("KERNEL_OK")
</pallas_src>

<mosaic_0001>
module attributes {stable_mosaic.version = 11 : i64} {
  func.func @_fused_s1_kernel(%arg0: i32, %arg1: memref<1x16x512xf32, #tpu.memory_space<vmem>>, %arg2: memref<40x9xf32, #tpu.memory_space<vmem>>, %arg3: memref<20x1xf32, #tpu.memory_space<vmem>>, %arg4: memref<8x4xf32, #tpu.memory_space<vmem>>, %arg5: memref<8x8xf32, #tpu.memory_space<vmem>>, %arg6: memref<4x8xf32, #tpu.memory_space<vmem>>, %arg7: memref<1x16x512xf32, #tpu.memory_space<vmem>>) attributes {dimension_semantics = [#tpu.dimension_semantics<parallel>], iteration_bounds = array<i64: 1>, scalar_prefetch = 0 : i64, scratch_operands = 0 : i64, tpu.core_type = #tpu.core_type<tc>, window_params = [{transform_indices = @transform_0, window_bounds = array<i64: 1, 16, 512>}, {pipeline_mode = #tpu.pipeline_mode<synchronous>, transform_indices = @transform_1, window_bounds = array<i64: 40, 9>}, {pipeline_mode = #tpu.pipeline_mode<synchronous>, transform_indices = @transform_2, window_bounds = array<i64: 20, 1>}, {pipeline_mode = #tpu.pipeline_mode<synchronous>, transform_indices = @transform_3, window_bounds = array<i64: 8, 4>}, {pipeline_mode = #tpu.pipeline_mode<synchronous>, transform_indices = @transform_4, window_bounds = array<i64: 8, 8>}, {pipeline_mode = #tpu.pipeline_mode<synchronous>, transform_indices = @transform_5, window_bounds = array<i64: 4, 8>}, {transform_indices = @transform_6, window_bounds = array<i64: 1, 16, 512>}]} {
    %0 = tpu.iota {dimensions = array<i32: 1>} : vector<1x512xi32>
    %c32_i32 = arith.constant 32 : i32
    %c0_i32 = arith.constant 0 : i32
    %1 = arith.cmpi eq, %c32_i32, %c0_i32 : i32
    %c1_i32 = arith.constant 1 : i32
    %2 = arith.select %1, %c1_i32, %c32_i32 : i32
    %3 = vector.broadcast %2 : i32 to vector<1x512xi32>
    %4 = arith.remsi %0, %3 : vector<1x512xi32>
    %c0_i32_0 = arith.constant 0 : i32
    %5 = vector.broadcast %c0_i32_0 : i32 to vector<1x512xi32>
    %6 = arith.cmpi ne, %4, %5 : vector<1x512xi32>
    %c0_i32_1 = arith.constant 0 : i32
    %7 = vector.broadcast %c0_i32_1 : i32 to vector<1x512xi32>
    %8 = arith.cmpi slt, %4, %7 : vector<1x512xi32>
    %c0_i32_2 = arith.constant 0 : i32
    %9 = arith.cmpi slt, %2, %c0_i32_2 : i32
    %10 = vector.broadcast %9 : i1 to vector<1x512xi1>
    %11 = vector.broadcast %10 : vector<1x512xi1> to vector<1x512xi1>
    %12 = arith.xori %8, %11 : vector<1x512xi1>
    %13 = arith.andi %12, %6 : vector<1x512xi1>
    %14 = vector.broadcast %2 : i32 to vector<1x512xi32>
    %15 = arith.addi %4, %14 : vector<1x512xi32>
    %16 = arith.select %13, %15, %4 : vector<1x512xi1>, vector<1x512xi32>
    %c1_i32_3 = arith.constant 1 : i32
    %17 = vector.broadcast %c1_i32_3 : i32 to vector<1x512xi32>
    %18 = arith.cmpi sge, %16, %17 : vector<1x512xi32>
    %c30_i32 = arith.constant 30 : i32
    %19 = vector.broadcast %c30_i32 : i32 to vector<1x512xi32>
    %20 = arith.cmpi sle, %16, %19 : vector<1x512xi32>
    %c0 = arith.constant 0 : index
    %c0_4 = arith.constant 0 : index
    %c0_5 = arith.constant 0 : index
    %21 = vector.load %arg1[%c0, %c0_4, %c0_5] : memref<1x16x512xf32, #tpu.memory_space<vmem>>, vector<1x16x512xf32>
    %22 = vector.shape_cast %21 : vector<1x16x512xf32> to vector<16x512xf32>
    %23 = vector.extract_strided_slice %22 {offsets = [0, 0], sizes = [1, 512], strides = [1, 1]} : vector<16x512xf32> to vector<1x512xf32>
    %24 = vector.extract_strided_slice %22 {offsets = [1, 0], sizes = [1, 512], strides = [1, 1]} : vector<16x512xf32> to vector<1x512xf32>
    %25 = vector.extract_strided_slice %22 {offsets = [2, 0], sizes = [1, 512], strides = [1, 1]} : vector<16x512xf32> to vector<1x512xf32>
    %26 = vector.extract_strided_slice %22 {offsets = [3, 0], sizes = [1, 512], strides = [1, 1]} : vector<16x512xf32> to vector<1x512xf32>
    %27 = vector.extract_strided_slice %22 {offsets = [4, 0], sizes = [1, 512], strides = [1, 1]} : vector<16x512xf32> to vector<1x512xf32>
    %28 = vector.extract_strided_slice %22 {offsets = [5, 0], sizes = [1, 512], strides = [1, 1]} : vector<16x512xf32> to vector<1x512xf32>
    %29 = vector.extract_strided_slice %22 {offsets = [6, 0], sizes = [1, 512], strides = [1, 1]} : vector<16x512xf32> to vector<1x512xf32>
    %30 = vector.extract_strided_slice %22 {offsets = [7, 0], sizes = [1, 512], strides = [1, 1]} : vector<16x512xf32> to vector<1x512xf32>
    %31 = vector.extract_strided_slice %22 {offsets = [8, 0], sizes = [1, 512], strides = [1, 1]} : vector<16x512xf32> to vector<1x512xf32>
    %32 = vector.extract_strided_slice %22 {offsets = [9, 0], sizes = [1, 512], strides = [1, 1]} : vector<16x512xf32> to vector<1x512xf32>
    %33 = vector.extract_strided_slice %22 {offsets = [10, 0], sizes = [1, 512], strides = [1, 1]} : vector<16x512xf32> to vector<1x512xf32>
    %34 = vector.extract_strided_slice %22 {offsets = [11, 0], sizes = [1, 512], strides = [1, 1]} : vector<16x512xf32> to vector<1x512xf32>
    %35 = vector.extract_strided_slice %22 {offsets = [12, 0], sizes = [1, 512], strides = [1, 1]} : vector<16x512xf32> to vector<1x512xf32>
    %36 = vector.extract_strided_slice %22 {offsets = [13, 0], sizes = [1, 512], strides = [1, 1]} : vector<16x512xf32> to vector<1x512xf32>
    %37 = vector.extract_strided_slice %22 {offsets = [14, 0], sizes = [1, 512], strides = [1, 1]} : vector<16x512xf32> to vector<1x512xf32>
    %38 = vector.extract_strided_slice %22 {offsets = [15, 0], sizes = [1, 512], strides = [1, 1]} : vector<16x512xf32> to vector<1x512xf32>
    %39 = tpu.concatenate %24, %26, %28, %30, %32, %34, %36, %38 in 0 : vector<1x512xf32>, vector<1x512xf32>, vector<1x512xf32>, vector<1x512xf32>, vector<1x512xf32>, vector<1x512xf32>, vector<1x512xf32>, vector<1x512xf32> -> vector<8x512xf32>
    %c0_6 = arith.constant 0 : index
    %c0_7 = arith.constant 0 : index
    %40 = vector.load %arg2[%c0_6, %c0_7] : memref<40x9xf32, #tpu.memory_space<vmem>>, vector<40x9xf32>
    %c0_8 = arith.constant 0 : index
    %c0_9 = arith.constant 0 : index
    %41 = vector.load %arg3[%c0_8, %c0_9] : memref<20x1xf32, #tpu.memory_space<vmem>>, vector<20x1xf32>
    %42 = vector.extract_strided_slice %40 {offsets = [0, 0], sizes = [8, 9], strides = [1, 1]} : vector<40x9xf32> to vector<8x9xf32>
    %43 = vector.extract_strided_slice %42 {offsets = [0, 4], sizes = [8, 1], strides = [1, 1]} : vector<8x9xf32> to vector<8x1xf32>
    %44 = vector.broadcast %43 : vector<8x1xf32> to vector<8x512xf32>
    %45 = arith.mulf %39, %44 : vector<8x512xf32>
    %cst = arith.constant 0.000000e+00 : f32
    %46 = vector.broadcast %cst : f32 to vector<8x33xf32>
    %47 = vector.extract_strided_slice %39 {offsets = [0, 0], sizes = [8, 479], strides = [1, 1]} : vector<8x512xf32> to vector<8x479xf32>
    %48 = tpu.concatenate %46, %47 in 1 : vector<8x33xf32>, vector<8x479xf32> -> vector<8x512xf32>
    %cst_10 = arith.constant 0.000000e+00 : f32
    %49 = vector.shape_cast %18 : vector<1x512xi1> to vector<1x512xi1>
    %50 = vector.broadcast %49 : vector<1x512xi1> to vector<8x512xi1>
    %51 = vector.broadcast %cst_10 : f32 to vector<8x512xf32>
    %52 = arith.select %50, %48, %51 : vector<8x512xi1>, vector<8x512xf32>
    %53 = vector.extract_strided_slice %42 {offsets = [0, 0], sizes = [8, 1], strides = [1, 1]} : vector<8x9xf32> to vector<8x1xf32>
    %54 = vector.broadcast %53 : vector<8x1xf32> to vector<8x512xf32>
    %55 = arith.mulf %52, %54 : vector<8x512xf32>
    %56 = arith.addf %45, %55 : vector<8x512xf32>
    %cst_11 = arith.constant 0.000000e+00 : f32
    %57 = vector.broadcast %cst_11 : f32 to vector<8x32xf32>
    %58 = vector.extract_strided_slice %39 {offsets = [0, 0], sizes = [8, 480], strides = [1, 1]} : vector<8x512xf32> to vector<8x480xf32>
    %59 = tpu.concatenate %57, %58 in 1 : vector<8x32xf32>, vector<8x480xf32> -> vector<8x512xf32>
    %60 = vector.extract_strided_slice %42 {offsets = [0, 1], sizes = [8, 1], strides = [1, 1]} : vector<8x9xf32> to vector<8x1xf32>
    %61 = vector.broadcast %60 : vector<8x1xf32> to vector<8x512xf32>
    %62 = arith.mulf %59, %61 : vector<8x512xf32>
    %63 = arith.addf %56, %62 : vector<8x512xf32>
    %cst_12 = arith.constant 0.000000e+00 : f32
    %64 = vector.broadcast %cst_12 : f32 to vector<8x31xf32>
    %65 = vector.extract_strided_slice %39 {offsets = [0, 0], sizes = [8, 481], strides = [1, 1]} : vector<8x512xf32> to vector<8x481xf32>
    %66 = tpu.concatenate %64, %65 in 1 : vector<8x31xf32>, vector<8x481xf32> -> vector<8x512xf32>
    %cst_13 = arith.constant 0.000000e+00 : f32
    %67 = vector.shape_cast %20 : vector<1x512xi1> to vector<1x512xi1>
    %68 = vector.broadcast %67 : vector<1x512xi1> to vector<8x512xi1>
    %69 = vector.broadcast %cst_13 : f32 to vector<8x512xf32>
    %70 = arith.select %68, %66, %69 : vector<8x512xi1>, vector<8x512xf32>
    %71 = vector.extract_strided_slice %42 {offsets = [0, 2], sizes = [8, 1], strides = [1, 1]} : vector<8x9xf32> to vector<8x1xf32>
    %72 = vector.broadcast %71 : vector<8x1xf32> to vector<8x512xf32>
    %73 = arith.mulf %70, %72 : vector<8x512xf32>
    %74 = arith.addf %63, %73 : vector<8x512xf32>
    %cst_14 = arith.constant 0.000000e+00 : f32
    %75 = vector.broadcast %cst_14 : f32 to vector<8x1xf32>
    %76 = vector.extract_strided_slice %39 {offsets = [0, 0], sizes = [8, 511], strides = [1, 1]} : vector<8x512xf32> to vector<8x511xf32>
    %77 = tpu.concatenate %75, %76 in 1 : vector<8x1xf32>, vector<8x511xf32> -> vector<8x512xf32>
    %cst_15 = arith.constant 0.000000e+00 : f32
    %78 = vector.shape_cast %18 : vector<1x512xi1> to vector<1x512xi1>
    %79 = vector.broadcast %78 : vector<1x512xi1> to vector<8x512xi1>
    %80 = vector.broadcast %cst_15 : f32 to vector<8x512xf32>
    %81 = arith.select %79, %77, %80 : vector<8x512xi1>, vector<8x512xf32>
    %82 = vector.extract_strided_slice %42 {offsets = [0, 3], sizes = [8, 1], strides = [1, 1]} : vector<8x9xf32> to vector<8x1xf32>
    %83 = vector.broadcast %82 : vector<8x1xf32> to vector<8x512xf32>
    %84 = arith.mulf %81, %83 : vector<8x512xf32>
    %85 = arith.addf %74, %84 : vector<8x512xf32>
    %cst_16 = arith.constant 0.000000e+00 : f32
    %86 = vector.broadcast %cst_16 : f32 to vector<8x1xf32>
    %87 = vector.extract_strided_slice %39 {offsets = [0, 1], sizes = [8, 511], strides = [1, 1]} : vector<8x512xf32> to vector<8x511xf32>
    %88 = tpu.concatenate %87, %86 in 1 : vector<8x511xf32>, vector<8x1xf32> -> vector<8x512xf32>
    %cst_17 = arith.constant 0.000000e+00 : f32
    %89 = vector.shape_cast %20 : vector<1x512xi1> to vector<1x512xi1>
    %90 = vector.broadcast %89 : vector<1x512xi1> to vector<8x512xi1>
    %91 = vector.broadcast %cst_17 : f32 to vector<8x512xf32>
    %92 = arith.select %90, %88, %91 : vector<8x512xi1>, vector<8x512xf32>
    %93 = vector.extract_strided_slice %42 {offsets = [0, 5], sizes = [8, 1], strides = [1, 1]} : vector<8x9xf32> to vector<8x1xf32>
    %94 = vector.broadcast %93 : vector<8x1xf32> to vector<8x512xf32>
    %95 = arith.mulf %92, %94 : vector<8x512xf32>
    %96 = arith.addf %85, %95 : vector<8x512xf32>
    %cst_18 = arith.constant 0.000000e+00 : f32
    %97 = vector.broadcast %cst_18 : f32 to vector<8x31xf32>
    %98 = vector.extract_strided_slice %39 {offsets = [0, 31], sizes = [8, 481], strides = [1, 1]} : vector<8x512xf32> to vector<8x481xf32>
    %99 = tpu.concatenate %98, %97 in 1 : vector<8x481xf32>, vector<8x31xf32> -> vector<8x512xf32>
    %cst_19 = arith.constant 0.000000e+00 : f32
    %100 = vector.shape_cast %18 : vector<1x512xi1> to vector<1x512xi1>
    %101 = vector.broadcast %100 : vector<1x512xi1> to vector<8x512xi1>
    %102 = vector.broadcast %cst_19 : f32 to vector<8x512xf32>
    %103 = arith.select %101, %99, %102 : vector<8x512xi1>, vector<8x512xf32>
    %104 = vector.extract_strided_slice %42 {offsets = [0, 6], sizes = [8, 1], strides = [1, 1]} : vector<8x9xf32> to vector<8x1xf32>
    %105 = vector.broadcast %104 : vector<8x1xf32> to vector<8x512xf32>
    %106 = arith.mulf %103, %105 : vector<8x512xf32>
    %107 = arith.addf %96, %106 : vector<8x512xf32>
    %cst_20 = arith.constant 0.000000e+00 : f32
    %108 = vector.broadcast %cst_20 : f32 to vector<8x32xf32>
    %109 = vector.extract_strided_slice %39 {offsets = [0, 32], sizes = [8, 480], strides = [1, 1]} : vector<8x512xf32> to vector<8x480xf32>
    %110 = tpu.concatenate %109, %108 in 1 : vector<8x480xf32>, vector<8x32xf32> -> vector<8x512xf32>
    %111 = vector.extract_strided_slice %42 {offsets = [0, 7], sizes = [8, 1], strides = [1, 1]} : vector<8x9xf32> to vector<8x1xf32>
    %112 = vector.broadcast %111 : vector<8x1xf32> to vector<8x512xf32>
    %113 = arith.mulf %110, %112 : vector<8x512xf32>
    %114 = arith.addf %107, %113 : vector<8x512xf32>
    %cst_21 = arith.constant 0.000000e+00 : f32
    %115 = vector.broadcast %cst_21 : f32 to vector<8x33xf32>
    %116 = vector.extract_strided_slice %39 {offsets = [0, 33], sizes = [8, 479], strides = [1, 1]} : vector<8x512xf32> to vector<8x479xf32>
    %117 = tpu.concatenate %116, %115 in 1 : vector<8x479xf32>, vector<8x33xf32> -> vector<8x512xf32>
    %cst_22 = arith.constant 0.000000e+00 : f32
    %118 = vector.shape_cast %20 : vector<1x512xi1> to vector<1x512xi1>
    %119 = vector.broadcast %118 : vector<1x512xi1> to vector<8x512xi1>
    %120 = vector.broadcast %cst_22 : f32 to vector<8x512xf32>
    %121 = arith.select %119, %117, %120 : vector<8x512xi1>, vector<8x512xf32>
    %122 = vector.extract_strided_slice %42 {offsets = [0, 8], sizes = [8, 1], strides = [1, 1]} : vector<8x9xf32> to vector<8x1xf32>
    %123 = vector.broadcast %122 : vector<8x1xf32> to vector<8x512xf32>
    %124 = arith.mulf %121, %123 : vector<8x512xf32>
    %125 = arith.addf %114, %124 : vector<8x512xf32>
    %c0_23 = arith.constant 0 : index
    %c0_24 = arith.constant 0 : index
    %126 = vector.load %arg4[%c0_23, %c0_24] : memref<8x4xf32, #tpu.memory_space<vmem>>, vector<8x4xf32>
    %127 = vector.extract_strided_slice %41 {offsets = [0, 0], sizes = [8, 1], strides = [1, 1]} : vector<20x1xf32> to vector<8x1xf32>
    %128 = vector.extract_strided_slice %125 {offsets = [0, 0], sizes = [4, 512], strides = [1, 1]} : vector<8x512xf32> to vector<4x512xf32>
    %129 = vector.extract_strided_slice %126 {offsets = [0, 0], sizes = [8, 1], strides = [1, 1]} : vector<8x4xf32> to vector<8x1xf32>
    %130 = vector.extract_strided_slice %128 {offsets = [0, 0], sizes = [1, 512], strides = [1, 1]} : vector<4x512xf32> to vector<1x512xf32>
    %131 = vector.broadcast %129 : vector<8x1xf32> to vector<8x512xf32>
    %132 = vector.broadcast %130 : vector<1x512xf32> to vector<8x512xf32>
    %133 = arith.mulf %131, %132 : vector<8x512xf32>
    %134 = vector.extract_strided_slice %126 {offsets = [0, 1], sizes = [8, 1], strides = [1, 1]} : vector<8x4xf32> to vector<8x1xf32>
    %135 = vector.extract_strided_slice %128 {offsets = [1, 0], sizes = [1, 512], strides = [1, 1]} : vector<4x512xf32> to vector<1x512xf32>
    %136 = vector.broadcast %134 : vector<8x1xf32> to vector<8x512xf32>
    %137 = vector.broadcast %135 : vector<1x512xf32> to vector<8x512xf32>
    %138 = arith.mulf %136, %137 : vector<8x512xf32>
    %139 = arith.addf %133, %138 : vector<8x512xf32>
    %140 = vector.extract_strided_slice %126 {offsets = [0, 2], sizes = [8, 1], strides = [1, 1]} : vector<8x4xf32> to vector<8x1xf32>
    %141 = vector.extract_strided_slice %128 {offsets = [2, 0], sizes = [1, 512], strides = [1, 1]} : vector<4x512xf32> to vector<1x512xf32>
    %142 = vector.broadcast %140 : vector<8x1xf32> to vector<8x512xf32>
    %143 = vector.broadcast %141 : vector<1x512xf32> to vector<8x512xf32>
    %144 = arith.mulf %142, %143 : vector<8x512xf32>
    %145 = arith.addf %139, %144 : vector<8x512xf32>
    %146 = vector.extract_strided_slice %126 {offsets = [0, 3], sizes = [8, 1], strides = [1, 1]} : vector<8x4xf32> to vector<8x1xf32>
    %147 = vector.extract_strided_slice %128 {offsets = [3, 0], sizes = [1, 512], strides = [1, 1]} : vector<4x512xf32> to vector<1x512xf32>
    %148 = vector.broadcast %146 : vector<8x1xf32> to vector<8x512xf32>
    %149 = vector.broadcast %147 : vector<1x512xf32> to vector<8x512xf32>
    %150 = arith.mulf %148, %149 : vector<8x512xf32>
    %151 = arith.addf %145, %150 : vector<8x512xf32>
    %152 = vector.broadcast %127 : vector<8x1xf32> to vector<8x512xf32>
    %153 = arith.addf %151, %152 : vector<8x512xf32>
    %cst_25 = arith.constant 0.000000e+00 : f32
    %154 = vector.broadcast %cst_25 : f32 to vector<8x512xf32>
    %155 = arith.maximumf %153, %154 : vector<8x512xf32>
    %156 = vector.extract_strided_slice %125 {offsets = [4, 0], sizes = [4, 512], strides = [1, 1]} : vector<8x512xf32> to vector<4x512xf32>
    %157 = vector.extract_strided_slice %126 {offsets = [0, 0], sizes = [8, 1], strides = [1, 1]} : vector<8x4xf32> to vector<8x1xf32>
    %158 = vector.extract_strided_slice %156 {offsets = [0, 0], sizes = [1, 512], strides = [1, 1]} : vector<4x512xf32> to vector<1x512xf32>
    %159 = vector.broadcast %157 : vector<8x1xf32> to vector<8x512xf32>
    %160 = vector.broadcast %158 : vector<1x512xf32> to vector<8x512xf32>
    %161 = arith.mulf %159, %160 : vector<8x512xf32>
    %162 = vector.extract_strided_slice %126 {offsets = [0, 1], sizes = [8, 1], strides = [1, 1]} : vector<8x4xf32> to vector<8x1xf32>
    %163 = vector.extract_strided_slice %156 {offsets = [1, 0], sizes = [1, 512], strides = [1, 1]} : vector<4x512xf32> to vector<1x512xf32>
    %164 = vector.broadcast %162 : vector<8x1xf32> to vector<8x512xf32>
    %165 = vector.broadcast %163 : vector<1x512xf32> to vector<8x512xf32>
    %166 = arith.mulf %164, %165 : vector<8x512xf32>
    %167 = arith.addf %161, %166 : vector<8x512xf32>
    %168 = vector.extract_strided_slice %126 {offsets = [0, 2], sizes = [8, 1], strides = [1, 1]} : vector<8x4xf32> to vector<8x1xf32>
    %169 = vector.extract_strided_slice %156 {offsets = [2, 0], sizes = [1, 512], strides = [1, 1]} : vector<4x512xf32> to vector<1x512xf32>
    %170 = vector.broadcast %168 : vector<8x1xf32> to vector<8x512xf32>
    %171 = vector.broadcast %169 : vector<1x512xf32> to vector<8x512xf32>
    %172 = arith.mulf %170, %171 : vector<8x512xf32>
    %173 = arith.addf %167, %172 : vector<8x512xf32>
    %174 = vector.extract_strided_slice %126 {offsets = [0, 3], sizes = [8, 1], strides = [1, 1]} : vector<8x4xf32> to vector<8x1xf32>
    %175 = vector.extract_strided_slice %156 {offsets = [3, 0], sizes = [1, 512], strides = [1, 1]} : vector<4x512xf32> to vector<1x512xf32>
    %176 = vector.broadcast %174 : vector<8x1xf32> to vector<8x512xf32>
    %177 = vector.broadcast %175 : vector<1x512xf32> to vector<8x512xf32>
    %178 = arith.mulf %176, %177 : vector<8x512xf32>
    %179 = arith.addf %173, %178 : vector<8x512xf32>
    %180 = vector.broadcast %127 : vector<8x1xf32> to vector<8x512xf32>
    %181 = arith.addf %179, %180 : vector<8x512xf32>
    %cst_26 = arith.constant 0.000000e+00 : f32
    %182 = vector.broadcast %cst_26 : f32 to vector<8x512xf32>
    %183 = arith.maximumf %181, %182 : vector<8x512xf32>
    %184 = tpu.concatenate %155, %183 in 0 : vector<8x512xf32>, vector<8x512xf32> -> vector<16x512xf32>
    %185 = vector.extract_strided_slice %40 {offsets = [8, 0], sizes = [16, 9], strides = [1, 1]} : vector<40x9xf32> to vector<16x9xf32>
    %186 = vector.extract_strided_slice %185 {offsets = [0, 4], sizes = [16, 1], strides = [1, 1]} : vector<16x9xf32> to vector<16x1xf32>
    %187 = vector.broadcast %186 : vector<16x1xf32> to vector<16x512xf32>
    %188 = arith.mulf %184, %187 : vector<16x512xf32>
    %cst_27 = arith.constant 0.000000e+00 : f32
    %189 = vector.broadcast %cst_27 : f32 to vector<16x33xf32>
    %190 = vector.extract_strided_slice %184 {offsets = [0, 0], sizes = [16, 479], strides = [1, 1]} : vector<16x512xf32> to vector<16x479xf32>
    %191 = tpu.concatenate %189, %190 in 1 : vector<16x33xf32>, vector<16x479xf32> -> vector<16x512xf32>
    %cst_28 = arith.constant 0.000000e+00 : f32
    %192 = vector.shape_cast %18 : vector<1x512xi1> to vector<1x512xi1>
    %193 = vector.broadcast %192 : vector<1x512xi1> to vector<16x512xi1>
    %194 = vector.broadcast %cst_28 : f32 to vector<16x512xf32>
    %195 = arith.select %193, %191, %194 : vector<16x512xi1>, vector<16x512xf32>
    %196 = vector.extract_strided_slice %185 {offsets = [0, 0], sizes = [16, 1], strides = [1, 1]} : vector<16x9xf32> to vector<16x1xf32>
    %197 = vector.broadcast %196 : vector<16x1xf32> to vector<16x512xf32>
    %198 = arith.mulf %195, %197 : vector<16x512xf32>
    %199 = arith.addf %188, %198 : vector<16x512xf32>
    %cst_29 = arith.constant 0.000000e+00 : f32
    %200 = vector.broadcast %cst_29 : f32 to vector<16x32xf32>
    %201 = vector.extract_strided_slice %184 {offsets = [0, 0], sizes = [16, 480], strides = [1, 1]} : vector<16x512xf32> to vector<16x480xf32>
    %202 = tpu.concatenate %200, %201 in 1 : vector<16x32xf32>, vector<16x480xf32> -> vector<16x512xf32>
    %203 = vector.extract_strided_slice %185 {offsets = [0, 1], sizes = [16, 1], strides = [1, 1]} : vector<16x9xf32> to vector<16x1xf32>
    %204 = vector.broadcast %203 : vector<16x1xf32> to vector<16x512xf32>
    %205 = arith.mulf %202, %204 : vector<16x512xf32>
    %206 = arith.addf %199, %205 : vector<16x512xf32>
    %cst_30 = arith.constant 0.000000e+00 : f32
    %207 = vector.broadcast %cst_30 : f32 to vector<16x31xf32>
    %208 = vector.extract_strided_slice %184 {offsets = [0, 0], sizes = [16, 481], strides = [1, 1]} : vector<16x512xf32> to vector<16x481xf32>
    %209 = tpu.concatenate %207, %208 in 1 : vector<16x31xf32>, vector<16x481xf32> -> vector<16x512xf32>
    %cst_31 = arith.constant 0.000000e+00 : f32
    %210 = vector.shape_cast %20 : vector<1x512xi1> to vector<1x512xi1>
    %211 = vector.broadcast %210 : vector<1x512xi1> to vector<16x512xi1>
    %212 = vector.broadcast %cst_31 : f32 to vector<16x512xf32>
    %213 = arith.select %211, %209, %212 : vector<16x512xi1>, vector<16x512xf32>
    %214 = vector.extract_strided_slice %185 {offsets = [0, 2], sizes = [16, 1], strides = [1, 1]} : vector<16x9xf32> to vector<16x1xf32>
    %215 = vector.broadcast %214 : vector<16x1xf32> to vector<16x512xf32>
    %216 = arith.mulf %213, %215 : vector<16x512xf32>
    %217 = arith.addf %206, %216 : vector<16x512xf32>
    %cst_32 = arith.constant 0.000000e+00 : f32
    %218 = vector.broadcast %cst_32 : f32 to vector<16x1xf32>
    %219 = vector.extract_strided_slice %184 {offsets = [0, 0], sizes = [16, 511], strides = [1, 1]} : vector<16x512xf32> to vector<16x511xf32>
    %220 = tpu.concatenate %218, %219 in 1 : vector<16x1xf32>, vector<16x511xf32> -> vector<16x512xf32>
    %cst_33 = arith.constant 0.000000e+00 : f32
    %221 = vector.shape_cast %18 : vector<1x512xi1> to vector<1x512xi1>
    %222 = vector.broadcast %221 : vector<1x512xi1> to vector<16x512xi1>
    %223 = vector.broadcast %cst_33 : f32 to vector<16x512xf32>
    %224 = arith.select %222, %220, %223 : vector<16x512xi1>, vector<16x512xf32>
    %225 = vector.extract_strided_slice %185 {offsets = [0, 3], sizes = [16, 1], strides = [1, 1]} : vector<16x9xf32> to vector<16x1xf32>
    %226 = vector.broadcast %225 : vector<16x1xf32> to vector<16x512xf32>
    %227 = arith.mulf %224, %226 : vector<16x512xf32>
    %228 = arith.addf %217, %227 : vector<16x512xf32>
    %cst_34 = arith.constant 0.000000e+00 : f32
    %229 = vector.broadcast %cst_34 : f32 to vector<16x1xf32>
    %230 = vector.extract_strided_slice %184 {offsets = [0, 1], sizes = [16, 511], strides = [1, 1]} : vector<16x512xf32> to vector<16x511xf32>
    %231 = tpu.concatenate %230, %229 in 1 : vector<16x511xf32>, vector<16x1xf32> -> vector<16x512xf32>
    %cst_35 = arith.constant 0.000000e+00 : f32
    %232 = vector.shape_cast %20 : vector<1x512xi1> to vector<1x512xi1>
    %233 = vector.broadcast %232 : vector<1x512xi1> to vector<16x512xi1>
    %234 = vector.broadcast %cst_35 : f32 to vector<16x512xf32>
    %235 = arith.select %233, %231, %234 : vector<16x512xi1>, vector<16x512xf32>
    %236 = vector.extract_strided_slice %185 {offsets = [0, 5], sizes = [16, 1], strides = [1, 1]} : vector<16x9xf32> to vector<16x1xf32>
    %237 = vector.broadcast %236 : vector<16x1xf32> to vector<16x512xf32>
    %238 = arith.mulf %235, %237 : vector<16x512xf32>
    %239 = arith.addf %228, %238 : vector<16x512xf32>
    %cst_36 = arith.constant 0.000000e+00 : f32
    %240 = vector.broadcast %cst_36 : f32 to vector<16x31xf32>
    %241 = vector.extract_strided_slice %184 {offsets = [0, 31], sizes = [16, 481], strides = [1, 1]} : vector<16x512xf32> to vector<16x481xf32>
    %242 = tpu.concatenate %241, %240 in 1 : vector<16x481xf32>, vector<16x31xf32> -> vector<16x512xf32>
    %cst_37 = arith.constant 0.000000e+00 : f32
    %243 = vector.shape_cast %18 : vector<1x512xi1> to vector<1x512xi1>
    %244 = vector.broadcast %243 : vector<1x512xi1> to vector<16x512xi1>
    %245 = vector.broadcast %cst_37 : f32 to vector<16x512xf32>
    %246 = arith.select %244, %242, %245 : vector<16x512xi1>, vector<16x512xf32>
    %247 = vector.extract_strided_slice %185 {offsets = [0, 6], sizes = [16, 1], strides = [1, 1]} : vector<16x9xf32> to vector<16x1xf32>
    %248 = vector.broadcast %247 : vector<16x1xf32> to vector<16x512xf32>
    %249 = arith.mulf %246, %248 : vector<16x512xf32>
    %250 = arith.addf %239, %249 : vector<16x512xf32>
    %cst_38 = arith.constant 0.000000e+00 : f32
    %251 = vector.broadcast %cst_38 : f32 to vector<16x32xf32>
    %252 = vector.extract_strided_slice %184 {offsets = [0, 32], sizes = [16, 480], strides = [1, 1]} : vector<16x512xf32> to vector<16x480xf32>
    %253 = tpu.concatenate %252, %251 in 1 : vector<16x480xf32>, vector<16x32xf32> -> vector<16x512xf32>
    %254 = vector.extract_strided_slice %185 {offsets = [0, 7], sizes = [16, 1], strides = [1, 1]} : vector<16x9xf32> to vector<16x1xf32>
    %255 = vector.broadcast %254 : vector<16x1xf32> to vector<16x512xf32>
    %256 = arith.mulf %253, %255 : vector<16x512xf32>
    %257 = arith.addf %250, %256 : vector<16x512xf32>
    %cst_39 = arith.constant 0.000000e+00 : f32
    %258 = vector.broadcast %cst_39 : f32 to vector<16x33xf32>
    %259 = vector.extract_strided_slice %184 {offsets = [0, 33], sizes = [16, 479], strides = [1, 1]} : vector<16x512xf32> to vector<16x479xf32>
    %260 = tpu.concatenate %259, %258 in 1 : vector<16x479xf32>, vector<16x33xf32> -> vector<16x512xf32>
    %cst_40 = arith.constant 0.000000e+00 : f32
    %261 = vector.shape_cast %20 : vector<1x512xi1> to vector<1x512xi1>
    %262 = vector.broadcast %261 : vector<1x512xi1> to vector<16x512xi1>
    %263 = vector.broadcast %cst_40 : f32 to vector<16x512xf32>
    %264 = arith.select %262, %260, %263 : vector<16x512xi1>, vector<16x512xf32>
    %265 = vector.extract_strided_slice %185 {offsets = [0, 8], sizes = [16, 1], strides = [1, 1]} : vector<16x9xf32> to vector<16x1xf32>
    %266 = vector.broadcast %265 : vector<16x1xf32> to vector<16x512xf32>
    %267 = arith.mulf %264, %266 : vector<16x512xf32>
    %268 = arith.addf %257, %267 : vector<16x512xf32>
    %c0_41 = arith.constant 0 : index
    %c0_42 = arith.constant 0 : index
    %269 = vector.load %arg5[%c0_41, %c0_42] : memref<8x8xf32, #tpu.memory_space<vmem>>, vector<8x8xf32>
    %270 = vector.extract_strided_slice %41 {offsets = [8, 0], sizes = [8, 1], strides = [1, 1]} : vector<20x1xf32> to vector<8x1xf32>
    %271 = vector.extract_strided_slice %268 {offsets = [0, 0], sizes = [8, 512], strides = [1, 1]} : vector<16x512xf32> to vector<8x512xf32>
    %272 = vector.extract_strided_slice %269 {offsets = [0, 0], sizes = [8, 1], strides = [1, 1]} : vector<8x8xf32> to vector<8x1xf32>
    %273 = vector.extract_strided_slice %271 {offsets = [0, 0], sizes = [1, 512], strides = [1, 1]} : vector<8x512xf32> to vector<1x512xf32>
    %274 = vector.broadcast %272 : vector<8x1xf32> to vector<8x512xf32>
    %275 = vector.broadcast %273 : vector<1x512xf32> to vector<8x512xf32>
    %276 = arith.mulf %274, %275 : vector<8x512xf32>
    %277 = vector.extract_strided_slice %269 {offsets = [0, 1], sizes = [8, 1], strides = [1, 1]} : vector<8x8xf32> to vector<8x1xf32>
    %278 = vector.extract_strided_slice %271 {offsets = [1, 0], sizes = [1, 512], strides = [1, 1]} : vector<8x512xf32> to vector<1x512xf32>
    %279 = vector.broadcast %277 : vector<8x1xf32> to vector<8x512xf32>
    %280 = vector.broadcast %278 : vector<1x512xf32> to vector<8x512xf32>
    %281 = arith.mulf %279, %280 : vector<8x512xf32>
    %282 = arith.addf %276, %281 : vector<8x512xf32>
    %283 = vector.extract_strided_slice %269 {offsets = [0, 2], sizes = [8, 1], strides = [1, 1]} : vector<8x8xf32> to vector<8x1xf32>
    %284 = vector.extract_strided_slice %271 {offsets = [2, 0], sizes = [1, 512], strides = [1, 1]} : vector<8x512xf32> to vector<1x512xf32>
    %285 = vector.broadcast %283 : vector<8x1xf32> to vector<8x512xf32>
    %286 = vector.broadcast %284 : vector<1x512xf32> to vector<8x512xf32>
    %287 = arith.mulf %285, %286 : vector<8x512xf32>
    %288 = arith.addf %282, %287 : vector<8x512xf32>
    %289 = vector.extract_strided_slice %269 {offsets = [0, 3], sizes = [8, 1], strides = [1, 1]} : vector<8x8xf32> to vector<8x1xf32>
    %290 = vector.extract_strided_slice %271 {offsets = [3, 0], sizes = [1, 512], strides = [1, 1]} : vector<8x512xf32> to vector<1x512xf32>
    %291 = vector.broadcast %289 : vector<8x1xf32> to vector<8x512xf32>
    %292 = vector.broadcast %290 : vector<1x512xf32> to vector<8x512xf32>
    %293 = arith.mulf %291, %292 : vector<8x512xf32>
    %294 = arith.addf %288, %293 : vector<8x512xf32>
    %295 = vector.extract_strided_slice %269 {offsets = [0, 4], sizes = [8, 1], strides = [1, 1]} : vector<8x8xf32> to vector<8x1xf32>
    %296 = vector.extract_strided_slice %271 {offsets = [4, 0], sizes = [1, 512], strides = [1, 1]} : vector<8x512xf32> to vector<1x512xf32>
    %297 = vector.broadcast %295 : vector<8x1xf32> to vector<8x512xf32>
    %298 = vector.broadcast %296 : vector<1x512xf32> to vector<8x512xf32>
    %299 = arith.mulf %297, %298 : vector<8x512xf32>
    %300 = arith.addf %294, %299 : vector<8x512xf32>
    %301 = vector.extract_strided_slice %269 {offsets = [0, 5], sizes = [8, 1], strides = [1, 1]} : vector<8x8xf32> to vector<8x1xf32>
    %302 = vector.extract_strided_slice %271 {offsets = [5, 0], sizes = [1, 512], strides = [1, 1]} : vector<8x512xf32> to vector<1x512xf32>
    %303 = vector.broadcast %301 : vector<8x1xf32> to vector<8x512xf32>
    %304 = vector.broadcast %302 : vector<1x512xf32> to vector<8x512xf32>
    %305 = arith.mulf %303, %304 : vector<8x512xf32>
    %306 = arith.addf %300, %305 : vector<8x512xf32>
    %307 = vector.extract_strided_slice %269 {offsets = [0, 6], sizes = [8, 1], strides = [1, 1]} : vector<8x8xf32> to vector<8x1xf32>
    %308 = vector.extract_strided_slice %271 {offsets = [6, 0], sizes = [1, 512], strides = [1, 1]} : vector<8x512xf32> to vector<1x512xf32>
    %309 = vector.broadcast %307 : vector<8x1xf32> to vector<8x512xf32>
    %310 = vector.broadcast %308 : vector<1x512xf32> to vector<8x512xf32>
    %311 = arith.mulf %309, %310 : vector<8x512xf32>
    %312 = arith.addf %306, %311 : vector<8x512xf32>
    %313 = vector.extract_strided_slice %269 {offsets = [0, 7], sizes = [8, 1], strides = [1, 1]} : vector<8x8xf32> to vector<8x1xf32>
    %314 = vector.extract_strided_slice %271 {offsets = [7, 0], sizes = [1, 512], strides = [1, 1]} : vector<8x512xf32> to vector<1x512xf32>
    %315 = vector.broadcast %313 : vector<8x1xf32> to vector<8x512xf32>
    %316 = vector.broadcast %314 : vector<1x512xf32> to vector<8x512xf32>
    %317 = arith.mulf %315, %316 : vector<8x512xf32>
    %318 = arith.addf %312, %317 : vector<8x512xf32>
    %319 = vector.broadcast %270 : vector<8x1xf32> to vector<8x512xf32>
    %320 = arith.addf %318, %319 : vector<8x512xf32>
    %cst_43 = arith.constant 0.000000e+00 : f32
    %321 = vector.broadcast %cst_43 : f32 to vector<8x512xf32>
    %322 = arith.maximumf %320, %321 : vector<8x512xf32>
    %323 = vector.extract_strided_slice %268 {offsets = [8, 0], sizes = [8, 512], strides = [1, 1]} : vector<16x512xf32> to vector<8x512xf32>
    %324 = vector.extract_strided_slice %269 {offsets = [0, 0], sizes = [8, 1], strides = [1, 1]} : vector<8x8xf32> to vector<8x1xf32>
    %325 = vector.extract_strided_slice %323 {offsets = [0, 0], sizes = [1, 512], strides = [1, 1]} : vector<8x512xf32> to vector<1x512xf32>
    %326 = vector.broadcast %324 : vector<8x1xf32> to vector<8x512xf32>
    %327 = vector.broadcast %325 : vector<1x512xf32> to vector<8x512xf32>
    %328 = arith.mulf %326, %327 : vector<8x512xf32>
    %329 = vector.extract_strided_slice %269 {offsets = [0, 1], sizes = [8, 1], strides = [1, 1]} : vector<8x8xf32> to vector<8x1xf32>
    %330 = vector.extract_strided_slice %323 {offsets = [1, 0], sizes = [1, 512], strides = [1, 1]} : vector<8x512xf32> to vector<1x512xf32>
    %331 = vector.broadcast %329 : vector<8x1xf32> to vector<8x512xf32>
    %332 = vector.broadcast %330 : vector<1x512xf32> to vector<8x512xf32>
    %333 = arith.mulf %331, %332 : vector<8x512xf32>
    %334 = arith.addf %328, %333 : vector<8x512xf32>
    %335 = vector.extract_strided_slice %269 {offsets = [0, 2], sizes = [8, 1], strides = [1, 1]} : vector<8x8xf32> to vector<8x1xf32>
    %336 = vector.extract_strided_slice %323 {offsets = [2, 0], sizes = [1, 512], strides = [1, 1]} : vector<8x512xf32> to vector<1x512xf32>
    %337 = vector.broadcast %335 : vector<8x1xf32> to vector<8x512xf32>
    %338 = vector.broadcast %336 : vector<1x512xf32> to vector<8x512xf32>
    %339 = arith.mulf %337, %338 : vector<8x512xf32>
    %340 = arith.addf %334, %339 : vector<8x512xf32>
    %341 = vector.extract_strided_slice %269 {offsets = [0, 3], sizes = [8, 1], strides = [1, 1]} : vector<8x8xf32> to vector<8x1xf32>
    %342 = vector.extract_strided_slice %323 {offsets = [3, 0], sizes = [1, 512], strides = [1, 1]} : vector<8x512xf32> to vector<1x512xf32>
    %343 = vector.broadcast %341 : vector<8x1xf32> to vector<8x512xf32>
    %344 = vector.broadcast %342 : vector<1x512xf32> to vector<8x512xf32>
    %345 = arith.mulf %343, %344 : vector<8x512xf32>
    %346 = arith.addf %340, %345 : vector<8x512xf32>
    %347 = vector.extract_strided_slice %269 {offsets = [0, 4], sizes = [8, 1], strides = [1, 1]} : vector<8x8xf32> to vector<8x1xf32>
    %348 = vector.extract_strided_slice %323 {offsets = [4, 0], sizes = [1, 512], strides = [1, 1]} : vector<8x512xf32> to vector<1x512xf32>
    %349 = vector.broadcast %347 : vector<8x1xf32> to vector<8x512xf32>
    %350 = vector.broadcast %348 : vector<1x512xf32> to vector<8x512xf32>
    %351 = arith.mulf %349, %350 : vector<8x512xf32>
    %352 = arith.addf %346, %351 : vector<8x512xf32>
    %353 = vector.extract_strided_slice %269 {offsets = [0, 5], sizes = [8, 1], strides = [1, 1]} : vector<8x8xf32> to vector<8x1xf32>
    %354 = vector.extract_strided_slice %323 {offsets = [5, 0], sizes = [1, 512], strides = [1, 1]} : vector<8x512xf32> to vector<1x512xf32>
    %355 = vector.broadcast %353 : vector<8x1xf32> to vector<8x512xf32>
    %356 = vector.broadcast %354 : vector<1x512xf32> to vector<8x512xf32>
    %357 = arith.mulf %355, %356 : vector<8x512xf32>
    %358 = arith.addf %352, %357 : vector<8x512xf32>
    %359 = vector.extract_strided_slice %269 {offsets = [0, 6], sizes = [8, 1], strides = [1, 1]} : vector<8x8xf32> to vector<8x1xf32>
    %360 = vector.extract_strided_slice %323 {offsets = [6, 0], sizes = [1, 512], strides = [1, 1]} : vector<8x512xf32> to vector<1x512xf32>
    %361 = vector.broadcast %359 : vector<8x1xf32> to vector<8x512xf32>
    %362 = vector.broadcast %360 : vector<1x512xf32> to vector<8x512xf32>
    %363 = arith.mulf %361, %362 : vector<8x512xf32>
    %364 = arith.addf %358, %363 : vector<8x512xf32>
    %365 = vector.extract_strided_slice %269 {offsets = [0, 7], sizes = [8, 1], strides = [1, 1]} : vector<8x8xf32> to vector<8x1xf32>
    %366 = vector.extract_strided_slice %323 {offsets = [7, 0], sizes = [1, 512], strides = [1, 1]} : vector<8x512xf32> to vector<1x512xf32>
    %367 = vector.broadcast %365 : vector<8x1xf32> to vector<8x512xf32>
    %368 = vector.broadcast %366 : vector<1x512xf32> to vector<8x512xf32>
    %369 = arith.mulf %367, %368 : vector<8x512xf32>
    %370 = arith.addf %364, %369 : vector<8x512xf32>
    %371 = vector.broadcast %270 : vector<8x1xf32> to vector<8x512xf32>
    %372 = arith.addf %370, %371 : vector<8x512xf32>
    %cst_44 = arith.constant 0.000000e+00 : f32
    %373 = vector.broadcast %cst_44 : f32 to vector<8x512xf32>
    %374 = arith.maximumf %372, %373 : vector<8x512xf32>
    %375 = tpu.concatenate %322, %374 in 0 : vector<8x512xf32>, vector<8x512xf32> -> vector<16x512xf32>
    %376 = vector.extract_strided_slice %40 {offsets = [24, 0], sizes = [16, 9], strides = [1, 1]} : vector<40x9xf32> to vector<16x9xf32>
    %377 = vector.extract_strided_slice %376 {offsets = [0, 4], sizes = [16, 1], strides = [1, 1]} : vector<16x9xf32> to vector<16x1xf32>
    %378 = vector.broadcast %377 : vector<16x1xf32> to vector<16x512xf32>
    %379 = arith.mulf %375, %378 : vector<16x512xf32>
    %cst_45 = arith.constant 0.000000e+00 : f32
    %380 = vector.broadcast %cst_45 : f32 to vector<16x33xf32>
    %381 = vector.extract_strided_slice %375 {offsets = [0, 0], sizes = [16, 479], strides = [1, 1]} : vector<16x512xf32> to vector<16x479xf32>
    %382 = tpu.concatenate %380, %381 in 1 : vector<16x33xf32>, vector<16x479xf32> -> vector<16x512xf32>
    %cst_46 = arith.constant 0.000000e+00 : f32
    %383 = vector.shape_cast %18 : vector<1x512xi1> to vector<1x512xi1>
    %384 = vector.broadcast %383 : vector<1x512xi1> to vector<16x512xi1>
    %385 = vector.broadcast %cst_46 : f32 to vector<16x512xf32>
    %386 = arith.select %384, %382, %385 : vector<16x512xi1>, vector<16x512xf32>
    %387 = vector.extract_strided_slice %376 {offsets = [0, 0], sizes = [16, 1], strides = [1, 1]} : vector<16x9xf32> to vector<16x1xf32>
    %388 = vector.broadcast %387 : vector<16x1xf32> to vector<16x512xf32>
    %389 = arith.mulf %386, %388 : vector<16x512xf32>
    %390 = arith.addf %379, %389 : vector<16x512xf32>
    %cst_47 = arith.constant 0.000000e+00 : f32
    %391 = vector.broadcast %cst_47 : f32 to vector<16x32xf32>
    %392 = vector.extract_strided_slice %375 {offsets = [0, 0], sizes = [16, 480], strides = [1, 1]} : vector<16x512xf32> to vector<16x480xf32>
    %393 = tpu.concatenate %391, %392 in 1 : vector<16x32xf32>, vector<16x480xf32> -> vector<16x512xf32>
    %394 = vector.extract_strided_slice %376 {offsets = [0, 1], sizes = [16, 1], strides = [1, 1]} : vector<16x9xf32> to vector<16x1xf32>
    %395 = vector.broadcast %394 : vector<16x1xf32> to vector<16x512xf32>
    %396 = arith.mulf %393, %395 : vector<16x512xf32>
    %397 = arith.addf %390, %396 : vector<16x512xf32>
    %cst_48 = arith.constant 0.000000e+00 : f32
    %398 = vector.broadcast %cst_48 : f32 to vector<16x31xf32>
    %399 = vector.extract_strided_slice %375 {offsets = [0, 0], sizes = [16, 481], strides = [1, 1]} : vector<16x512xf32> to vector<16x481xf32>
    %400 = tpu.concatenate %398, %399 in 1 : vector<16x31xf32>, vector<16x481xf32> -> vector<16x512xf32>
    %cst_49 = arith.constant 0.000000e+00 : f32
    %401 = vector.shape_cast %20 : vector<1x512xi1> to vector<1x512xi1>
    %402 = vector.broadcast %401 : vector<1x512xi1> to vector<16x512xi1>
    %403 = vector.broadcast %cst_49 : f32 to vector<16x512xf32>
    %404 = arith.select %402, %400, %403 : vector<16x512xi1>, vector<16x512xf32>
    %405 = vector.extract_strided_slice %376 {offsets = [0, 2], sizes = [16, 1], strides = [1, 1]} : vector<16x9xf32> to vector<16x1xf32>
    %406 = vector.broadcast %405 : vector<16x1xf32> to vector<16x512xf32>
    %407 = arith.mulf %404, %406 : vector<16x512xf32>
    %408 = arith.addf %397, %407 : vector<16x512xf32>
    %cst_50 = arith.constant 0.000000e+00 : f32
    %409 = vector.broadcast %cst_50 : f32 to vector<16x1xf32>
    %410 = vector.extract_strided_slice %375 {offsets = [0, 0], sizes = [16, 511], strides = [1, 1]} : vector<16x512xf32> to vector<16x511xf32>
    %411 = tpu.concatenate %409, %410 in 1 : vector<16x1xf32>, vector<16x511xf32> -> vector<16x512xf32>
    %cst_51 = arith.constant 0.000000e+00 : f32
    %412 = vector.shape_cast %18 : vector<1x512xi1> to vector<1x512xi1>
    %413 = vector.broadcast %412 : vector<1x512xi1> to vector<16x512xi1>
    %414 = vector.broadcast %cst_51 : f32 to vector<16x512xf32>
    %415 = arith.select %413, %411, %414 : vector<16x512xi1>, vector<16x512xf32>
    %416 = vector.extract_strided_slice %376 {offsets = [0, 3], sizes = [16, 1], strides = [1, 1]} : vector<16x9xf32> to vector<16x1xf32>
    %417 = vector.broadcast %416 : vector<16x1xf32> to vector<16x512xf32>
    %418 = arith.mulf %415, %417 : vector<16x512xf32>
    %419 = arith.addf %408, %418 : vector<16x512xf32>
    %cst_52 = arith.constant 0.000000e+00 : f32
    %420 = vector.broadcast %cst_52 : f32 to vector<16x1xf32>
    %421 = vector.extract_strided_slice %375 {offsets = [0, 1], sizes = [16, 511], strides = [1, 1]} : vector<16x512xf32> to vector<16x511xf32>
    %422 = tpu.concatenate %421, %420 in 1 : vector<16x511xf32>, vector<16x1xf32> -> vector<16x512xf32>
    %cst_53 = arith.constant 0.000000e+00 : f32
    %423 = vector.shape_cast %20 : vector<1x512xi1> to vector<1x512xi1>
    %424 = vector.broadcast %423 : vector<1x512xi1> to vector<16x512xi1>
    %425 = vector.broadcast %cst_53 : f32 to vector<16x512xf32>
    %426 = arith.select %424, %422, %425 : vector<16x512xi1>, vector<16x512xf32>
    %427 = vector.extract_strided_slice %376 {offsets = [0, 5], sizes = [16, 1], strides = [1, 1]} : vector<16x9xf32> to vector<16x1xf32>
    %428 = vector.broadcast %427 : vector<16x1xf32> to vector<16x512xf32>
    %429 = arith.mulf %426, %428 : vector<16x512xf32>
    %430 = arith.addf %419, %429 : vector<16x512xf32>
    %cst_54 = arith.constant 0.000000e+00 : f32
    %431 = vector.broadcast %cst_54 : f32 to vector<16x31xf32>
    %432 = vector.extract_strided_slice %375 {offsets = [0, 31], sizes = [16, 481], strides = [1, 1]} : vector<16x512xf32> to vector<16x481xf32>
    %433 = tpu.concatenate %432, %431 in 1 : vector<16x481xf32>, vector<16x31xf32> -> vector<16x512xf32>
    %cst_55 = arith.constant 0.000000e+00 : f32
    %434 = vector.shape_cast %18 : vector<1x512xi1> to vector<1x512xi1>
    %435 = vector.broadcast %434 : vector<1x512xi1> to vector<16x512xi1>
    %436 = vector.broadcast %cst_55 : f32 to vector<16x512xf32>
    %437 = arith.select %435, %433, %436 : vector<16x512xi1>, vector<16x512xf32>
    %438 = vector.extract_strided_slice %376 {offsets = [0, 6], sizes = [16, 1], strides = [1, 1]} : vector<16x9xf32> to vector<16x1xf32>
    %439 = vector.broadcast %438 : vector<16x1xf32> to vector<16x512xf32>
    %440 = arith.mulf %437, %439 : vector<16x512xf32>
    %441 = arith.addf %430, %440 : vector<16x512xf32>
    %cst_56 = arith.constant 0.000000e+00 : f32
    %442 = vector.broadcast %cst_56 : f32 to vector<16x32xf32>
    %443 = vector.extract_strided_slice %375 {offsets = [0, 32], sizes = [16, 480], strides = [1, 1]} : vector<16x512xf32> to vector<16x480xf32>
    %444 = tpu.concatenate %443, %442 in 1 : vector<16x480xf32>, vector<16x32xf32> -> vector<16x512xf32>
    %445 = vector.extract_strided_slice %376 {offsets = [0, 7], sizes = [16, 1], strides = [1, 1]} : vector<16x9xf32> to vector<16x1xf32>
    %446 = vector.broadcast %445 : vector<16x1xf32> to vector<16x512xf32>
    %447 = arith.mulf %444, %446 : vector<16x512xf32>
    %448 = arith.addf %441, %447 : vector<16x512xf32>
    %cst_57 = arith.constant 0.000000e+00 : f32
    %449 = vector.broadcast %cst_57 : f32 to vector<16x33xf32>
    %450 = vector.extract_strided_slice %375 {offsets = [0, 33], sizes = [16, 479], strides = [1, 1]} : vector<16x512xf32> to vector<16x479xf32>
    %451 = tpu.concatenate %450, %449 in 1 : vector<16x479xf32>, vector<16x33xf32> -> vector<16x512xf32>
    %cst_58 = arith.constant 0.000000e+00 : f32
    %452 = vector.shape_cast %20 : vector<1x512xi1> to vector<1x512xi1>
    %453 = vector.broadcast %452 : vector<1x512xi1> to vector<16x512xi1>
    %454 = vector.broadcast %cst_58 : f32 to vector<16x512xf32>
    %455 = arith.select %453, %451, %454 : vector<16x512xi1>, vector<16x512xf32>
    %456 = vector.extract_strided_slice %376 {offsets = [0, 8], sizes = [16, 1], strides = [1, 1]} : vector<16x9xf32> to vector<16x1xf32>
    %457 = vector.broadcast %456 : vector<16x1xf32> to vector<16x512xf32>
    %458 = arith.mulf %455, %457 : vector<16x512xf32>
    %459 = arith.addf %448, %458 : vector<16x512xf32>
    %c0_59 = arith.constant 0 : index
    %c0_60 = arith.constant 0 : index
    %460 = vector.load %arg6[%c0_59, %c0_60] : memref<4x8xf32, #tpu.memory_space<vmem>>, vector<4x8xf32>
    %461 = vector.extract_strided_slice %41 {offsets = [16, 0], sizes = [4, 1], strides = [1, 1]} : vector<20x1xf32> to vector<4x1xf32>
    %462 = vector.extract_strided_slice %459 {offsets = [0, 0], sizes = [8, 512], strides = [1, 1]} : vector<16x512xf32> to vector<8x512xf32>
    %463 = vector.extract_strided_slice %460 {offsets = [0, 0], sizes = [4, 1], strides = [1, 1]} : vector<4x8xf32> to vector<4x1xf32>
    %464 = vector.extract_strided_slice %462 {offsets = [0, 0], sizes = [1, 512], strides = [1, 1]} : vector<8x512xf32> to vector<1x512xf32>
    %465 = vector.broadcast %463 : vector<4x1xf32> to vector<4x512xf32>
    %466 = vector.broadcast %464 : vector<1x512xf32> to vector<4x512xf32>
    %467 = arith.mulf %465, %466 : vector<4x512xf32>
    %468 = vector.extract_strided_slice %460 {offsets = [0, 1], sizes = [4, 1], strides = [1, 1]} : vector<4x8xf32> to vector<4x1xf32>
    %469 = vector.extract_strided_slice %462 {offsets = [1, 0], sizes = [1, 512], strides = [1, 1]} : vector<8x512xf32> to vector<1x512xf32>
    %470 = vector.broadcast %468 : vector<4x1xf32> to vector<4x512xf32>
    %471 = vector.broadcast %469 : vector<1x512xf32> to vector<4x512xf32>
    %472 = arith.mulf %470, %471 : vector<4x512xf32>
    %473 = arith.addf %467, %472 : vector<4x512xf32>
    %474 = vector.extract_strided_slice %460 {offsets = [0, 2], sizes = [4, 1], strides = [1, 1]} : vector<4x8xf32> to vector<4x1xf32>
    %475 = vector.extract_strided_slice %462 {offsets = [2, 0], sizes = [1, 512], strides = [1, 1]} : vector<8x512xf32> to vector<1x512xf32>
    %476 = vector.broadcast %474 : vector<4x1xf32> to vector<4x512xf32>
    %477 = vector.broadcast %475 : vector<1x512xf32> to vector<4x512xf32>
    %478 = arith.mulf %476, %477 : vector<4x512xf32>
    %479 = arith.addf %473, %478 : vector<4x512xf32>
    %480 = vector.extract_strided_slice %460 {offsets = [0, 3], sizes = [4, 1], strides = [1, 1]} : vector<4x8xf32> to vector<4x1xf32>
    %481 = vector.extract_strided_slice %462 {offsets = [3, 0], sizes = [1, 512], strides = [1, 1]} : vector<8x512xf32> to vector<1x512xf32>
    %482 = vector.broadcast %480 : vector<4x1xf32> to vector<4x512xf32>
    %483 = vector.broadcast %481 : vector<1x512xf32> to vector<4x512xf32>
    %484 = arith.mulf %482, %483 : vector<4x512xf32>
    %485 = arith.addf %479, %484 : vector<4x512xf32>
    %486 = vector.extract_strided_slice %460 {offsets = [0, 4], sizes = [4, 1], strides = [1, 1]} : vector<4x8xf32> to vector<4x1xf32>
    %487 = vector.extract_strided_slice %462 {offsets = [4, 0], sizes = [1, 512], strides = [1, 1]} : vector<8x512xf32> to vector<1x512xf32>
    %488 = vector.broadcast %486 : vector<4x1xf32> to vector<4x512xf32>
    %489 = vector.broadcast %487 : vector<1x512xf32> to vector<4x512xf32>
    %490 = arith.mulf %488, %489 : vector<4x512xf32>
    %491 = arith.addf %485, %490 : vector<4x512xf32>
    %492 = vector.extract_strided_slice %460 {offsets = [0, 5], sizes = [4, 1], strides = [1, 1]} : vector<4x8xf32> to vector<4x1xf32>
    %493 = vector.extract_strided_slice %462 {offsets = [5, 0], sizes = [1, 512], strides = [1, 1]} : vector<8x512xf32> to vector<1x512xf32>
    %494 = vector.broadcast %492 : vector<4x1xf32> to vector<4x512xf32>
    %495 = vector.broadcast %493 : vector<1x512xf32> to vector<4x512xf32>
    %496 = arith.mulf %494, %495 : vector<4x512xf32>
    %497 = arith.addf %491, %496 : vector<4x512xf32>
    %498 = vector.extract_strided_slice %460 {offsets = [0, 6], sizes = [4, 1], strides = [1, 1]} : vector<4x8xf32> to vector<4x1xf32>
    %499 = vector.extract_strided_slice %462 {offsets = [6, 0], sizes = [1, 512], strides = [1, 1]} : vector<8x512xf32> to vector<1x512xf32>
    %500 = vector.broadcast %498 : vector<4x1xf32> to vector<4x512xf32>
    %501 = vector.broadcast %499 : vector<1x512xf32> to vector<4x512xf32>
    %502 = arith.mulf %500, %501 : vector<4x512xf32>
    %503 = arith.addf %497, %502 : vector<4x512xf32>
    %504 = vector.extract_strided_slice %460 {offsets = [0, 7], sizes = [4, 1], strides = [1, 1]} : vector<4x8xf32> to vector<4x1xf32>
    %505 = vector.extract_strided_slice %462 {offsets = [7, 0], sizes = [1, 512], strides = [1, 1]} : vector<8x512xf32> to vector<1x512xf32>
    %506 = vector.broadcast %504 : vector<4x1xf32> to vector<4x512xf32>
    %507 = vector.broadcast %505 : vector<1x512xf32> to vector<4x512xf32>
    %508 = arith.mulf %506, %507 : vector<4x512xf32>
    %509 = arith.addf %503, %508 : vector<4x512xf32>
    %510 = vector.broadcast %461 : vector<4x1xf32> to vector<4x512xf32>
    %511 = arith.addf %509, %510 : vector<4x512xf32>
    %cst_61 = arith.constant 0.000000e+00 : f32
    %512 = vector.broadcast %cst_61 : f32 to vector<4x512xf32>
    %513 = arith.maximumf %511, %512 : vector<4x512xf32>
    %514 = vector.extract_strided_slice %459 {offsets = [8, 0], sizes = [8, 512], strides = [1, 1]} : vector<16x512xf32> to vector<8x512xf32>
    %515 = vector.extract_strided_slice %460 {offsets = [0, 0], sizes = [4, 1], strides = [1, 1]} : vector<4x8xf32> to vector<4x1xf32>
    %516 = vector.extract_strided_slice %514 {offsets = [0, 0], sizes = [1, 512], strides = [1, 1]} : vector<8x512xf32> to vector<1x512xf32>
    %517 = vector.broadcast %515 : vector<4x1xf32> to vector<4x512xf32>
    %518 = vector.broadcast %516 : vector<1x512xf32> to vector<4x512xf32>
    %519 = arith.mulf %517, %518 : vector<4x512xf32>
    %520 = vector.extract_strided_slice %460 {offsets = [0, 1], sizes = [4, 1], strides = [1, 1]} : vector<4x8xf32> to vector<4x1xf32>
    %521 = vector.extract_strided_slice %514 {offsets = [1, 0], sizes = [1, 512], strides = [1, 1]} : vector<8x512xf32> to vector<1x512xf32>
    %522 = vector.broadcast %520 : vector<4x1xf32> to vector<4x512xf32>
    %523 = vector.broadcast %521 : vector<1x512xf32> to vector<4x512xf32>
    %524 = arith.mulf %522, %523 : vector<4x512xf32>
    %525 = arith.addf %519, %524 : vector<4x512xf32>
    %526 = vector.extract_strided_slice %460 {offsets = [0, 2], sizes = [4, 1], strides = [1, 1]} : vector<4x8xf32> to vector<4x1xf32>
    %527 = vector.extract_strided_slice %514 {offsets = [2, 0], sizes = [1, 512], strides = [1, 1]} : vector<8x512xf32> to vector<1x512xf32>
    %528 = vector.broadcast %526 : vector<4x1xf32> to vector<4x512xf32>
    %529 = vector.broadcast %527 : vector<1x512xf32> to vector<4x512xf32>
    %530 = arith.mulf %528, %529 : vector<4x512xf32>
    %531 = arith.addf %525, %530 : vector<4x512xf32>
    %532 = vector.extract_strided_slice %460 {offsets = [0, 3], sizes = [4, 1], strides = [1, 1]} : vector<4x8xf32> to vector<4x1xf32>
    %533 = vector.extract_strided_slice %514 {offsets = [3, 0], sizes = [1, 512], strides = [1, 1]} : vector<8x512xf32> to vector<1x512xf32>
    %534 = vector.broadcast %532 : vector<4x1xf32> to vector<4x512xf32>
    %535 = vector.broadcast %533 : vector<1x512xf32> to vector<4x512xf32>
    %536 = arith.mulf %534, %535 : vector<4x512xf32>
    %537 = arith.addf %531, %536 : vector<4x512xf32>
    %538 = vector.extract_strided_slice %460 {offsets = [0, 4], sizes = [4, 1], strides = [1, 1]} : vector<4x8xf32> to vector<4x1xf32>
    %539 = vector.extract_strided_slice %514 {offsets = [4, 0], sizes = [1, 512], strides = [1, 1]} : vector<8x512xf32> to vector<1x512xf32>
    %540 = vector.broadcast %538 : vector<4x1xf32> to vector<4x512xf32>
    %541 = vector.broadcast %539 : vector<1x512xf32> to vector<4x512xf32>
    %542 = arith.mulf %540, %541 : vector<4x512xf32>
    %543 = arith.addf %537, %542 : vector<4x512xf32>
    %544 = vector.extract_strided_slice %460 {offsets = [0, 5], sizes = [4, 1], strides = [1, 1]} : vector<4x8xf32> to vector<4x1xf32>
    %545 = vector.extract_strided_slice %514 {offsets = [5, 0], sizes = [1, 512], strides = [1, 1]} : vector<8x512xf32> to vector<1x512xf32>
    %546 = vector.broadcast %544 : vector<4x1xf32> to vector<4x512xf32>
    %547 = vector.broadcast %545 : vector<1x512xf32> to vector<4x512xf32>
    %548 = arith.mulf %546, %547 : vector<4x512xf32>
    %549 = arith.addf %543, %548 : vector<4x512xf32>
    %550 = vector.extract_strided_slice %460 {offsets = [0, 6], sizes = [4, 1], strides = [1, 1]} : vector<4x8xf32> to vector<4x1xf32>
    %551 = vector.extract_strided_slice %514 {offsets = [6, 0], sizes = [1, 512], strides = [1, 1]} : vector<8x512xf32> to vector<1x512xf32>
    %552 = vector.broadcast %550 : vector<4x1xf32> to vector<4x512xf32>
    %553 = vector.broadcast %551 : vector<1x512xf32> to vector<4x512xf32>
    %554 = arith.mulf %552, %553 : vector<4x512xf32>
    %555 = arith.addf %549, %554 : vector<4x512xf32>
    %556 = vector.extract_strided_slice %460 {offsets = [0, 7], sizes = [4, 1], strides = [1, 1]} : vector<4x8xf32> to vector<4x1xf32>
    %557 = vector.extract_strided_slice %514 {offsets = [7, 0], sizes = [1, 512], strides = [1, 1]} : vector<8x512xf32> to vector<1x512xf32>
    %558 = vector.broadcast %556 : vector<4x1xf32> to vector<4x512xf32>
    %559 = vector.broadcast %557 : vector<1x512xf32> to vector<4x512xf32>
    %560 = arith.mulf %558, %559 : vector<4x512xf32>
    %561 = arith.addf %555, %560 : vector<4x512xf32>
    %562 = vector.broadcast %461 : vector<4x1xf32> to vector<4x512xf32>
    %563 = arith.addf %561, %562 : vector<4x512xf32>
    %cst_62 = arith.constant 0.000000e+00 : f32
    %564 = vector.broadcast %cst_62 : f32 to vector<4x512xf32>
    %565 = arith.maximumf %563, %564 : vector<4x512xf32>
    %566 = tpu.concatenate %513, %565 in 0 : vector<4x512xf32>, vector<4x512xf32> -> vector<8x512xf32>
    %567 = vector.extract_strided_slice %566 {offsets = [0, 0], sizes = [4, 512], strides = [1, 1]} : vector<8x512xf32> to vector<4x512xf32>
    %568 = vector.extract_strided_slice %566 {offsets = [4, 0], sizes = [4, 512], strides = [1, 1]} : vector<8x512xf32> to vector<4x512xf32>
    %569 = tpu.concatenate %23, %25, %27, %29, %567, %31, %33, %35, %37, %568 in 0 : vector<1x512xf32>, vector<1x512xf32>, vector<1x512xf32>, vector<1x512xf32>, vector<4x512xf32>, vector<1x512xf32>, vector<1x512xf32>, vector<1x512xf32>, vector<1x512xf32>, vector<4x512xf32> -> vector<16x512xf32>
    %c0_63 = arith.constant 0 : index
    %c0_64 = arith.constant 0 : index
    %c0_65 = arith.constant 0 : index
    %570 = vector.load %arg7[%c0_63, %c0_64, %c0_65] : memref<1x16x512xf32, #tpu.memory_space<vmem>>, vector<1x16x512xf32>
    %571 = vector.shape_cast %570 : vector<1x16x512xf32> to vector<16x512xf32>
    %572 = vector.shape_cast %569 : vector<16x512xf32> to vector<1x16x512xf32>
    tpu.vector_store %arg7[%c0_63, %c0_64, %c0_65], %572 {strides = array<i32>} : memref<1x16x512xf32, #tpu.memory_space<vmem>>, vector<1x16x512xf32>,
    return
  }
  func.func @transform_0(%arg0: i32) -> (i32, i32, i32) {
    %c0_i32 = arith.constant 0 : i32
    %c0_i32_0 = arith.constant 0 : i32
    %c0_i32_1 = arith.constant 0 : i32
    return %arg0, %c0_i32, %c0_i32_0 : i32, i32, i32
  }
  func.func @transform_1(%arg0: i32) -> (i32, i32) {
    %c0_i32 = arith.constant 0 : i32
    %c0_i32_0 = arith.constant 0 : i32
    %c0_i32_1 = arith.constant 0 : i32
    return %c0_i32, %c0_i32_0 : i32, i32
  }
  func.func @transform_2(%arg0: i32) -> (i32, i32) {
    %c0_i32 = arith.constant 0 : i32
    %c0_i32_0 = arith.constant 0 : i32
    %c0_i32_1 = arith.constant 0 : i32
    return %c0_i32, %c0_i32_0 : i32, i32
  }
  func.func @transform_3(%arg0: i32) -> (i32, i32) {
    %c0_i32 = arith.constant 0 : i32
    %c0_i32_0 = arith.constant 0 : i32
    %c0_i32_1 = arith.constant 0 : i32
    return %c0_i32, %c0_i32_0 : i32, i32
  }
  func.func @transform_4(%arg0: i32) -> (i32, i32) {
    %c0_i32 = arith.constant 0 : i32
    %c0_i32_0 = arith.constant 0 : i32
    %c0_i32_1 = arith.constant 0 : i32
    return %c0_i32, %c0_i32_0 : i32, i32
  }
  func.func @transform_5(%arg0: i32) -> (i32, i32) {
    %c0_i32 = arith.constant 0 : i32
    %c0_i32_0 = arith.constant 0 : i32
    %c0_i32_1 = arith.constant 0 : i32
    return %c0_i32, %c0_i32_0 : i32, i32
  }
  func.func @transform_6(%arg0: i32) -> (i32, i32, i32) {
    %c0_i32 = arith.constant 0 : i32
    %c0_i32_0 = arith.constant 0 : i32
    %c0_i32_1 = arith.constant 0 : i32
    return %arg0, %c0_i32, %c0_i32_0 : i32, i32, i32
  }
}

</mosaic_0001>

<llo_original>
// kernel: shuffle_xception_forward.1
$region0: #{shuffle_xception_forward.1}
  #allocation0 [shape = 'u32[]', space=smem, size = 0x4, offset = 0x4, fixed_abs, tag = 'smem constant byte address 0x4 - core index']
  #allocation1 [shape = 'u32[144,128]{1,0:T(1,128)}', space=vmem, size = 0x12000, scoped, tag = 'internal scratch']
  %s0 = inlined_call_operand.vmem [shape: f32[1,16,512], index: 0, kind: input, shape index: {}]
  %s1 = inlined_call_operand.vmem [shape: f32[40,9], index: 1, kind: input, shape index: {}]
  %s2 = inlined_call_operand.vmem [shape: f32[20,1], index: 2, kind: input, shape index: {}]
  %s3 = inlined_call_operand.vmem [shape: f32[8,4], index: 3, kind: input, shape index: {}]
  %s4 = inlined_call_operand.vmem [shape: f32[8,8], index: 4, kind: input, shape index: {}]
  %s5 = inlined_call_operand.vmem [shape: f32[4,8], index: 5, kind: input, shape index: {}]
  %s6 = inlined_call_operand.vmem [shape: f32[1,16,512], index: 6, kind: output, shape index: {}]
  %s7 = sld [smem:[#allocation0]]
  $region34: #{shuffle_xception_forward.1} parent=0
    _
  %s9 = ssub.s32 1, %s7
  %s10 = scalar_select 0, %s9, %s7
  // Predicated region
  $region2: #{shuffle_xception_forward.1} parent=0 // pred_check
    _
  $region3: #{shuffle_xception_forward.1} parent=0 // pred_check_branch
    %12 = sbr.rel (0) target = $region5
  $region4: #{shuffle_xception_forward.1} parent=0 // pred_region
    _
  $region5: #{shuffle_xception_forward.1} parent=0 // pred_fallthru
    _
  // Predicated region
  $region6: #{shuffle_xception_forward.1} parent=0 // pred_check
    _
  $region7: #{shuffle_xception_forward.1} parent=0 // pred_check_branch
    %14 = sbr.rel (0) target = $region9
  $region8: #{shuffle_xception_forward.1} parent=0 // pred_region
    _
  $region9: #{shuffle_xception_forward.1} parent=0 // pred_fallthru
    _
  // Predicated region
  $region10: #{shuffle_xception_forward.1} parent=0 // pred_check
    _
  $region11: #{shuffle_xception_forward.1} parent=0 // pred_check_branch
    %16 = sbr.rel (0) target = $region13
  $region12: #{shuffle_xception_forward.1} parent=0 // pred_region
    _
  $region13: #{shuffle_xception_forward.1} parent=0 // pred_fallthru
    _
  // Predicated region
  $region14: #{shuffle_xception_forward.1} parent=0 // pred_check
    _
  $region15: #{shuffle_xception_forward.1} parent=0 // pred_check_branch
    %18 = sbr.rel (0) target = $region17
  $region16: #{shuffle_xception_forward.1} parent=0 // pred_region
    _
  $region17: #{shuffle_xception_forward.1} parent=0 // pred_fallthru
    _
  // Predicated region
  $region18: #{shuffle_xception_forward.1} parent=0 // pred_check
    _
  $region19: #{shuffle_xception_forward.1} parent=0 // pred_check_branch
    %20 = sbr.rel (0) target = $region21
  $region20: #{shuffle_xception_forward.1} parent=0 // pred_region
    _
  $region21: #{shuffle_xception_forward.1} parent=0 // pred_fallthru
    _
  // Predicated region
  $region22: #{shuffle_xception_forward.1} parent=0 // pred_check
    _
  $region23: #{shuffle_xception_forward.1} parent=0 // pred_check_branch
    %22 = sbr.rel (0) target = $region25
  $region24: #{shuffle_xception_forward.1} parent=0 // pred_region
    _
  $region25: #{shuffle_xception_forward.1} parent=0 // pred_fallthru
    _
  %v23 = vlaneseq
  %v24 = vand.u32 %v23, 127
  %v25 = vadd.s32 %v24, 128
  %v26 = vadd.s32 %v24, 256
  %v27 = vadd.s32 %v24, 384
  %vm28 = vcmp.lt.s32.totalorder %v24, 0
  %v29 = vsub.s32 0, %v24
  %v30 = vsel %vm28, %v29, %v24
  %v31 = vshrl.u32 %v30, 5
  %v32 = vand.u32 %v30, 31
  %v33 = vsub.s32 0, %v32
  %v34 = vsel %vm28, %v33, %v32
  %vm35 = vcmp.lt.s32.totalorder %v25, 0
  %v36 = vsub.s32 0, %v25
  %v37 = vsel %vm35, %v36, %v25
  %v38 = vshrl.u32 %v37, 5
  %v39 = vand.u32 %v37, 31
  %v40 = vsub.s32 0, %v39
  %v41 = vsel %vm35, %v40, %v39
  %vm42 = vcmp.lt.s32.totalorder %v26, 0
  %v43 = vsub.s32 0, %v26
  %v44 = vsel %vm42, %v43, %v26
  %v45 = vshrl.u32 %v44, 5
  %v46 = vand.u32 %v44, 31
  %v47 = vsub.s32 0, %v46
  %v48 = vsel %vm42, %v47, %v46
  %vm49 = vcmp.lt.s32.totalorder %v27, 0
  %v50 = vsub.s32 0, %v27
  %v51 = vsel %vm49, %v50, %v27
  %v52 = vshrl.u32 %v51, 5
  %v53 = vand.u32 %v51, 31
  %v54 = vsub.s32 0, %v53
  %v55 = vsel %vm49, %v54, %v53
  %vm56 = vcmp.ne.s32.totalorder %v34, 0
  %vm57 = vcmp.ne.s32.totalorder %v41, 0
  %vm58 = vcmp.ne.s32.totalorder %v48, 0
  %vm59 = vcmp.ne.s32.totalorder %v55, 0
  %vm60 = vcmp.lt.s32.totalorder %v34, 0
  %vm61 = vcmp.lt.s32.totalorder %v41, 0
  %vm62 = vcmp.lt.s32.totalorder %v48, 0
  %vm63 = vcmp.lt.s32.totalorder %v55, 0
  %vm64 = vmand %vm60, %vm56
  %vm65 = vmand %vm61, %vm57
  %vm66 = vmand %vm62, %vm58
  %vm67 = vmand %vm63, %vm59
  %v68 = vadd.s32 %v34, 32
  %v69 = vadd.s32 %v41, 32
  %v70 = vadd.s32 %v48, 32
  %v71 = vadd.s32 %v55, 32
  %v72 = vsel %vm64, %v68, %v34
  %v73 = vsel %vm65, %v69, %v41
  %v74 = vsel %vm66, %v70, %v48
  %v75 = vsel %vm67, %v71, %v55
  %vm76 = vcmp.ge.s32.totalorder %v72, 1
  %vm77 = vcmp.ge.s32.totalorder %v73, 1
  %vm78 = vcmp.ge.s32.totalorder %v74, 1
  %vm79 = vcmp.ge.s32.totalorder %v75, 1
  %vm80 = vcmp.le.s32.totalorder %v72, 30
  %vm81 = vcmp.le.s32.totalorder %v73, 30
  %vm82 = vcmp.le.s32.totalorder %v74, 30
  %vm83 = vcmp.le.s32.totalorder %v75, 30
  %v84 = vld [vmem:[%s0] sm:$0xff]
  %v85 = vld [vmem:[%s0 + $0x8] sm:$0xff]
  %v86 = vld [vmem:[%s0 + $0x10] sm:$0xff]
  %v87 = vld [vmem:[%s0 + $0x18] sm:$0xff]
  %v88 = vld [vmem:[%s0 + $0x20] sm:$0xff]
  %v89 = vld [vmem:[%s0 + $0x28] sm:$0xff]
  %v90 = vld [vmem:[%s0 + $0x30] sm:$0xff]
  %v91 = vld [vmem:[%s0 + $0x38] sm:$0xff]
  %v96 = vrot.slane %v84, 1
  %v97 = vrot.slane %v85, 1
  %v98 = vrot.slane %v86, 1
  %v99 = vrot.slane %v87, 1
  %v104 = vrot.slane %v84, 2
  %v105 = vrot.slane %v85, 2
  %v106 = vrot.slane %v86, 2
  %v107 = vrot.slane %v87, 2
  %v112 = vrot.slane %v84, 3
  %v113 = vrot.slane %v85, 3
  %v114 = vrot.slane %v86, 3
  %v115 = vrot.slane %v87, 3
  %v120 = vrot.slane %v84, 4
  %v121 = vrot.slane %v85, 4
  %v122 = vrot.slane %v86, 4
  %v123 = vrot.slane %v87, 4
  %v132 = vrot.slane %v88, 5
  %v133 = vrot.slane %v89, 5
  %v134 = vrot.slane %v90, 5
  %v135 = vrot.slane %v91, 5
  %v140 = vrot.slane %v88, 6
  %v141 = vrot.slane %v89, 6
  %v142 = vrot.slane %v90, 6
  %v143 = vrot.slane %v91, 6
  %v148 = vrot.slane %v88, 7
  %v149 = vrot.slane %v89, 7
  %v150 = vrot.slane %v90, 7
  %v151 = vrot.slane %v91, 7
  %vm156 = vcmask 1040384
  %v157 = vsel %vm156, %v96, %v104
  %v158 = vsel %vm156, %v97, %v105
  %v159 = vsel %vm156, %v98, %v106
  %v160 = vsel %vm156, %v99, %v107
  %vm161 = vcmask 1041408
  %v162 = vsel %vm161, %v157, %v112
  %v163 = vsel %vm161, %v158, %v113
  %v164 = vsel %vm161, %v159, %v114
  %v165 = vsel %vm161, %v160, %v115
  %vm166 = vcmask 1042432
  %v167 = vsel %vm166, %v162, %v120
  %v168 = vsel %vm166, %v163, %v121
  %v169 = vsel %vm166, %v164, %v122
  %v170 = vsel %vm166, %v165, %v123
  %vm171 = vcmask 1043456
  %v172 = vsel %vm171, %v167, %v132
  %v173 = vsel %vm171, %v168, %v133
  %v174 = vsel %vm171, %v169, %v134
  %v175 = vsel %vm171, %v170, %v135
  %vm176 = vcmask 1044480
  %v177 = vsel %vm176, %v172, %v140
  %v178 = vsel %vm176, %v173, %v141
  %v179 = vsel %vm176, %v174, %v142
  %v180 = vsel %vm176, %v175, %v143
  %vm181 = vcmask 1045504
  %v182 = vsel %vm181, %v177, %v148
  %v183 = vsel %vm181, %v178, %v149
  %v184 = vsel %vm181, %v179, %v150
  %v185 = vsel %vm181, %v180, %v151
  %vm186 = vcmask 1046528
  %v187 = vsel %vm186, %v182, %v88
  %v188 = vsel %vm186, %v183, %v89
  %v189 = vsel %vm186, %v184, %v90
  %v190 = vsel %vm186, %v185, %v91
  %v191 = vld [vmem:[%s1] sm:$0xff]
  %v192 = vld [vmem:[%s1 + $0x8] sm:$0xff]
  %v193 = vld [vmem:[%s1 + $0x10] sm:$0xff]
  %v194 = vld [vmem:[%s1 + $0x18] sm:$0xff]
  %v195 = vld [vmem:[%s1 + $0x20] sm:$0xff]
  %v196 = vld [vmem:[%s2] sm:$0xff]
  %v197 = vld [vmem:[%s2 + $0x8] sm:$0xff]
  %v198 = vld [vmem:[%s2 + $0x10] sm:$0xf]
  %200 = vset.pattern.permute.xlu0 4
  %201 = vperm.xlu0 %200, %v191
  %v202 = vpop.permute.xlu0 %201
  %v204 = vmul.f32 %v187, %v202
  %v205 = vmul.f32 %v188, %v202
  %v206 = vmul.f32 %v189, %v202
  %v207 = vmul.f32 %v190, %v202
  %212 = vrot.lane.b32.xlu0 %v187, 33
  %v213 = vpop.permute.xlu0 %212
  %214 = vrot.lane.b32.xlu0 %v188, 33
  %v215 = vpop.permute.xlu0 %214
  %216 = vrot.lane.b32.xlu0 %v189, 33
  %v217 = vpop.permute.xlu0 %216
  %218 = vrot.lane.b32.xlu0 %v190, 33
  %v219 = vpop.permute.xlu0 %218
  %vm220 = vcmask 269312
  %v221 = vsel %vm220, %v213, %v215
  %v222 = vsel %vm220, %v215, %v217
  %v223 = vsel %vm220, %v217, %v219
  %v228 = vsel %vm220, 0.0, %v213
  %v229 = vsel %vm76, 1, 0
  %v230 = vsel %vm77, 1, 0
  %v231 = vsel %vm78, 1, 0
  %v232 = vsel %vm79, 1, 0
  %vm233 = vcmp.eq.s32.totalorder %v229, 1
  %vm234 = vcmp.eq.s32.totalorder %v230, 1
  %vm235 = vcmp.eq.s32.totalorder %v231, 1
  %vm236 = vcmp.eq.s32.totalorder %v232, 1
  %v237 = vsel %vm233, %v228, 0.0
  %v238 = vsel %vm234, %v221, 0.0
  %v239 = vsel %vm235, %v222, 0.0
  %v240 = vsel %vm236, %v223, 0.0
  %241 = vset.pattern.permute.xlu0 0
  %242 = vperm.xlu0 %241, %v191
  %v243 = vpop.permute.xlu0 %242
  %v245 = vmul.f32 %v237, %v243
  %v246 = vmul.f32 %v238, %v243
  %v247 = vmul.f32 %v239, %v243
  %v248 = vmul.f32 %v240, %v243
  %v249 = vadd.f32 %v204, %v245
  %v250 = vadd.f32 %v205, %v246
  %v251 = vadd.f32 %v206, %v247
  %v252 = vadd.f32 %v207, %v248
  %253 = vrot.lane.b32.xlu0 %v187, 32
  %v254 = vpop.permute.xlu0 %253
  %255 = vrot.lane.b32.xlu0 %v188, 32
  %v256 = vpop.permute.xlu0 %255
  %257 = vrot.lane.b32.xlu0 %v189, 32
  %v258 = vpop.permute.xlu0 %257
  %259 = vrot.lane.b32.xlu0 %v190, 32
  %v260 = vpop.permute.xlu0 %259
  %vm261 = vcmask 261120
  %v262 = vsel %vm261, %v254, %v256
  %v263 = vsel %vm261, %v256, %v258
  %v264 = vsel %vm261, %v258, %v260
  %v269 = vsel %vm261, 0.0, %v254
  %270 = vset.pattern.permute.xlu0 1
  %271 = vperm.xlu0 %270, %v191
  %v272 = vpop.permute.xlu0 %271
  %v274 = vmul.f32 %v269, %v272
  %v275 = vmul.f32 %v262, %v272
  %v276 = vmul.f32 %v263, %v272
  %v277 = vmul.f32 %v264, %v272
  %v278 = vadd.f32 %v249, %v274
  %v279 = vadd.f32 %v250, %v275
  %v280 = vadd.f32 %v251, %v276
  %v281 = vadd.f32 %v252, %v277
  %282 = vrot.lane.b32.xlu0 %v187, 31
  %v283 = vpop.permute.xlu0 %282
  %284 = vrot.lane.b32.xlu0 %v188, 31
  %v285 = vpop.permute.xlu0 %284
  %286 = vrot.lane.b32.xlu0 %v189, 31
  %v287 = vpop.permute.xlu0 %286
  %288 = vrot.lane.b32.xlu0 %v190, 31
  %v289 = vpop.permute.xlu0 %288
  %vm290 = vcmask 252928
  %v291 = vsel %vm290, %v283, %v285
  %v292 = vsel %vm290, %v285, %v287
  %v293 = vsel %vm290, %v287, %v289
  %v298 = vsel %vm290, 0.0, %v283
  %v299 = vsel %vm80, 1, 0
  %v300 = vsel %vm81, 1, 0
  %v301 = vsel %vm82, 1, 0
  %v302 = vsel %vm83, 1, 0
  %vm303 = vcmp.eq.s32.totalorder %v299, 1
  %vm304 = vcmp.eq.s32.totalorder %v300, 1
  %vm305 = vcmp.eq.s32.totalorder %v301, 1
  %vm306 = vcmp.eq.s32.totalorder %v302, 1
  %v307 = vsel %vm303, %v298, 0.0
  %v308 = vsel %vm304, %v291, 0.0
  %v309 = vsel %vm305, %v292, 0.0
  %v310 = vsel %vm306, %v293, 0.0
  %311 = vset.pattern.permute.xlu0 2
  %312 = vperm.xlu0 %311, %v191
  %v313 = vpop.permute.xlu0 %312
  %v315 = vmul.f32 %v307, %v313
  %v316 = vmul.f32 %v308, %v313
  %v317 = vmul.f32 %v309, %v313
  %v318 = vmul.f32 %v310, %v313
  %v319 = vadd.f32 %v278, %v315
  %v320 = vadd.f32 %v279, %v316
  %v321 = vadd.f32 %v280, %v317
  %v322 = vadd.f32 %v281, %v318
  %323 = vrot.lane.b32.xlu0 %v187, 1
  %v324 = vpop.permute.xlu0 %323
  %325 = vrot.lane.b32.xlu0 %v188, 1
  %v326 = vpop.permute.xlu0 %325
  %327 = vrot.lane.b32.xlu0 %v189, 1
  %v328 = vpop.permute.xlu0 %327
  %329 = vrot.lane.b32.xlu0 %v190, 1
  %v330 = vpop.permute.xlu0 %329
  %vm331 = vcmask 7168
  %v332 = vsel %vm331, %v324, %v326
  %v333 = vsel %vm331, %v326, %v328
  %v334 = vsel %vm331, %v328, %v330
  %v339 = vsel %vm331, 0.0, %v324
  %v340 = vsel %vm233, %v339, 0.0
  %v341 = vsel %vm234, %v332, 0.0
  %v342 = vsel %vm235, %v333, 0.0
  %v343 = vsel %vm236, %v334, 0.0
  %344 = vset.pattern.permute.xlu0 3
  %345 = vperm.xlu0 %344, %v191
  %v346 = vpop.permute.xlu0 %345
  %v348 = vmul.f32 %v340, %v346
  %v349 = vmul.f32 %v341, %v346
  %v350 = vmul.f32 %v342, %v346
  %v351 = vmul.f32 %v343, %v346
  %v352 = vadd.f32 %v319, %v348
  %v353 = vadd.f32 %v320, %v349
  %v354 = vadd.f32 %v321, %v350
  %v355 = vadd.f32 %v322, %v351
  %356 = vrot.lane.b32.xlu0 %v187, 127
  %v357 = vpop.permute.xlu0 %356
  %358 = vrot.lane.b32.xlu0 %v188, 127
  %v359 = vpop.permute.xlu0 %358
  %360 = vrot.lane.b32.xlu0 %v189, 127
  %v361 = vpop.permute.xlu0 %360
  %362 = vrot.lane.b32.xlu0 %v190, 127
  %v363 = vpop.permute.xlu0 %362
  %vm364 = vcmask 1039360
  %v365 = vsel %vm364, %v357, %v359
  %v366 = vsel %vm364, %v359, %v361
  %v367 = vsel %vm364, %v361, %v363
  %v372 = vsel %vm364, %v363, 0.0
  %v373 = vsel %vm303, %v365, 0.0
  %v374 = vsel %vm304, %v366, 0.0
  %v375 = vsel %vm305, %v367, 0.0
  %v376 = vsel %vm306, %v372, 0.0
  %377 = vset.pattern.permute.xlu0 5
  %378 = vperm.xlu0 %377, %v191
  %v379 = vpop.permute.xlu0 %378
  %v381 = vmul.f32 %v373, %v379
  %v382 = vmul.f32 %v374, %v379
  %v383 = vmul.f32 %v375, %v379
  %v384 = vmul.f32 %v376, %v379
  %v385 = vadd.f32 %v352, %v381
  %v386 = vadd.f32 %v353, %v382
  %v387 = vadd.f32 %v354, %v383
  %v388 = vadd.f32 %v355, %v384
  %389 = vrot.lane.b32.xlu0 %v187, 97
  %v390 = vpop.permute.xlu0 %389
  %391 = vrot.lane.b32.xlu0 %v188, 97
  %v392 = vpop.permute.xlu0 %391
  %393 = vrot.lane.b32.xlu0 %v189, 97
  %v394 = vpop.permute.xlu0 %393
  %395 = vrot.lane.b32.xlu0 %v190, 97
  %v396 = vpop.permute.xlu0 %395
  %vm397 = vcmask 793600
  %v398 = vsel %vm397, %v390, %v392
  %v399 = vsel %vm397, %v392, %v394
  %v400 = vsel %vm397, %v394, %v396
  %v405 = vsel %vm397, %v396, 0.0
  %v406 = vsel %vm233, %v398, 0.0
  %v407 = vsel %vm234, %v399, 0.0
  %v408 = vsel %vm235, %v400, 0.0
  %v409 = vsel %vm236, %v405, 0.0
  %410 = vset.pattern.permute.xlu0 6
  %411 = vperm.xlu0 %410, %v191
  %v412 = vpop.permute.xlu0 %411
  %v414 = vmul.f32 %v406, %v412
  %v415 = vmul.f32 %v407, %v412
  %v416 = vmul.f32 %v408, %v412
  %v417 = vmul.f32 %v409, %v412
  %v418 = vadd.f32 %v385, %v414
  %v419 = vadd.f32 %v386, %v415
  %v420 = vadd.f32 %v387, %v416
  %v421 = vadd.f32 %v388, %v417
  %422 = vrot.lane.b32.xlu0 %v187, 96
  %v423 = vpop.permute.xlu0 %422
  %424 = vrot.lane.b32.xlu0 %v188, 96
  %v425 = vpop.permute.xlu0 %424
  %426 = vrot.lane.b32.xlu0 %v189, 96
  %v427 = vpop.permute.xlu0 %426
  %428 = vrot.lane.b32.xlu0 %v190, 96
  %v429 = vpop.permute.xlu0 %428
  %vm430 = vcmask 785408
  %v431 = vsel %vm430, %v423, %v425
  %v432 = vsel %vm430, %v425, %v427
  %v433 = vsel %vm430, %v427, %v429
  %v438 = vsel %vm430, %v429, 0.0
  %439 = vset.pattern.permute.xlu0 7
  %440 = vperm.xlu0 %439, %v191
  %v441 = vpop.permute.xlu0 %440
  %v443 = vmul.f32 %v431, %v441
  %v444 = vmul.f32 %v432, %v441
  %v445 = vmul.f32 %v433, %v441
  %v446 = vmul.f32 %v438, %v441
  %v447 = vadd.f32 %v418, %v443
  %v448 = vadd.f32 %v419, %v444
  %v449 = vadd.f32 %v420, %v445
  %v450 = vadd.f32 %v421, %v446
  %451 = vrot.lane.b32.xlu0 %v187, 95
  %v452 = vpop.permute.xlu0 %451
  %453 = vrot.lane.b32.xlu0 %v188, 95
  %v454 = vpop.permute.xlu0 %453
  %455 = vrot.lane.b32.xlu0 %v189, 95
  %v456 = vpop.permute.xlu0 %455
  %457 = vrot.lane.b32.xlu0 %v190, 95
  %v458 = vpop.permute.xlu0 %457
  %vm459 = vcmask 777216
  %v460 = vsel %vm459, %v452, %v454
  %v461 = vsel %vm459, %v454, %v456
  %v462 = vsel %vm459, %v456, %v458
  %v467 = vsel %vm459, %v458, 0.0
  %v468 = vsel %vm303, %v460, 0.0
  %v469 = vsel %vm304, %v461, 0.0
  %v470 = vsel %vm305, %v462, 0.0
  %v471 = vsel %vm306, %v467, 0.0
  %472 = vset.pattern.permute.xlu0 8
  %473 = vperm.xlu0 %472, %v191
  %v474 = vpop.permute.xlu0 %473
  %v476 = vmul.f32 %v468, %v474
  %v477 = vmul.f32 %v469, %v474
  %v478 = vmul.f32 %v470, %v474
  %v479 = vmul.f32 %v471, %v474
  %v480 = vadd.f32 %v447, %v476
  %v481 = vadd.f32 %v448, %v477
  %v482 = vadd.f32 %v449, %v478
  %v483 = vadd.f32 %v450, %v479
  %v484 = vld [vmem:[%s3] sm:$0xff]
  %486 = vset.pattern.permute.xlu0 0
  %487 = vperm.xlu0 %486, %v484
  %v488 = vpop.permute.xlu0 %487
  %v490 = vlaneseq
  %v491 = vshrl.u32 %v490, 7
  %v492 = vsub.s32 0, %v491
  %v493 = vrot.slane %v480, %v492
  %v494 = vlaneseq
  %v495 = vshrl.u32 %v494, 7
  %v496 = vsub.s32 0, %v495
  %v497 = vrot.slane %v481, %v496
  %v498 = vlaneseq
  %v499 = vshrl.u32 %v498, 7
  %v500 = vsub.s32 0, %v499
  %v501 = vrot.slane %v482, %v500
  %v502 = vlaneseq
  %v503 = vshrl.u32 %v502, 7
  %v504 = vsub.s32 0, %v503
  %v505 = vrot.slane %v483, %v504
  %v506 = vmul.f32 %v488, %v493
  %v507 = vmul.f32 %v488, %v497
  %v508 = vmul.f32 %v488, %v501
  %v509 = vmul.f32 %v488, %v505
  %510 = vset.pattern.permute.xlu0 1
  %511 = vperm.xlu0 %510, %v484
  %v512 = vpop.permute.xlu0 %511
  %v514 = vlaneseq
  %v515 = vshrl.u32 %v514, 7
  %v516 = vsub.s32 1, %v515
  %v517 = vrot.slane %v480, %v516
  %v518 = vlaneseq
  %v519 = vshrl.u32 %v518, 7
  %v520 = vsub.s32 1, %v519
  %v521 = vrot.slane %v481, %v520
  %v522 = vlaneseq
  %v523 = vshrl.u32 %v522, 7
  %v524 = vsub.s32 1, %v523
  %v525 = vrot.slane %v482, %v524
  %v526 = vlaneseq
  %v527 = vshrl.u32 %v526, 7
  %v528 = vsub.s32 1, %v527
  %v529 = vrot.slane %v483, %v528
  %v530 = vmul.f32 %v512, %v517
  %v531 = vmul.f32 %v512, %v521
  %v532 = vmul.f32 %v512, %v525
  %v533 = vmul.f32 %v512, %v529
  %v534 = vadd.f32 %v506, %v530
  %v535 = vadd.f32 %v507, %v531
  %v536 = vadd.f32 %v508, %v532
  %v537 = vadd.f32 %v509, %v533
  %538 = vset.pattern.permute.xlu0 2
  %539 = vperm.xlu0 %538, %v484
  %v540 = vpop.permute.xlu0 %539
  %v542 = vlaneseq
  %v543 = vshrl.u32 %v542, 7
  %v544 = vsub.s32 2, %v543
  %v545 = vrot.slane %v480, %v544
  %v546 = vlaneseq
  %v547 = vshrl.u32 %v546, 7
  %v548 = vsub.s32 2, %v547
  %v549 = vrot.slane %v481, %v548
  %v550 = vlaneseq
  %v551 = vshrl.u32 %v550, 7
  %v552 = vsub.s32 2, %v551
  %v553 = vrot.slane %v482, %v552
  %v554 = vlaneseq
  %v555 = vshrl.u32 %v554, 7
  %v556 = vsub.s32 2, %v555
  %v557 = vrot.slane %v483, %v556
  %v558 = vmul.f32 %v540, %v545
  %v559 = vmul.f32 %v540, %v549
  %v560 = vmul.f32 %v540, %v553
  %v561 = vmul.f32 %v540, %v557
  %v562 = vadd.f32 %v534, %v558
  %v563 = vadd.f32 %v535, %v559
  %v564 = vadd.f32 %v536, %v560
  %v565 = vadd.f32 %v537, %v561
  %566 = vset.pattern.permute.xlu0 3
  %567 = vperm.xlu0 %566, %v484
  %v568 = vpop.permute.xlu0 %567
  %v570 = vlaneseq
  %v571 = vshrl.u32 %v570, 7
  %v572 = vsub.s32 3, %v571
  %v573 = vrot.slane %v480, %v572
  %v574 = vlaneseq
  %v575 = vshrl.u32 %v574, 7
  %v576 = vsub.s32 3, %v575
  %v577 = vrot.slane %v481, %v576
  %v578 = vlaneseq
  %v579 = vshrl.u32 %v578, 7
  %v580 = vsub.s32 3, %v579
  %v581 = vrot.slane %v482, %v580
  %v582 = vlaneseq
  %v583 = vshrl.u32 %v582, 7
  %v584 = vsub.s32 3, %v583
  %v585 = vrot.slane %v483, %v584
  %v586 = vmul.f32 %v568, %v573
  %v587 = vmul.f32 %v568, %v577
  %v588 = vmul.f32 %v568, %v581
  %v589 = vmul.f32 %v568, %v585
  %v590 = vadd.f32 %v562, %v586
  %v591 = vadd.f32 %v563, %v587
  %v592 = vadd.f32 %v564, %v588
  %v593 = vadd.f32 %v565, %v589
  %595 = vset.pattern.permute.xlu0 0
  %596 = vperm.xlu0 %595, %v196
  %v597 = vpop.permute.xlu0 %596
  %v599 = vadd.f32 %v590, %v597
  %v600 = vadd.f32 %v591, %v597
  %v601 = vadd.f32 %v592, %v597
  %v602 = vadd.f32 %v593, %v597
  %v603 = vmax.f32 %v599, 0.0
  %v604 = vmax.f32 %v600, 0.0
  %v605 = vmax.f32 %v601, 0.0
  %v606 = vmax.f32 %v602, 0.0
  %v607 = vlaneseq
  %v608 = vshrl.u32 %v607, 7
  %v609 = vsub.s32 4, %v608
  %v610 = vrot.slane %v480, %v609
  %v611 = vlaneseq
  %v612 = vshrl.u32 %v611, 7
  %v613 = vsub.s32 4, %v612
  %v614 = vrot.slane %v481, %v613
  %v615 = vlaneseq
  %v616 = vshrl.u32 %v615, 7
  %v617 = vsub.s32 4, %v616
  %v618 = vrot.slane %v482, %v617
  %v619 = vlaneseq
  %v620 = vshrl.u32 %v619, 7
  %v621 = vsub.s32 4, %v620
  %v622 = vrot.slane %v483, %v621
  %v623 = vmul.f32 %v488, %v610
  %v624 = vmul.f32 %v488, %v614
  %v625 = vmul.f32 %v488, %v618
  %v626 = vmul.f32 %v488, %v622
  %v627 = vlaneseq
  %v628 = vshrl.u32 %v627, 7
  %v629 = vsub.s32 5, %v628
  %v630 = vrot.slane %v480, %v629
  %v631 = vlaneseq
  %v632 = vshrl.u32 %v631, 7
  %v633 = vsub.s32 5, %v632
  %v634 = vrot.slane %v481, %v633
  %v635 = vlaneseq
  %v636 = vshrl.u32 %v635, 7
  %v637 = vsub.s32 5, %v636
  %v638 = vrot.slane %v482, %v637
  %v639 = vlaneseq
  %v640 = vshrl.u32 %v639, 7
  %v641 = vsub.s32 5, %v640
  %v642 = vrot.slane %v483, %v641
  %v643 = vmul.f32 %v512, %v630
  %v644 = vmul.f32 %v512, %v634
  %v645 = vmul.f32 %v512, %v638
  %v646 = vmul.f32 %v512, %v642
  %v647 = vadd.f32 %v623, %v643
  %v648 = vadd.f32 %v624, %v644
  %v649 = vadd.f32 %v625, %v645
  %v650 = vadd.f32 %v626, %v646
  %v651 = vlaneseq
  %v652 = vshrl.u32 %v651, 7
  %v653 = vsub.s32 6, %v652
  %v654 = vrot.slane %v480, %v653
  %v655 = vlaneseq
  %v656 = vshrl.u32 %v655, 7
  %v657 = vsub.s32 6, %v656
  %v658 = vrot.slane %v481, %v657
  %v659 = vlaneseq
  %v660 = vshrl.u32 %v659, 7
  %v661 = vsub.s32 6, %v660
  %v662 = vrot.slane %v482, %v661
  %v663 = vlaneseq
  %v664 = vshrl.u32 %v663, 7
  %v665 = vsub.s32 6, %v664
  %v666 = vrot.slane %v483, %v665
  %v667 = vmul.f32 %v540, %v654
  %v668 = vmul.f32 %v540, %v658
  %v669 = vmul.f32 %v540, %v662
  %v670 = vmul.f32 %v540, %v666
  %v671 = vadd.f32 %v647, %v667
  %v672 = vadd.f32 %v648, %v668
  %v673 = vadd.f32 %v649, %v669
  %v674 = vadd.f32 %v650, %v670
  %v675 = vlaneseq
  %v676 = vshrl.u32 %v675, 7
  %v677 = vsub.s32 7, %v676
  %v678 = vrot.slane %v480, %v677
  %v679 = vlaneseq
  %v680 = vshrl.u32 %v679, 7
  %v681 = vsub.s32 7, %v680
  %v682 = vrot.slane %v481, %v681
  %v683 = vlaneseq
  %v684 = vshrl.u32 %v683, 7
  %v685 = vsub.s32 7, %v684
  %v686 = vrot.slane %v482, %v685
  %v687 = vlaneseq
  %v688 = vshrl.u32 %v687, 7
  %v689 = vsub.s32 7, %v688
  %v690 = vrot.slane %v483, %v689
  %v691 = vmul.f32 %v568, %v678
  %v692 = vmul.f32 %v568, %v682
  %v693 = vmul.f32 %v568, %v686
  %v694 = vmul.f32 %v568, %v690
  %v695 = vadd.f32 %v671, %v691
  %v696 = vadd.f32 %v672, %v692
  %v697 = vadd.f32 %v673, %v693
  %v698 = vadd.f32 %v674, %v694
  %v699 = vadd.f32 %v695, %v597
  %v700 = vadd.f32 %v696, %v597
  %v701 = vadd.f32 %v697, %v597
  %v702 = vadd.f32 %v698, %v597
  %v703 = vmax.f32 %v699, 0.0
  %v704 = vmax.f32 %v700, 0.0
  %v705 = vmax.f32 %v701, 0.0
  %v706 = vmax.f32 %v702, 0.0
  %708 = vset.pattern.permute.xlu0 4
  %709 = vperm.xlu0 %708, %v192
  %v710 = vpop.permute.xlu0 %709
  %713 = vset.pattern.permute.xlu0 4
  %714 = vperm.xlu0 %713, %v193
  %v715 = vpop.permute.xlu0 %714
  %v717 = vmul.f32 %v603, %v710
  %v718 = vmul.f32 %v604, %v710
  %v719 = vmul.f32 %v605, %v710
  %v720 = vmul.f32 %v606, %v710
  %v721 = vmul.f32 %v703, %v715
  %v722 = vmul.f32 %v704, %v715
  %v723 = vmul.f32 %v705, %v715
  %v724 = vmul.f32 %v706, %v715
  %733 = vrot.lane.b32.xlu0 %v603, 33
  %v734 = vpop.permute.xlu0 %733
  %735 = vrot.lane.b32.xlu0 %v604, 33
  %v736 = vpop.permute.xlu0 %735
  %737 = vrot.lane.b32.xlu0 %v605, 33
  %v738 = vpop.permute.xlu0 %737
  %739 = vrot.lane.b32.xlu0 %v606, 33
  %v740 = vpop.permute.xlu0 %739
  %741 = vrot.lane.b32.xlu0 %v703, 33
  %v742 = vpop.permute.xlu0 %741
  %743 = vrot.lane.b32.xlu0 %v704, 33
  %v744 = vpop.permute.xlu0 %743
  %745 = vrot.lane.b32.xlu0 %v705, 33
  %v746 = vpop.permute.xlu0 %745
  %747 = vrot.lane.b32.xlu0 %v706, 33
  %v748 = vpop.permute.xlu0 %747
  %v749 = vsel %vm220, %v734, %v736
  %v750 = vsel %vm220, %v736, %v738
  %v751 = vsel %vm220, %v738, %v740
  %v752 = vsel %vm220, %v742, %v744
  %v753 = vsel %vm220, %v744, %v746
  %v754 = vsel %vm220, %v746, %v748
  %v763 = vsel %vm220, 0.0, %v734
  %v764 = vsel %vm220, 0.0, %v742
  %v765 = vsel %vm233, %v763, 0.0
  %v766 = vsel %vm234, %v749, 0.0
  %v767 = vsel %vm235, %v750, 0.0
  %v768 = vsel %vm236, %v751, 0.0
  %v769 = vsel %vm233, %v764, 0.0
  %v770 = vsel %vm234, %v752, 0.0
  %v771 = vsel %vm235, %v753, 0.0
  %v772 = vsel %vm236, %v754, 0.0
  %773 = vset.pattern.permute.xlu0 0
  %774 = vperm.xlu0 %773, %v192
  %v775 = vpop.permute.xlu0 %774
  %777 = vset.pattern.permute.xlu0 0
  %778 = vperm.xlu0 %777, %v193
  %v779 = vpop.permute.xlu0 %778
  %v781 = vmul.f32 %v765, %v775
  %v782 = vmul.f32 %v766, %v775
  %v783 = vmul.f32 %v767, %v775
  %v784 = vmul.f32 %v768, %v775
  %v785 = vmul.f32 %v769, %v779
  %v786 = vmul.f32 %v770, %v779
  %v787 = vmul.f32 %v771, %v779
  %v788 = vmul.f32 %v772, %v779
  %v789 = vadd.f32 %v717, %v781
  %v790 = vadd.f32 %v718, %v782
  %v791 = vadd.f32 %v719, %v783
  %v792 = vadd.f32 %v720, %v784
  %v793 = vadd.f32 %v721, %v785
  %v794 = vadd.f32 %v722, %v786
  %v795 = vadd.f32 %v723, %v787
  %v796 = vadd.f32 %v724, %v788
  %797 = vrot.lane.b32.xlu0 %v603, 32
  %v798 = vpop.permute.xlu0 %797
  %799 = vrot.lane.b32.xlu0 %v604, 32
  %v800 = vpop.permute.xlu0 %799
  %801 = vrot.lane.b32.xlu0 %v605, 32
  %v802 = vpop.permute.xlu0 %801
  %803 = vrot.lane.b32.xlu0 %v606, 32
  %v804 = vpop.permute.xlu0 %803
  %805 = vrot.lane.b32.xlu0 %v703, 32
  %v806 = vpop.permute.xlu0 %805
  %807 = vrot.lane.b32.xlu0 %v704, 32
  %v808 = vpop.permute.xlu0 %807
  %809 = vrot.lane.b32.xlu0 %v705, 32
  %v810 = vpop.permute.xlu0 %809
  %811 = vrot.lane.b32.xlu0 %v706, 32
  %v812 = vpop.permute.xlu0 %811
  %v813 = vsel %vm261, %v798, %v800
  %v814 = vsel %vm261, %v800, %v802
  %v815 = vsel %vm261, %v802, %v804
  %v816 = vsel %vm261, %v806, %v808
  %v817 = vsel %vm261, %v808, %v810
  %v818 = vsel %vm261, %v810, %v812
  %v827 = vsel %vm261, 0.0, %v798
  %v828 = vsel %vm261, 0.0, %v806
  %829 = vset.pattern.permute.xlu0 1
  %830 = vperm.xlu0 %829, %v192
  %v831 = vpop.permute.xlu0 %830
  %833 = vset.pattern.permute.xlu0 1
  %834 = vperm.xlu0 %833, %v193
  %v835 = vpop.permute.xlu0 %834
  %v837 = vmul.f32 %v827, %v831
  %v838 = vmul.f32 %v813, %v831
  %v839 = vmul.f32 %v814, %v831
  %v840 = vmul.f32 %v815, %v831
  %v841 = vmul.f32 %v828, %v835
  %v842 = vmul.f32 %v816, %v835
  %v843 = vmul.f32 %v817, %v835
  %v844 = vmul.f32 %v818, %v835
  %v845 = vadd.f32 %v789, %v837
  %v846 = vadd.f32 %v790, %v838
  %v847 = vadd.f32 %v791, %v839
  %v848 = vadd.f32 %v792, %v840
  %v849 = vadd.f32 %v793, %v841
  %v850 = vadd.f32 %v794, %v842
  %v851 = vadd.f32 %v795, %v843
  %v852 = vadd.f32 %v796, %v844
  %853 = vrot.lane.b32.xlu0 %v603, 31
  %v854 = vpop.permute.xlu0 %853
  %855 = vrot.lane.b32.xlu0 %v604, 31
  %v856 = vpop.permute.xlu0 %855
  %857 = vrot.lane.b32.xlu0 %v605, 31
  %v858 = vpop.permute.xlu0 %857
  %859 = vrot.lane.b32.xlu0 %v606, 31
  %v860 = vpop.permute.xlu0 %859
  %861 = vrot.lane.b32.xlu0 %v703, 31
  %v862 = vpop.permute.xlu0 %861
  %863 = vrot.lane.b32.xlu0 %v704, 31
  %v864 = vpop.permute.xlu0 %863
  %865 = vrot.lane.b32.xlu0 %v705, 31
  %v866 = vpop.permute.xlu0 %865
  %867 = vrot.lane.b32.xlu0 %v706, 31
  %v868 = vpop.permute.xlu0 %867
  %v869 = vsel %vm290, %v854, %v856
  %v870 = vsel %vm290, %v856, %v858
  %v871 = vsel %vm290, %v858, %v860
  %v872 = vsel %vm290, %v862, %v864
  %v873 = vsel %vm290, %v864, %v866
  %v874 = vsel %vm290, %v866, %v868
  %v883 = vsel %vm290, 0.0, %v854
  %v884 = vsel %vm290, 0.0, %v862
  %v885 = vsel %vm303, %v883, 0.0
  %v886 = vsel %vm304, %v869, 0.0
  %v887 = vsel %vm305, %v870, 0.0
  %v888 = vsel %vm306, %v871, 0.0
  %v889 = vsel %vm303, %v884, 0.0
  %v890 = vsel %vm304, %v872, 0.0
  %v891 = vsel %vm305, %v873, 0.0
  %v892 = vsel %vm306, %v874, 0.0
  %893 = vset.pattern.permute.xlu0 2
  %894 = vperm.xlu0 %893, %v192
  %v895 = vpop.permute.xlu0 %894
  %897 = vset.pattern.permute.xlu0 2
  %898 = vperm.xlu0 %897, %v193
  %v899 = vpop.permute.xlu0 %898
  %v901 = vmul.f32 %v885, %v895
  %v902 = vmul.f32 %v886, %v895
  %v903 = vmul.f32 %v887, %v895
  %v904 = vmul.f32 %v888, %v895
  %v905 = vmul.f32 %v889, %v899
  %v906 = vmul.f32 %v890, %v899
  %v907 = vmul.f32 %v891, %v899
  %v908 = vmul.f32 %v892, %v899
  %v909 = vadd.f32 %v845, %v901
  %v910 = vadd.f32 %v846, %v902
  %v911 = vadd.f32 %v847, %v903
  %v912 = vadd.f32 %v848, %v904
  %v913 = vadd.f32 %v849, %v905
  %v914 = vadd.f32 %v850, %v906
  %v915 = vadd.f32 %v851, %v907
  %v916 = vadd.f32 %v852, %v908
  %917 = vrot.lane.b32.xlu0 %v603, 1
  %v918 = vpop.permute.xlu0 %917
  %919 = vrot.lane.b32.xlu0 %v604, 1
  %v920 = vpop.permute.xlu0 %919
  %921 = vrot.lane.b32.xlu0 %v605, 1
  %v922 = vpop.permute.xlu0 %921
  %923 = vrot.lane.b32.xlu0 %v606, 1
  %v924 = vpop.permute.xlu0 %923
  %925 = vrot.lane.b32.xlu0 %v703, 1
  %v926 = vpop.permute.xlu0 %925
  %927 = vrot.lane.b32.xlu0 %v704, 1
  %v928 = vpop.permute.xlu0 %927
  %929 = vrot.lane.b32.xlu0 %v705, 1
  %v930 = vpop.permute.xlu0 %929
  %931 = vrot.lane.b32.xlu0 %v706, 1
  %v932 = vpop.permute.xlu0 %931
  %v933 = vsel %vm331, %v918, %v920
  %v934 = vsel %vm331, %v920, %v922
  %v935 = vsel %vm331, %v922, %v924
  %v936 = vsel %vm331, %v926, %v928
  %v937 = vsel %vm331, %v928, %v930
  %v938 = vsel %vm331, %v930, %v932
  %v947 = vsel %vm331, 0.0, %v918
  %v948 = vsel %vm331, 0.0, %v926
  %v949 = vsel %vm233, %v947, 0.0
  %v950 = vsel %vm234, %v933, 0.0
  %v951 = vsel %vm235, %v934, 0.0
  %v952 = vsel %vm236, %v935, 0.0
  %v953 = vsel %vm233, %v948, 0.0
  %v954 = vsel %vm234, %v936, 0.0
  %v955 = vsel %vm235, %v937, 0.0
  %v956 = vsel %vm236, %v938, 0.0
  %957 = vset.pattern.permute.xlu0 3
  %958 = vperm.xlu0 %957, %v192
  %v959 = vpop.permute.xlu0 %958
  %961 = vset.pattern.permute.xlu0 3
  %962 = vperm.xlu0 %961, %v193
  %v963 = vpop.permute.xlu0 %962
  %v965 = vmul.f32 %v949, %v959
  %v966 = vmul.f32 %v950, %v959
  %v967 = vmul.f32 %v951, %v959
  %v968 = vmul.f32 %v952, %v959
  %v969 = vmul.f32 %v953, %v963
  %v970 = vmul.f32 %v954, %v963
  %v971 = vmul.f32 %v955, %v963
  %v972 = vmul.f32 %v956, %v963
  %v973 = vadd.f32 %v909, %v965
  %v974 = vadd.f32 %v910, %v966
  %v975 = vadd.f32 %v911, %v967
  %v976 = vadd.f32 %v912, %v968
  %v977 = vadd.f32 %v913, %v969
  %v978 = vadd.f32 %v914, %v970
  %v979 = vadd.f32 %v915, %v971
  %v980 = vadd.f32 %v916, %v972
  %981 = vrot.lane.b32.xlu0 %v603, 127
  %v982 = vpop.permute.xlu0 %981
  %983 = vrot.lane.b32.xlu0 %v604, 127
  %v984 = vpop.permute.xlu0 %983
  %985 = vrot.lane.b32.xlu0 %v605, 127
  %v986 = vpop.permute.xlu0 %985
  %987 = vrot.lane.b32.xlu0 %v606, 127
  %v988 = vpop.permute.xlu0 %987
  %989 = vrot.lane.b32.xlu0 %v703, 127
  %v990 = vpop.permute.xlu0 %989
  %991 = vrot.lane.b32.xlu0 %v704, 127
  %v992 = vpop.permute.xlu0 %991
  %993 = vrot.lane.b32.xlu0 %v705, 127
  %v994 = vpop.permute.xlu0 %993
  %995 = vrot.lane.b32.xlu0 %v706, 127
  %v996 = vpop.permute.xlu0 %995
  %v997 = vsel %vm364, %v982, %v984
  %v998 = vsel %vm364, %v984, %v986
  %v999 = vsel %vm364, %v986, %v988
  %v1000 = vsel %vm364, %v990, %v992
  %v1001 = vsel %vm364, %v992, %v994
  %v1002 = vsel %vm364, %v994, %v996
  %v1011 = vsel %vm364, %v988, 0.0
  %v1012 = vsel %vm364, %v996, 0.0
  %v1013 = vsel %vm303, %v997, 0.0
  %v1014 = vsel %vm304, %v998, 0.0
  %v1015 = vsel %vm305, %v999, 0.0
  %v1016 = vsel %vm306, %v1011, 0.0
  %v1017 = vsel %vm303, %v1000, 0.0
  %v1018 = vsel %vm304, %v1001, 0.0
  %v1019 = vsel %vm305, %v1002, 0.0
  %v1020 = vsel %vm306, %v1012, 0.0
  %1021 = vset.pattern.permute.xlu0 5
  %1022 = vperm.xlu0 %1021, %v192
  %v1023 = vpop.permute.xlu0 %1022
  %1025 = vset.pattern.permute.xlu0 5
  %1026 = vperm.xlu0 %1025, %v193
  %v1027 = vpop.permute.xlu0 %1026
  %v1029 = vmul.f32 %v1013, %v1023
  %v1030 = vmul.f32 %v1014, %v1023
  %v1031 = vmul.f32 %v1015, %v1023
  %v1032 = vmul.f32 %v1016, %v1023
  %v1033 = vmul.f32 %v1017, %v1027
  %v1034 = vmul.f32 %v1018, %v1027
  %v1035 = vmul.f32 %v1019, %v1027
  %v1036 = vmul.f32 %v1020, %v1027
  %v1037 = vadd.f32 %v973, %v1029
  %v1038 = vadd.f32 %v974, %v1030
  %v1039 = vadd.f32 %v975, %v1031
  %v1040 = vadd.f32 %v976, %v1032
  %v1041 = vadd.f32 %v977, %v1033
  %v1042 = vadd.f32 %v978, %v1034
  %v1043 = vadd.f32 %v979, %v1035
  %v1044 = vadd.f32 %v980, %v1036
  %1045 = vrot.lane.b32.xlu0 %v603, 97
  %v1046 = vpop.permute.xlu0 %1045
  %1047 = vrot.lane.b32.xlu0 %v604, 97
  %v1048 = vpop.permute.xlu0 %1047
  %1049 = vrot.lane.b32.xlu0 %v605, 97
  %v1050 = vpop.permute.xlu0 %1049
  %1051 = vrot.lane.b32.xlu0 %v606, 97
  %v1052 = vpop.permute.xlu0 %1051
  %1053 = vrot.lane.b32.xlu0 %v703, 97
  %v1054 = vpop.permute.xlu0 %1053
  %1055 = vrot.lane.b32.xlu0 %v704, 97
  %v1056 = vpop.permute.xlu0 %1055
  %1057 = vrot.lane.b32.xlu0 %v705, 97
  %v1058 = vpop.permute.xlu0 %1057
  %1059 = vrot.lane.b32.xlu0 %v706, 97
  %v1060 = vpop.permute.xlu0 %1059
  %v1061 = vsel %vm397, %v1046, %v1048
  %v1062 = vsel %vm397, %v1048, %v1050
  %v1063 = vsel %vm397, %v1050, %v1052
  %v1064 = vsel %vm397, %v1054, %v1056
  %v1065 = vsel %vm397, %v1056, %v1058
  %v1066 = vsel %vm397, %v1058, %v1060
  %v1075 = vsel %vm397, %v1052, 0.0
  %v1076 = vsel %vm397, %v1060, 0.0
  %v1077 = vsel %vm233, %v1061, 0.0
  %v1078 = vsel %vm234, %v1062, 0.0
  %v1079 = vsel %vm235, %v1063, 0.0
  %v1080 = vsel %vm236, %v1075, 0.0
  %v1081 = vsel %vm233, %v1064, 0.0
  %v1082 = vsel %vm234, %v1065, 0.0
  %v1083 = vsel %vm235, %v1066, 0.0
  %v1084 = vsel %vm236, %v1076, 0.0
  %1085 = vset.pattern.permute.xlu0 6
  %1086 = vperm.xlu0 %1085, %v192
  %v1087 = vpop.permute.xlu0 %1086
  %1089 = vset.pattern.permute.xlu0 6
  %1090 = vperm.xlu0 %1089, %v193
  %v1091 = vpop.permute.xlu0 %1090
  %v1093 = vmul.f32 %v1077, %v1087
  %v1094 = vmul.f32 %v1078, %v1087
  %v1095 = vmul.f32 %v1079, %v1087
  %v1096 = vmul.f32 %v1080, %v1087
  %v1097 = vmul.f32 %v1081, %v1091
  %v1098 = vmul.f32 %v1082, %v1091
  %v1099 = vmul.f32 %v1083, %v1091
  %v1100 = vmul.f32 %v1084, %v1091
  %v1101 = vadd.f32 %v1037, %v1093
  %v1102 = vadd.f32 %v1038, %v1094
  %v1103 = vadd.f32 %v1039, %v1095
  %v1104 = vadd.f32 %v1040, %v1096
  %v1105 = vadd.f32 %v1041, %v1097
  %v1106 = vadd.f32 %v1042, %v1098
  %v1107 = vadd.f32 %v1043, %v1099
  %v1108 = vadd.f32 %v1044, %v1100
  %1109 = vrot.lane.b32.xlu0 %v603, 96
  %v1110 = vpop.permute.xlu0 %1109
  %1111 = vrot.lane.b32.xlu0 %v604, 96
  %v1112 = vpop.permute.xlu0 %1111
  %1113 = vrot.lane.b32.xlu0 %v605, 96
  %v1114 = vpop.permute.xlu0 %1113
  %1115 = vrot.lane.b32.xlu0 %v606, 96
  %v1116 = vpop.permute.xlu0 %1115
  %1117 = vrot.lane.b32.xlu0 %v703, 96
  %v1118 = vpop.permute.xlu0 %1117
  %1119 = vrot.lane.b32.xlu0 %v704, 96
  %v1120 = vpop.permute.xlu0 %1119
  %1121 = vrot.lane.b32.xlu0 %v705, 96
  %v1122 = vpop.permute.xlu0 %1121
  %1123 = vrot.lane.b32.xlu0 %v706, 96
  %v1124 = vpop.permute.xlu0 %1123
  %v1125 = vsel %vm430, %v1110, %v1112
  %v1126 = vsel %vm430, %v1112, %v1114
  %v1127 = vsel %vm430, %v1114, %v1116
  %v1128 = vsel %vm430, %v1118, %v1120
  %v1129 = vsel %vm430, %v1120, %v1122
  %v1130 = vsel %vm430, %v1122, %v1124
  %v1139 = vsel %vm430, %v1116, 0.0
  %v1140 = vsel %vm430, %v1124, 0.0
  %1141 = vset.pattern.permute.xlu0 7
  %1142 = vperm.xlu0 %1141, %v192
  %v1143 = vpop.permute.xlu0 %1142
  %1145 = vset.pattern.permute.xlu0 7
  %1146 = vperm.xlu0 %1145, %v193
  %v1147 = vpop.permute.xlu0 %1146
  %v1149 = vmul.f32 %v1125, %v1143
  %v1150 = vmul.f32 %v1126, %v1143
  %v1151 = vmul.f32 %v1127, %v1143
  %v1152 = vmul.f32 %v1139, %v1143
  %v1153 = vmul.f32 %v1128, %v1147
  %v1154 = vmul.f32 %v1129, %v1147
  %v1155 = vmul.f32 %v1130, %v1147
  %v1156 = vmul.f32 %v1140, %v1147
  %v1157 = vadd.f32 %v1101, %v1149
  %v1158 = vadd.f32 %v1102, %v1150
  %v1159 = vadd.f32 %v1103, %v1151
  %v1160 = vadd.f32 %v1104, %v1152
  %v1161 = vadd.f32 %v1105, %v1153
  %v1162 = vadd.f32 %v1106, %v1154
  %v1163 = vadd.f32 %v1107, %v1155
  %v1164 = vadd.f32 %v1108, %v1156
  %1165 = vrot.lane.b32.xlu0 %v603, 95
  %v1166 = vpop.permute.xlu0 %1165
  %1167 = vrot.lane.b32.xlu0 %v604, 95
  %v1168 = vpop.permute.xlu0 %1167
  %1169 = vrot.lane.b32.xlu0 %v605, 95
  %v1170 = vpop.permute.xlu0 %1169
  %1171 = vrot.lane.b32.xlu0 %v606, 95
  %v1172 = vpop.permute.xlu0 %1171
  %1173 = vrot.lane.b32.xlu0 %v703, 95
  %v1174 = vpop.permute.xlu0 %1173
  %1175 = vrot.lane.b32.xlu0 %v704, 95
  %v1176 = vpop.permute.xlu0 %1175
  %1177 = vrot.lane.b32.xlu0 %v705, 95
  %v1178 = vpop.permute.xlu0 %1177
  %1179 = vrot.lane.b32.xlu0 %v706, 95
  %v1180 = vpop.permute.xlu0 %1179
  %v1181 = vsel %vm459, %v1166, %v1168
  %v1182 = vsel %vm459, %v1168, %v1170
  %v1183 = vsel %vm459, %v1170, %v1172
  %v1184 = vsel %vm459, %v1174, %v1176
  %v1185 = vsel %vm459, %v1176, %v1178
  %v1186 = vsel %vm459, %v1178, %v1180
  %v1195 = vsel %vm459, %v1172, 0.0
  %v1196 = vsel %vm459, %v1180, 0.0
  %v1197 = vsel %vm303, %v1181, 0.0
  %v1198 = vsel %vm304, %v1182, 0.0
  %v1199 = vsel %vm305, %v1183, 0.0
  %v1200 = vsel %vm306, %v1195, 0.0
  %v1201 = vsel %vm303, %v1184, 0.0
  %v1202 = vsel %vm304, %v1185, 0.0
  %v1203 = vsel %vm305, %v1186, 0.0
  %v1204 = vsel %vm306, %v1196, 0.0
  %1205 = vset.pattern.permute.xlu0 8
  %1206 = vperm.xlu0 %1205, %v192
  %v1207 = vpop.permute.xlu0 %1206
  %1209 = vset.pattern.permute.xlu0 8
  %1210 = vperm.xlu0 %1209, %v193
  %v1211 = vpop.permute.xlu0 %1210
  %v1213 = vmul.f32 %v1197, %v1207
  %v1214 = vmul.f32 %v1198, %v1207
  %v1215 = vmul.f32 %v1199, %v1207
  %v1216 = vmul.f32 %v1200, %v1207
  %v1217 = vmul.f32 %v1201, %v1211
  %v1218 = vmul.f32 %v1202, %v1211
  %v1219 = vmul.f32 %v1203, %v1211
  %v1220 = vmul.f32 %v1204, %v1211
  %v1221 = vadd.f32 %v1157, %v1213
  %v1222 = vadd.f32 %v1158, %v1214
  %v1223 = vadd.f32 %v1159, %v1215
  %v1224 = vadd.f32 %v1160, %v1216
  %v1225 = vadd.f32 %v1161, %v1217
  %v1226 = vadd.f32 %v1162, %v1218
  %v1227 = vadd.f32 %v1163, %v1219
  %v1228 = vadd.f32 %v1164, %v1220
  %v1229 = vld [vmem:[%s4] sm:$0xff]
  %1231 = vset.pattern.permute.xlu0 0
  %1232 = vperm.xlu0 %1231, %v1229
  %v1233 = vpop.permute.xlu0 %1232
  %v1235 = vlaneseq
  %v1236 = vshrl.u32 %v1235, 7
  %v1237 = vsub.s32 0, %v1236
  %v1238 = vrot.slane %v1221, %v1237
  %v1239 = vlaneseq
  %v1240 = vshrl.u32 %v1239, 7
  %v1241 = vsub.s32 0, %v1240
  %v1242 = vrot.slane %v1222, %v1241
  %v1243 = vlaneseq
  %v1244 = vshrl.u32 %v1243, 7
  %v1245 = vsub.s32 0, %v1244
  %v1246 = vrot.slane %v1223, %v1245
  %v1247 = vlaneseq
  %v1248 = vshrl.u32 %v1247, 7
  %v1249 = vsub.s32 0, %v1248
  %v1250 = vrot.slane %v1224, %v1249
  %v1251 = vmul.f32 %v1233, %v1238
  %v1252 = vmul.f32 %v1233, %v1242
  %v1253 = vmul.f32 %v1233, %v1246
  %v1254 = vmul.f32 %v1233, %v1250
  %1255 = vset.pattern.permute.xlu0 1
  %1256 = vperm.xlu0 %1255, %v1229
  %v1257 = vpop.permute.xlu0 %1256
  %v1259 = vlaneseq
  %v1260 = vshrl.u32 %v1259, 7
  %v1261 = vsub.s32 1, %v1260
  %v1262 = vrot.slane %v1221, %v1261
  %v1263 = vlaneseq
  %v1264 = vshrl.u32 %v1263, 7
  %v1265 = vsub.s32 1, %v1264
  %v1266 = vrot.slane %v1222, %v1265
  %v1267 = vlaneseq
  %v1268 = vshrl.u32 %v1267, 7
  %v1269 = vsub.s32 1, %v1268
  %v1270 = vrot.slane %v1223, %v1269
  %v1271 = vlaneseq
  %v1272 = vshrl.u32 %v1271, 7
  %v1273 = vsub.s32 1, %v1272
  %v1274 = vrot.slane %v1224, %v1273
  %v1275 = vmul.f32 %v1257, %v1262
  %v1276 = vmul.f32 %v1257, %v1266
  %v1277 = vmul.f32 %v1257, %v1270
  %v1278 = vmul.f32 %v1257, %v1274
  %v1279 = vadd.f32 %v1251, %v1275
  %v1280 = vadd.f32 %v1252, %v1276
  %v1281 = vadd.f32 %v1253, %v1277
  %v1282 = vadd.f32 %v1254, %v1278
  %1283 = vset.pattern.permute.xlu0 2
  %1284 = vperm.xlu0 %1283, %v1229
  %v1285 = vpop.permute.xlu0 %1284
  %v1287 = vlaneseq
  %v1288 = vshrl.u32 %v1287, 7
  %v1289 = vsub.s32 2, %v1288
  %v1290 = vrot.slane %v1221, %v1289
  %v1291 = vlaneseq
  %v1292 = vshrl.u32 %v1291, 7
  %v1293 = vsub.s32 2, %v1292
  %v1294 = vrot.slane %v1222, %v1293
  %v1295 = vlaneseq
  %v1296 = vshrl.u32 %v1295, 7
  %v1297 = vsub.s32 2, %v1296
  %v1298 = vrot.slane %v1223, %v1297
  %v1299 = vlaneseq
  %v1300 = vshrl.u32 %v1299, 7
  %v1301 = vsub.s32 2, %v1300
  %v1302 = vrot.slane %v1224, %v1301
  %v1303 = vmul.f32 %v1285, %v1290
  %v1304 = vmul.f32 %v1285, %v1294
  %v1305 = vmul.f32 %v1285, %v1298
  %v1306 = vmul.f32 %v1285, %v1302
  %v1307 = vadd.f32 %v1279, %v1303
  %v1308 = vadd.f32 %v1280, %v1304
  %v1309 = vadd.f32 %v1281, %v1305
  %v1310 = vadd.f32 %v1282, %v1306
  %1311 = vset.pattern.permute.xlu0 3
  %1312 = vperm.xlu0 %1311, %v1229
  %v1313 = vpop.permute.xlu0 %1312
  %v1315 = vlaneseq
  %v1316 = vshrl.u32 %v1315, 7
  %v1317 = vsub.s32 3, %v1316
  %v1318 = vrot.slane %v1221, %v1317
  %v1319 = vlaneseq
  %v1320 = vshrl.u32 %v1319, 7
  %v1321 = vsub.s32 3, %v1320
  %v1322 = vrot.slane %v1222, %v1321
  %v1323 = vlaneseq
  %v1324 = vshrl.u32 %v1323, 7
  %v1325 = vsub.s32 3, %v1324
  %v1326 = vrot.slane %v1223, %v1325
  %v1327 = vlaneseq
  %v1328 = vshrl.u32 %v1327, 7
  %v1329 = vsub.s32 3, %v1328
  %v1330 = vrot.slane %v1224, %v1329
  %v1331 = vmul.f32 %v1313, %v1318
  %v1332 = vmul.f32 %v1313, %v1322
  %v1333 = vmul.f32 %v1313, %v1326
  %v1334 = vmul.f32 %v1313, %v1330
  %v1335 = vadd.f32 %v1307, %v1331
  %v1336 = vadd.f32 %v1308, %v1332
  %v1337 = vadd.f32 %v1309, %v1333
  %v1338 = vadd.f32 %v1310, %v1334
  %1339 = vset.pattern.permute.xlu0 4
  %1340 = vperm.xlu0 %1339, %v1229
  %v1341 = vpop.permute.xlu0 %1340
  %v1343 = vlaneseq
  %v1344 = vshrl.u32 %v1343, 7
  %v1345 = vsub.s32 4, %v1344
  %v1346 = vrot.slane %v1221, %v1345
  %v1347 = vlaneseq
  %v1348 = vshrl.u32 %v1347, 7
  %v1349 = vsub.s32 4, %v1348
  %v1350 = vrot.slane %v1222, %v1349
  %v1351 = vlaneseq
  %v1352 = vshrl.u32 %v1351, 7
  %v1353 = vsub.s32 4, %v1352
  %v1354 = vrot.slane %v1223, %v1353
  %v1355 = vlaneseq
  %v1356 = vshrl.u32 %v1355, 7
  %v1357 = vsub.s32 4, %v1356
  %v1358 = vrot.slane %v1224, %v1357
  %v1359 = vmul.f32 %v1341, %v1346
  %v1360 = vmul.f32 %v1341, %v1350
  %v1361 = vmul.f32 %v1341, %v1354
  %v1362 = vmul.f32 %v1341, %v1358
  %v1363 = vadd.f32 %v1335, %v1359
  %v1364 = vadd.f32 %v1336, %v1360
  %v1365 = vadd.f32 %v1337, %v1361
  %v1366 = vadd.f32 %v1338, %v1362
  %1367 = vset.pattern.permute.xlu0 5
  %1368 = vperm.xlu0 %1367, %v1229
  %v1369 = vpop.permute.xlu0 %1368
  %v1371 = vlaneseq
  %v1372 = vshrl.u32 %v1371, 7
  %v1373 = vsub.s32 5, %v1372
  %v1374 = vrot.slane %v1221, %v1373
  %v1375 = vlaneseq
  %v1376 = vshrl.u32 %v1375, 7
  %v1377 = vsub.s32 5, %v1376
  %v1378 = vrot.slane %v1222, %v1377
  %v1379 = vlaneseq
  %v1380 = vshrl.u32 %v1379, 7
  %v1381 = vsub.s32 5, %v1380
  %v1382 = vrot.slane %v1223, %v1381
  %v1383 = vlaneseq
  %v1384 = vshrl.u32 %v1383, 7
  %v1385 = vsub.s32 5, %v1384
  %v1386 = vrot.slane %v1224, %v1385
  %v1387 = vmul.f32 %v1369, %v1374
  %v1388 = vmul.f32 %v1369, %v1378
  %v1389 = vmul.f32 %v1369, %v1382
  %v1390 = vmul.f32 %v1369, %v1386
  %v1391 = vadd.f32 %v1363, %v1387
  %v1392 = vadd.f32 %v1364, %v1388
  %v1393 = vadd.f32 %v1365, %v1389
  %v1394 = vadd.f32 %v1366, %v1390
  %1395 = vset.pattern.permute.xlu0 6
  %1396 = vperm.xlu0 %1395, %v1229
  %v1397 = vpop.permute.xlu0 %1396
  %v1399 = vlaneseq
  %v1400 = vshrl.u32 %v1399, 7
  %v1401 = vsub.s32 6, %v1400
  %v1402 = vrot.slane %v1221, %v1401
  %v1403 = vlaneseq
  %v1404 = vshrl.u32 %v1403, 7
  %v1405 = vsub.s32 6, %v1404
  %v1406 = vrot.slane %v1222, %v1405
  %v1407 = vlaneseq
  %v1408 = vshrl.u32 %v1407, 7
  %v1409 = vsub.s32 6, %v1408
  %v1410 = vrot.slane %v1223, %v1409
  %v1411 = vlaneseq
  %v1412 = vshrl.u32 %v1411, 7
  %v1413 = vsub.s32 6, %v1412
  %v1414 = vrot.slane %v1224, %v1413
  %v1415 = vmul.f32 %v1397, %v1402
  %v1416 = vmul.f32 %v1397, %v1406
  %v1417 = vmul.f32 %v1397, %v1410
  %v1418 = vmul.f32 %v1397, %v1414
  %v1419 = vadd.f32 %v1391, %v1415
  %v1420 = vadd.f32 %v1392, %v1416
  %v1421 = vadd.f32 %v1393, %v1417
  %v1422 = vadd.f32 %v1394, %v1418
  %1423 = vset.pattern.permute.xlu0 7
  %1424 = vperm.xlu0 %1423, %v1229
  %v1425 = vpop.permute.xlu0 %1424
  %v1427 = vlaneseq
  %v1428 = vshrl.u32 %v1427, 7
  %v1429 = vsub.s32 7, %v1428
  %v1430 = vrot.slane %v1221, %v1429
  %v1431 = vlaneseq
  %v1432 = vshrl.u32 %v1431, 7
  %v1433 = vsub.s32 7, %v1432
  %v1434 = vrot.slane %v1222, %v1433
  %v1435 = vlaneseq
  %v1436 = vshrl.u32 %v1435, 7
  %v1437 = vsub.s32 7, %v1436
  %v1438 = vrot.slane %v1223, %v1437
  %v1439 = vlaneseq
  %v1440 = vshrl.u32 %v1439, 7
  %v1441 = vsub.s32 7, %v1440
  %v1442 = vrot.slane %v1224, %v1441
  %v1443 = vmul.f32 %v1425, %v1430
  %v1444 = vmul.f32 %v1425, %v1434
  %v1445 = vmul.f32 %v1425, %v1438
  %v1446 = vmul.f32 %v1425, %v1442
  %v1447 = vadd.f32 %v1419, %v1443
  %v1448 = vadd.f32 %v1420, %v1444
  %v1449 = vadd.f32 %v1421, %v1445
  %v1450 = vadd.f32 %v1422, %v1446
  %1452 = vset.pattern.permute.xlu0 0
  %1453 = vperm.xlu0 %1452, %v197
  %v1454 = vpop.permute.xlu0 %1453
  %v1456 = vadd.f32 %v1447, %v1454
  %v1457 = vadd.f32 %v1448, %v1454
  %v1458 = vadd.f32 %v1449, %v1454
  %v1459 = vadd.f32 %v1450, %v1454
  %v1460 = vmax.f32 %v1456, 0.0
  %v1461 = vmax.f32 %v1457, 0.0
  %v1462 = vmax.f32 %v1458, 0.0
  %v1463 = vmax.f32 %v1459, 0.0
  %v1464 = vlaneseq
  %v1465 = vshrl.u32 %v1464, 7
  %v1466 = vsub.s32 0, %v1465
  %v1467 = vrot.slane %v1225, %v1466
  %v1468 = vlaneseq
  %v1469 = vshrl.u32 %v1468, 7
  %v1470 = vsub.s32 0, %v1469
  %v1471 = vrot.slane %v1226, %v1470
  %v1472 = vlaneseq
  %v1473 = vshrl.u32 %v1472, 7
  %v1474 = vsub.s32 0, %v1473
  %v1475 = vrot.slane %v1227, %v1474
  %v1476 = vlaneseq
  %v1477 = vshrl.u32 %v1476, 7
  %v1478 = vsub.s32 0, %v1477
  %v1479 = vrot.slane %v1228, %v1478
  %v1480 = vmul.f32 %v1233, %v1467
  %v1481 = vmul.f32 %v1233, %v1471
  %v1482 = vmul.f32 %v1233, %v1475
  %v1483 = vmul.f32 %v1233, %v1479
  %v1484 = vlaneseq
  %v1485 = vshrl.u32 %v1484, 7
  %v1486 = vsub.s32 1, %v1485
  %v1487 = vrot.slane %v1225, %v1486
  %v1488 = vlaneseq
  %v1489 = vshrl.u32 %v1488, 7
  %v1490 = vsub.s32 1, %v1489
  %v1491 = vrot.slane %v1226, %v1490
  %v1492 = vlaneseq
  %v1493 = vshrl.u32 %v1492, 7
  %v1494 = vsub.s32 1, %v1493
  %v1495 = vrot.slane %v1227, %v1494
  %v1496 = vlaneseq
  %v1497 = vshrl.u32 %v1496, 7
  %v1498 = vsub.s32 1, %v1497
  %v1499 = vrot.slane %v1228, %v1498
  %v1500 = vmul.f32 %v1257, %v1487
  %v1501 = vmul.f32 %v1257, %v1491
  %v1502 = vmul.f32 %v1257, %v1495
  %v1503 = vmul.f32 %v1257, %v1499
  %v1504 = vadd.f32 %v1480, %v1500
  %v1505 = vadd.f32 %v1481, %v1501
  %v1506 = vadd.f32 %v1482, %v1502
  %v1507 = vadd.f32 %v1483, %v1503
  %v1508 = vlaneseq
  %v1509 = vshrl.u32 %v1508, 7
  %v1510 = vsub.s32 2, %v1509
  %v1511 = vrot.slane %v1225, %v1510
  %v1512 = vlaneseq
  %v1513 = vshrl.u32 %v1512, 7
  %v1514 = vsub.s32 2, %v1513
  %v1515 = vrot.slane %v1226, %v1514
  %v1516 = vlaneseq
  %v1517 = vshrl.u32 %v1516, 7
  %v1518 = vsub.s32 2, %v1517
  %v1519 = vrot.slane %v1227, %v1518
  %v1520 = vlaneseq
  %v1521 = vshrl.u32 %v1520, 7
  %v1522 = vsub.s32 2, %v1521
  %v1523 = vrot.slane %v1228, %v1522
  %v1524 = vmul.f32 %v1285, %v1511
  %v1525 = vmul.f32 %v1285, %v1515
  %v1526 = vmul.f32 %v1285, %v1519
  %v1527 = vmul.f32 %v1285, %v1523
  %v1528 = vadd.f32 %v1504, %v1524
  %v1529 = vadd.f32 %v1505, %v1525
  %v1530 = vadd.f32 %v1506, %v1526
  %v1531 = vadd.f32 %v1507, %v1527
  %v1532 = vlaneseq
  %v1533 = vshrl.u32 %v1532, 7
  %v1534 = vsub.s32 3, %v1533
  %v1535 = vrot.slane %v1225, %v1534
  %v1536 = vlaneseq
  %v1537 = vshrl.u32 %v1536, 7
  %v1538 = vsub.s32 3, %v1537
  %v1539 = vrot.slane %v1226, %v1538
  %v1540 = vlaneseq
  %v1541 = vshrl.u32 %v1540, 7
  %v1542 = vsub.s32 3, %v1541
  %v1543 = vrot.slane %v1227, %v1542
  %v1544 = vlaneseq
  %v1545 = vshrl.u32 %v1544, 7
  %v1546 = vsub.s32 3, %v1545
  %v1547 = vrot.slane %v1228, %v1546
  %v1548 = vmul.f32 %v1313, %v1535
  %v1549 = vmul.f32 %v1313, %v1539
  %v1550 = vmul.f32 %v1313, %v1543
  %v1551 = vmul.f32 %v1313, %v1547
  %v1552 = vadd.f32 %v1528, %v1548
  %v1553 = vadd.f32 %v1529, %v1549
  %v1554 = vadd.f32 %v1530, %v1550
  %v1555 = vadd.f32 %v1531, %v1551
  %v1556 = vlaneseq
  %v1557 = vshrl.u32 %v1556, 7
  %v1558 = vsub.s32 4, %v1557
  %v1559 = vrot.slane %v1225, %v1558
  %v1560 = vlaneseq
  %v1561 = vshrl.u32 %v1560, 7
  %v1562 = vsub.s32 4, %v1561
  %v1563 = vrot.slane %v1226, %v1562
  %v1564 = vlaneseq
  %v1565 = vshrl.u32 %v1564, 7
  %v1566 = vsub.s32 4, %v1565
  %v1567 = vrot.slane %v1227, %v1566
  %v1568 = vlaneseq
  %v1569 = vshrl.u32 %v1568, 7
  %v1570 = vsub.s32 4, %v1569
  %v1571 = vrot.slane %v1228, %v1570
  %v1572 = vmul.f32 %v1341, %v1559
  %v1573 = vmul.f32 %v1341, %v1563
  %v1574 = vmul.f32 %v1341, %v1567
  %v1575 = vmul.f32 %v1341, %v1571
  %v1576 = vadd.f32 %v1552, %v1572
  %v1577 = vadd.f32 %v1553, %v1573
  %v1578 = vadd.f32 %v1554, %v1574
  %v1579 = vadd.f32 %v1555, %v1575
  %v1580 = vlaneseq
  %v1581 = vshrl.u32 %v1580, 7
  %v1582 = vsub.s32 5, %v1581
  %v1583 = vrot.slane %v1225, %v1582
  %v1584 = vlaneseq
  %v1585 = vshrl.u32 %v1584, 7
  %v1586 = vsub.s32 5, %v1585
  %v1587 = vrot.slane %v1226, %v1586
  %v1588 = vlaneseq
  %v1589 = vshrl.u32 %v1588, 7
  %v1590 = vsub.s32 5, %v1589
  %v1591 = vrot.slane %v1227, %v1590
  %v1592 = vlaneseq
  %v1593 = vshrl.u32 %v1592, 7
  %v1594 = vsub.s32 5, %v1593
  %v1595 = vrot.slane %v1228, %v1594
  %v1596 = vmul.f32 %v1369, %v1583
  %v1597 = vmul.f32 %v1369, %v1587
  %v1598 = vmul.f32 %v1369, %v1591
  %v1599 = vmul.f32 %v1369, %v1595
  %v1600 = vadd.f32 %v1576, %v1596
  %v1601 = vadd.f32 %v1577, %v1597
  %v1602 = vadd.f32 %v1578, %v1598
  %v1603 = vadd.f32 %v1579, %v1599
  %v1604 = vlaneseq
  %v1605 = vshrl.u32 %v1604, 7
  %v1606 = vsub.s32 6, %v1605
  %v1607 = vrot.slane %v1225, %v1606
  %v1608 = vlaneseq
  %v1609 = vshrl.u32 %v1608, 7
  %v1610 = vsub.s32 6, %v1609
  %v1611 = vrot.slane %v1226, %v1610
  %v1612 = vlaneseq
  %v1613 = vshrl.u32 %v1612, 7
  %v1614 = vsub.s32 6, %v1613
  %v1615 = vrot.slane %v1227, %v1614
  %v1616 = vlaneseq
  %v1617 = vshrl.u32 %v1616, 7
  %v1618 = vsub.s32 6, %v1617
  %v1619 = vrot.slane %v1228, %v1618
  %v1620 = vmul.f32 %v1397, %v1607
  %v1621 = vmul.f32 %v1397, %v1611
  %v1622 = vmul.f32 %v1397, %v1615
  %v1623 = vmul.f32 %v1397, %v1619
  %v1624 = vadd.f32 %v1600, %v1620
  %v1625 = vadd.f32 %v1601, %v1621
  %v1626 = vadd.f32 %v1602, %v1622
  %v1627 = vadd.f32 %v1603, %v1623
  %v1628 = vlaneseq
  %v1629 = vshrl.u32 %v1628, 7
  %v1630 = vsub.s32 7, %v1629
  %v1631 = vrot.slane %v1225, %v1630
  %v1632 = vlaneseq
  %v1633 = vshrl.u32 %v1632, 7
  %v1634 = vsub.s32 7, %v1633
  %v1635 = vrot.slane %v1226, %v1634
  %v1636 = vlaneseq
  %v1637 = vshrl.u32 %v1636, 7
  %v1638 = vsub.s32 7, %v1637
  %v1639 = vrot.slane %v1227, %v1638
  %v1640 = vlaneseq
  %v1641 = vshrl.u32 %v1640, 7
  %v1642 = vsub.s32 7, %v1641
  %v1643 = vrot.slane %v1228, %v1642
  %v1644 = vmul.f32 %v1425, %v1631
  %v1645 = vmul.f32 %v1425, %v1635
  %v1646 = vmul.f32 %v1425, %v1639
  %v1647 = vmul.f32 %v1425, %v1643
  %v1648 = vadd.f32 %v1624, %v1644
  %v1649 = vadd.f32 %v1625, %v1645
  %v1650 = vadd.f32 %v1626, %v1646
  %v1651 = vadd.f32 %v1627, %v1647
  %v1652 = vadd.f32 %v1648, %v1454
  %v1653 = vadd.f32 %v1649, %v1454
  %v1654 = vadd.f32 %v1650, %v1454
  %v1655 = vadd.f32 %v1651, %v1454
  %v1656 = vmax.f32 %v1652, 0.0
  %v1657 = vmax.f32 %v1653, 0.0
  %v1658 = vmax.f32 %v1654, 0.0
  %v1659 = vmax.f32 %v1655, 0.0
  %1661 = vset.pattern.permute.xlu0 4
  %1662 = vperm.xlu0 %1661, %v194
  %v1663 = vpop.permute.xlu0 %1662
  %1666 = vset.pattern.permute.xlu0 4
  %1667 = vperm.xlu0 %1666, %v195
  %v1668 = vpop.permute.xlu0 %1667
  %v1670 = vmul.f32 %v1460, %v1663
  %v1671 = vmul.f32 %v1461, %v1663
  %v1672 = vmul.f32 %v1462, %v1663
  %v1673 = vmul.f32 %v1463, %v1663
  %v1674 = vmul.f32 %v1656, %v1668
  %v1675 = vmul.f32 %v1657, %v1668
  %v1676 = vmul.f32 %v1658, %v1668
  %v1677 = vmul.f32 %v1659, %v1668
  %1686 = vrot.lane.b32.xlu0 %v1460, 33
  %v1687 = vpop.permute.xlu0 %1686
  %1688 = vrot.lane.b32.xlu0 %v1461, 33
  %v1689 = vpop.permute.xlu0 %1688
  %1690 = vrot.lane.b32.xlu0 %v1462, 33
  %v1691 = vpop.permute.xlu0 %1690
  %1692 = vrot.lane.b32.xlu0 %v1463, 33
  %v1693 = vpop.permute.xlu0 %1692
  %1694 = vrot.lane.b32.xlu0 %v1656, 33
  %v1695 = vpop.permute.xlu0 %1694
  %1696 = vrot.lane.b32.xlu0 %v1657, 33
  %v1697 = vpop.permute.xlu0 %1696
  %1698 = vrot.lane.b32.xlu0 %v1658, 33
  %v1699 = vpop.permute.xlu0 %1698
  %1700 = vrot.lane.b32.xlu0 %v1659, 33
  %v1701 = vpop.permute.xlu0 %1700
  %v1702 = vsel %vm220, %v1687, %v1689
  %v1703 = vsel %vm220, %v1689, %v1691
  %v1704 = vsel %vm220, %v1691, %v1693
  %v1705 = vsel %vm220, %v1695, %v1697
  %v1706 = vsel %vm220, %v1697, %v1699
  %v1707 = vsel %vm220, %v1699, %v1701
  %v1716 = vsel %vm220, 0.0, %v1687
  %v1717 = vsel %vm220, 0.0, %v1695
  %v1718 = vsel %vm233, %v1716, 0.0
  %v1719 = vsel %vm234, %v1702, 0.0
  %v1720 = vsel %vm235, %v1703, 0.0
  %v1721 = vsel %vm236, %v1704, 0.0
  %v1722 = vsel %vm233, %v1717, 0.0
  %v1723 = vsel %vm234, %v1705, 0.0
  %v1724 = vsel %vm235, %v1706, 0.0
  %v1725 = vsel %vm236, %v1707, 0.0
  %1726 = vset.pattern.permute.xlu0 0
  %1727 = vperm.xlu0 %1726, %v194
  %v1728 = vpop.permute.xlu0 %1727
  %1730 = vset.pattern.permute.xlu0 0
  %1731 = vperm.xlu0 %1730, %v195
  %v1732 = vpop.permute.xlu0 %1731
  %v1734 = vmul.f32 %v1718, %v1728
  %v1735 = vmul.f32 %v1719, %v1728
  %v1736 = vmul.f32 %v1720, %v1728
  %v1737 = vmul.f32 %v1721, %v1728
  %v1738 = vmul.f32 %v1722, %v1732
  %v1739 = vmul.f32 %v1723, %v1732
  %v1740 = vmul.f32 %v1724, %v1732
  %v1741 = vmul.f32 %v1725, %v1732
  %v1742 = vadd.f32 %v1670, %v1734
  %v1743 = vadd.f32 %v1671, %v1735
  %v1744 = vadd.f32 %v1672, %v1736
  %v1745 = vadd.f32 %v1673, %v1737
  %v1746 = vadd.f32 %v1674, %v1738
  %v1747 = vadd.f32 %v1675, %v1739
  %v1748 = vadd.f32 %v1676, %v1740
  %v1749 = vadd.f32 %v1677, %v1741
  %1750 = vrot.lane.b32.xlu0 %v1460, 32
  %v1751 = vpop.permute.xlu0 %1750
  %1752 = vrot.lane.b32.xlu0 %v1461, 32
  %v1753 = vpop.permute.xlu0 %1752
  %1754 = vrot.lane.b32.xlu0 %v1462, 32
  %v1755 = vpop.permute.xlu0 %1754
  %1756 = vrot.lane.b32.xlu0 %v1463, 32
  %v1757 = vpop.permute.xlu0 %1756
  %1758 = vrot.lane.b32.xlu0 %v1656, 32
  %v1759 = vpop.permute.xlu0 %1758
  %1760 = vrot.lane.b32.xlu0 %v1657, 32
  %v1761 = vpop.permute.xlu0 %1760
  %1762 = vrot.lane.b32.xlu0 %v1658, 32
  %v1763 = vpop.permute.xlu0 %1762
  %1764 = vrot.lane.b32.xlu0 %v1659, 32
  %v1765 = vpop.permute.xlu0 %1764
  %v1766 = vsel %vm261, %v1751, %v1753
  %v1767 = vsel %vm261, %v1753, %v1755
  %v1768 = vsel %vm261, %v1755, %v1757
  %v1769 = vsel %vm261, %v1759, %v1761
  %v1770 = vsel %vm261, %v1761, %v1763
  %v1771 = vsel %vm261, %v1763, %v1765
  %v1780 = vsel %vm261, 0.0, %v1751
  %v1781 = vsel %vm261, 0.0, %v1759
  %1782 = vset.pattern.permute.xlu0 1
  %1783 = vperm.xlu0 %1782, %v194
  %v1784 = vpop.permute.xlu0 %1783
  %1786 = vset.pattern.permute.xlu0 1
  %1787 = vperm.xlu0 %1786, %v195
  %v1788 = vpop.permute.xlu0 %1787
  %v1790 = vmul.f32 %v1780, %v1784
  %v1791 = vmul.f32 %v1766, %v1784
  %v1792 = vmul.f32 %v1767, %v1784
  %v1793 = vmul.f32 %v1768, %v1784
  %v1794 = vmul.f32 %v1781, %v1788
  %v1795 = vmul.f32 %v1769, %v1788
  %v1796 = vmul.f32 %v1770, %v1788
  %v1797 = vmul.f32 %v1771, %v1788
  %v1798 = vadd.f32 %v1742, %v1790
  %v1799 = vadd.f32 %v1743, %v1791
  %v1800 = vadd.f32 %v1744, %v1792
  %v1801 = vadd.f32 %v1745, %v1793
  %v1802 = vadd.f32 %v1746, %v1794
  %v1803 = vadd.f32 %v1747, %v1795
  %v1804 = vadd.f32 %v1748, %v1796
  %v1805 = vadd.f32 %v1749, %v1797
  %1806 = vrot.lane.b32.xlu0 %v1460, 31
  %v1807 = vpop.permute.xlu0 %1806
  %1808 = vrot.lane.b32.xlu0 %v1461, 31
  %v1809 = vpop.permute.xlu0 %1808
  %1810 = vrot.lane.b32.xlu0 %v1462, 31
  %v1811 = vpop.permute.xlu0 %1810
  %1812 = vrot.lane.b32.xlu0 %v1463, 31
  %v1813 = vpop.permute.xlu0 %1812
  %1814 = vrot.lane.b32.xlu0 %v1656, 31
  %v1815 = vpop.permute.xlu0 %1814
  %1816 = vrot.lane.b32.xlu0 %v1657, 31
  %v1817 = vpop.permute.xlu0 %1816
  %1818 = vrot.lane.b32.xlu0 %v1658, 31
  %v1819 = vpop.permute.xlu0 %1818
  %1820 = vrot.lane.b32.xlu0 %v1659, 31
  %v1821 = vpop.permute.xlu0 %1820
  %v1822 = vsel %vm290, %v1807, %v1809
  %v1823 = vsel %vm290, %v1809, %v1811
  %v1824 = vsel %vm290, %v1811, %v1813
  %v1825 = vsel %vm290, %v1815, %v1817
  %v1826 = vsel %vm290, %v1817, %v1819
  %v1827 = vsel %vm290, %v1819, %v1821
  %v1836 = vsel %vm290, 0.0, %v1807
  %v1837 = vsel %vm290, 0.0, %v1815
  %v1838 = vsel %vm303, %v1836, 0.0
  %v1839 = vsel %vm304, %v1822, 0.0
  %v1840 = vsel %vm305, %v1823, 0.0
  %v1841 = vsel %vm306, %v1824, 0.0
  %v1842 = vsel %vm303, %v1837, 0.0
  %v1843 = vsel %vm304, %v1825, 0.0
  %v1844 = vsel %vm305, %v1826, 0.0
  %v1845 = vsel %vm306, %v1827, 0.0
  %1846 = vset.pattern.permute.xlu0 2
  %1847 = vperm.xlu0 %1846, %v194
  %v1848 = vpop.permute.xlu0 %1847
  %1850 = vset.pattern.permute.xlu0 2
  %1851 = vperm.xlu0 %1850, %v195
  %v1852 = vpop.permute.xlu0 %1851
  %v1854 = vmul.f32 %v1838, %v1848
  %v1855 = vmul.f32 %v1839, %v1848
  %v1856 = vmul.f32 %v1840, %v1848
  %v1857 = vmul.f32 %v1841, %v1848
  %v1858 = vmul.f32 %v1842, %v1852
  %v1859 = vmul.f32 %v1843, %v1852
  %v1860 = vmul.f32 %v1844, %v1852
  %v1861 = vmul.f32 %v1845, %v1852
  %v1862 = vadd.f32 %v1798, %v1854
  %v1863 = vadd.f32 %v1799, %v1855
  %v1864 = vadd.f32 %v1800, %v1856
  %v1865 = vadd.f32 %v1801, %v1857
  %v1866 = vadd.f32 %v1802, %v1858
  %v1867 = vadd.f32 %v1803, %v1859
  %v1868 = vadd.f32 %v1804, %v1860
  %v1869 = vadd.f32 %v1805, %v1861
  %1870 = vrot.lane.b32.xlu0 %v1460, 1
  %v1871 = vpop.permute.xlu0 %1870
  %1872 = vrot.lane.b32.xlu0 %v1461, 1
  %v1873 = vpop.permute.xlu0 %1872
  %1874 = vrot.lane.b32.xlu0 %v1462, 1
  %v1875 = vpop.permute.xlu0 %1874
  %1876 = vrot.lane.b32.xlu0 %v1463, 1
  %v1877 = vpop.permute.xlu0 %1876
  %1878 = vrot.lane.b32.xlu0 %v1656, 1
  %v1879 = vpop.permute.xlu0 %1878
  %1880 = vrot.lane.b32.xlu0 %v1657, 1
  %v1881 = vpop.permute.xlu0 %1880
  %1882 = vrot.lane.b32.xlu0 %v1658, 1
  %v1883 = vpop.permute.xlu0 %1882
  %1884 = vrot.lane.b32.xlu0 %v1659, 1
  %v1885 = vpop.permute.xlu0 %1884
  %v1886 = vsel %vm331, %v1871, %v1873
  %v1887 = vsel %vm331, %v1873, %v1875
  %v1888 = vsel %vm331, %v1875, %v1877
  %v1889 = vsel %vm331, %v1879, %v1881
  %v1890 = vsel %vm331, %v1881, %v1883
  %v1891 = vsel %vm331, %v1883, %v1885
  %v1900 = vsel %vm331, 0.0, %v1871
  %v1901 = vsel %vm331, 0.0, %v1879
  %v1902 = vsel %vm233, %v1900, 0.0
  %v1903 = vsel %vm234, %v1886, 0.0
  %v1904 = vsel %vm235, %v1887, 0.0
  %v1905 = vsel %vm236, %v1888, 0.0
  %v1906 = vsel %vm233, %v1901, 0.0
  %v1907 = vsel %vm234, %v1889, 0.0
  %v1908 = vsel %vm235, %v1890, 0.0
  %v1909 = vsel %vm236, %v1891, 0.0
  %1910 = vset.pattern.permute.xlu0 3
  %1911 = vperm.xlu0 %1910, %v194
  %v1912 = vpop.permute.xlu0 %1911
  %1914 = vset.pattern.permute.xlu0 3
  %1915 = vperm.xlu0 %1914, %v195
  %v1916 = vpop.permute.xlu0 %1915
  %v1918 = vmul.f32 %v1902, %v1912
  %v1919 = vmul.f32 %v1903, %v1912
  %v1920 = vmul.f32 %v1904, %v1912
  %v1921 = vmul.f32 %v1905, %v1912
  %v1922 = vmul.f32 %v1906, %v1916
  %v1923 = vmul.f32 %v1907, %v1916
  %v1924 = vmul.f32 %v1908, %v1916
  %v1925 = vmul.f32 %v1909, %v1916
  %v1926 = vadd.f32 %v1862, %v1918
  %v1927 = vadd.f32 %v1863, %v1919
  %v1928 = vadd.f32 %v1864, %v1920
  %v1929 = vadd.f32 %v1865, %v1921
  %v1930 = vadd.f32 %v1866, %v1922
  %v1931 = vadd.f32 %v1867, %v1923
  %v1932 = vadd.f32 %v1868, %v1924
  %v1933 = vadd.f32 %v1869, %v1925
  %1934 = vrot.lane.b32.xlu0 %v1460, 127
  %v1935 = vpop.permute.xlu0 %1934
  %1936 = vrot.lane.b32.xlu0 %v1461, 127
  %v1937 = vpop.permute.xlu0 %1936
  %1938 = vrot.lane.b32.xlu0 %v1462, 127
  %v1939 = vpop.permute.xlu0 %1938
  %1940 = vrot.lane.b32.xlu0 %v1463, 127
  %v1941 = vpop.permute.xlu0 %1940
  %1942 = vrot.lane.b32.xlu0 %v1656, 127
  %v1943 = vpop.permute.xlu0 %1942
  %1944 = vrot.lane.b32.xlu0 %v1657, 127
  %v1945 = vpop.permute.xlu0 %1944
  %1946 = vrot.lane.b32.xlu0 %v1658, 127
  %v1947 = vpop.permute.xlu0 %1946
  %1948 = vrot.lane.b32.xlu0 %v1659, 127
  %v1949 = vpop.permute.xlu0 %1948
  %v1950 = vsel %vm364, %v1935, %v1937
  %v1951 = vsel %vm364, %v1937, %v1939
  %v1952 = vsel %vm364, %v1939, %v1941
  %v1953 = vsel %vm364, %v1943, %v1945
  %v1954 = vsel %vm364, %v1945, %v1947
  %v1955 = vsel %vm364, %v1947, %v1949
  %v1964 = vsel %vm364, %v1941, 0.0
  %v1965 = vsel %vm364, %v1949, 0.0
  %v1966 = vsel %vm303, %v1950, 0.0
  %v1967 = vsel %vm304, %v1951, 0.0
  %v1968 = vsel %vm305, %v1952, 0.0
  %v1969 = vsel %vm306, %v1964, 0.0
  %v1970 = vsel %vm303, %v1953, 0.0
  %v1971 = vsel %vm304, %v1954, 0.0
  %v1972 = vsel %vm305, %v1955, 0.0
  %v1973 = vsel %vm306, %v1965, 0.0
  %1974 = vset.pattern.permute.xlu0 5
  %1975 = vperm.xlu0 %1974, %v194
  %v1976 = vpop.permute.xlu0 %1975
  %1978 = vset.pattern.permute.xlu0 5
  %1979 = vperm.xlu0 %1978, %v195
  %v1980 = vpop.permute.xlu0 %1979
  %v1982 = vmul.f32 %v1966, %v1976
  %v1983 = vmul.f32 %v1967, %v1976
  %v1984 = vmul.f32 %v1968, %v1976
  %v1985 = vmul.f32 %v1969, %v1976
  %v1986 = vmul.f32 %v1970, %v1980
  %v1987 = vmul.f32 %v1971, %v1980
  %v1988 = vmul.f32 %v1972, %v1980
  %v1989 = vmul.f32 %v1973, %v1980
  %v1990 = vadd.f32 %v1926, %v1982
  %v1991 = vadd.f32 %v1927, %v1983
  %v1992 = vadd.f32 %v1928, %v1984
  %v1993 = vadd.f32 %v1929, %v1985
  %v1994 = vadd.f32 %v1930, %v1986
  %v1995 = vadd.f32 %v1931, %v1987
  %v1996 = vadd.f32 %v1932, %v1988
  %v1997 = vadd.f32 %v1933, %v1989
  %1998 = vrot.lane.b32.xlu0 %v1460, 97
  %v1999 = vpop.permute.xlu0 %1998
  %2000 = vrot.lane.b32.xlu0 %v1461, 97
  %v2001 = vpop.permute.xlu0 %2000
  %2002 = vrot.lane.b32.xlu0 %v1462, 97
  %v2003 = vpop.permute.xlu0 %2002
  %2004 = vrot.lane.b32.xlu0 %v1463, 97
  %v2005 = vpop.permute.xlu0 %2004
  %2006 = vrot.lane.b32.xlu0 %v1656, 97
  %v2007 = vpop.permute.xlu0 %2006
  %2008 = vrot.lane.b32.xlu0 %v1657, 97
  %v2009 = vpop.permute.xlu0 %2008
  %2010 = vrot.lane.b32.xlu0 %v1658, 97
  %v2011 = vpop.permute.xlu0 %2010
  %2012 = vrot.lane.b32.xlu0 %v1659, 97
  %v2013 = vpop.permute.xlu0 %2012
  %v2014 = vsel %vm397, %v1999, %v2001
  %v2015 = vsel %vm397, %v2001, %v2003
  %v2016 = vsel %vm397, %v2003, %v2005
  %v2017 = vsel %vm397, %v2007, %v2009
  %v2018 = vsel %vm397, %v2009, %v2011
  %v2019 = vsel %vm397, %v2011, %v2013
  %v2028 = vsel %vm397, %v2005, 0.0
  %v2029 = vsel %vm397, %v2013, 0.0
  %v2030 = vsel %vm233, %v2014, 0.0
  %v2031 = vsel %vm234, %v2015, 0.0
  %v2032 = vsel %vm235, %v2016, 0.0
  %v2033 = vsel %vm236, %v2028, 0.0
  %v2034 = vsel %vm233, %v2017, 0.0
  %v2035 = vsel %vm234, %v2018, 0.0
  %v2036 = vsel %vm235, %v2019, 0.0
  %v2037 = vsel %vm236, %v2029, 0.0
  %2038 = vset.pattern.permute.xlu0 6
  %2039 = vperm.xlu0 %2038, %v194
  %v2040 = vpop.permute.xlu0 %2039
  %2042 = vset.pattern.permute.xlu0 6
  %2043 = vperm.xlu0 %2042, %v195
  %v2044 = vpop.permute.xlu0 %2043
  %v2046 = vmul.f32 %v2030, %v2040
  %v2047 = vmul.f32 %v2031, %v2040
  %v2048 = vmul.f32 %v2032, %v2040
  %v2049 = vmul.f32 %v2033, %v2040
  %v2050 = vmul.f32 %v2034, %v2044
  %v2051 = vmul.f32 %v2035, %v2044
  %v2052 = vmul.f32 %v2036, %v2044
  %v2053 = vmul.f32 %v2037, %v2044
  %v2054 = vadd.f32 %v1990, %v2046
  %v2055 = vadd.f32 %v1991, %v2047
  %v2056 = vadd.f32 %v1992, %v2048
  %v2057 = vadd.f32 %v1993, %v2049
  %v2058 = vadd.f32 %v1994, %v2050
  %v2059 = vadd.f32 %v1995, %v2051
  %v2060 = vadd.f32 %v1996, %v2052
  %v2061 = vadd.f32 %v1997, %v2053
  %2062 = vrot.lane.b32.xlu0 %v1460, 96
  %v2063 = vpop.permute.xlu0 %2062
  %2064 = vrot.lane.b32.xlu0 %v1461, 96
  %v2065 = vpop.permute.xlu0 %2064
  %2066 = vrot.lane.b32.xlu0 %v1462, 96
  %v2067 = vpop.permute.xlu0 %2066
  %2068 = vrot.lane.b32.xlu0 %v1463, 96
  %v2069 = vpop.permute.xlu0 %2068
  %2070 = vrot.lane.b32.xlu0 %v1656, 96
  %v2071 = vpop.permute.xlu0 %2070
  %2072 = vrot.lane.b32.xlu0 %v1657, 96
  %v2073 = vpop.permute.xlu0 %2072
  %2074 = vrot.lane.b32.xlu0 %v1658, 96
  %v2075 = vpop.permute.xlu0 %2074
  %2076 = vrot.lane.b32.xlu0 %v1659, 96
  %v2077 = vpop.permute.xlu0 %2076
  %v2078 = vsel %vm430, %v2063, %v2065
  %v2079 = vsel %vm430, %v2065, %v2067
  %v2080 = vsel %vm430, %v2067, %v2069
  %v2081 = vsel %vm430, %v2071, %v2073
  %v2082 = vsel %vm430, %v2073, %v2075
  %v2083 = vsel %vm430, %v2075, %v2077
  %v2092 = vsel %vm430, %v2069, 0.0
  %v2093 = vsel %vm430, %v2077, 0.0
  %2094 = vset.pattern.permute.xlu0 7
  %2095 = vperm.xlu0 %2094, %v194
  %v2096 = vpop.permute.xlu0 %2095
  %2098 = vset.pattern.permute.xlu0 7
  %2099 = vperm.xlu0 %2098, %v195
  %v2100 = vpop.permute.xlu0 %2099
  %v2102 = vmul.f32 %v2078, %v2096
  %v2103 = vmul.f32 %v2079, %v2096
  %v2104 = vmul.f32 %v2080, %v2096
  %v2105 = vmul.f32 %v2092, %v2096
  %v2106 = vmul.f32 %v2081, %v2100
  %v2107 = vmul.f32 %v2082, %v2100
  %v2108 = vmul.f32 %v2083, %v2100
  %v2109 = vmul.f32 %v2093, %v2100
  %v2110 = vadd.f32 %v2054, %v2102
  %v2111 = vadd.f32 %v2055, %v2103
  %v2112 = vadd.f32 %v2056, %v2104
  %v2113 = vadd.f32 %v2057, %v2105
  %v2114 = vadd.f32 %v2058, %v2106
  %v2115 = vadd.f32 %v2059, %v2107
  %v2116 = vadd.f32 %v2060, %v2108
  %v2117 = vadd.f32 %v2061, %v2109
  %2118 = vrot.lane.b32.xlu0 %v1460, 95
  %v2119 = vpop.permute.xlu0 %2118
  %2120 = vrot.lane.b32.xlu0 %v1461, 95
  %v2121 = vpop.permute.xlu0 %2120
  %2122 = vrot.lane.b32.xlu0 %v1462, 95
  %v2123 = vpop.permute.xlu0 %2122
  %2124 = vrot.lane.b32.xlu0 %v1463, 95
  %v2125 = vpop.permute.xlu0 %2124
  %2126 = vrot.lane.b32.xlu0 %v1656, 95
  %v2127 = vpop.permute.xlu0 %2126
  %2128 = vrot.lane.b32.xlu0 %v1657, 95
  %v2129 = vpop.permute.xlu0 %2128
  %2130 = vrot.lane.b32.xlu0 %v1658, 95
  %v2131 = vpop.permute.xlu0 %2130
  %2132 = vrot.lane.b32.xlu0 %v1659, 95
  %v2133 = vpop.permute.xlu0 %2132
  %v2134 = vsel %vm459, %v2119, %v2121
  %v2135 = vsel %vm459, %v2121, %v2123
  %v2136 = vsel %vm459, %v2123, %v2125
  %v2137 = vsel %vm459, %v2127, %v2129
  %v2138 = vsel %vm459, %v2129, %v2131
  %v2139 = vsel %vm459, %v2131, %v2133
  %v2148 = vsel %vm459, %v2125, 0.0
  %v2149 = vsel %vm459, %v2133, 0.0
  %v2150 = vsel %vm303, %v2134, 0.0
  %v2151 = vsel %vm304, %v2135, 0.0
  %v2152 = vsel %vm305, %v2136, 0.0
  %v2153 = vsel %vm306, %v2148, 0.0
  %v2154 = vsel %vm303, %v2137, 0.0
  %v2155 = vsel %vm304, %v2138, 0.0
  %v2156 = vsel %vm305, %v2139, 0.0
  %v2157 = vsel %vm306, %v2149, 0.0
  %2158 = vset.pattern.permute.xlu0 8
  %2159 = vperm.xlu0 %2158, %v194
  %v2160 = vpop.permute.xlu0 %2159
  %2162 = vset.pattern.permute.xlu0 8
  %2163 = vperm.xlu0 %2162, %v195
  %v2164 = vpop.permute.xlu0 %2163
  %v2166 = vmul.f32 %v2150, %v2160
  %v2167 = vmul.f32 %v2151, %v2160
  %v2168 = vmul.f32 %v2152, %v2160
  %v2169 = vmul.f32 %v2153, %v2160
  %v2170 = vmul.f32 %v2154, %v2164
  %v2171 = vmul.f32 %v2155, %v2164
  %v2172 = vmul.f32 %v2156, %v2164
  %v2173 = vmul.f32 %v2157, %v2164
  %v2174 = vadd.f32 %v2110, %v2166
  %v2175 = vadd.f32 %v2111, %v2167
  %v2176 = vadd.f32 %v2112, %v2168
  %v2177 = vadd.f32 %v2113, %v2169
  %v2178 = vadd.f32 %v2114, %v2170
  %v2179 = vadd.f32 %v2115, %v2171
  %v2180 = vadd.f32 %v2116, %v2172
  %v2181 = vadd.f32 %v2117, %v2173
  %v2182 = vld [vmem:[%s5] sm:$0xf]
  %2184 = vset.pattern.permute.xlu0 0
  %2185 = vperm.xlu0 %2184, %v2182
  %v2186 = vpop.permute.xlu0 %2185
  %v2188 = vlaneseq
  %v2189 = vshrl.u32 %v2188, 7
  %v2190 = vsub.s32 0, %v2189
  %v2191 = vrot.slane %v2174, %v2190
  %v2192 = vlaneseq
  %v2193 = vshrl.u32 %v2192, 7
  %v2194 = vsub.s32 0, %v2193
  %v2195 = vrot.slane %v2175, %v2194
  %v2196 = vlaneseq
  %v2197 = vshrl.u32 %v2196, 7
  %v2198 = vsub.s32 0, %v2197
  %v2199 = vrot.slane %v2176, %v2198
  %v2200 = vlaneseq
  %v2201 = vshrl.u32 %v2200, 7
  %v2202 = vsub.s32 0, %v2201
  %v2203 = vrot.slane %v2177, %v2202
  %v2204 = vmul.f32 %v2186, %v2191
  %v2205 = vmul.f32 %v2186, %v2195
  %v2206 = vmul.f32 %v2186, %v2199
  %v2207 = vmul.f32 %v2186, %v2203
  %2208 = vset.pattern.permute.xlu0 1
  %2209 = vperm.xlu0 %2208, %v2182
  %v2210 = vpop.permute.xlu0 %2209
  %v2212 = vlaneseq
  %v2213 = vshrl.u32 %v2212, 7
  %v2214 = vsub.s32 1, %v2213
  %v2215 = vrot.slane %v2174, %v2214
  %v2216 = vlaneseq
  %v2217 = vshrl.u32 %v2216, 7
  %v2218 = vsub.s32 1, %v2217
  %v2219 = vrot.slane %v2175, %v2218
  %v2220 = vlaneseq
  %v2221 = vshrl.u32 %v2220, 7
  %v2222 = vsub.s32 1, %v2221
  %v2223 = vrot.slane %v2176, %v2222
  %v2224 = vlaneseq
  %v2225 = vshrl.u32 %v2224, 7
  %v2226 = vsub.s32 1, %v2225
  %v2227 = vrot.slane %v2177, %v2226
  %v2228 = vmul.f32 %v2210, %v2215
  %v2229 = vmul.f32 %v2210, %v2219
  %v2230 = vmul.f32 %v2210, %v2223
  %v2231 = vmul.f32 %v2210, %v2227
  %v2232 = vadd.f32 %v2204, %v2228
  %v2233 = vadd.f32 %v2205, %v2229
  %v2234 = vadd.f32 %v2206, %v2230
  %v2235 = vadd.f32 %v2207, %v2231
  %2236 = vset.pattern.permute.xlu0 2
  %2237 = vperm.xlu0 %2236, %v2182
  %v2238 = vpop.permute.xlu0 %2237
  %v2240 = vlaneseq
  %v2241 = vshrl.u32 %v2240, 7
  %v2242 = vsub.s32 2, %v2241
  %v2243 = vrot.slane %v2174, %v2242
  %v2244 = vlaneseq
  %v2245 = vshrl.u32 %v2244, 7
  %v2246 = vsub.s32 2, %v2245
  %v2247 = vrot.slane %v2175, %v2246
  %v2248 = vlaneseq
  %v2249 = vshrl.u32 %v2248, 7
  %v2250 = vsub.s32 2, %v2249
  %v2251 = vrot.slane %v2176, %v2250
  %v2252 = vlaneseq
  %v2253 = vshrl.u32 %v2252, 7
  %v2254 = vsub.s32 2, %v2253
  %v2255 = vrot.slane %v2177, %v2254
  %v2256 = vmul.f32 %v2238, %v2243
  %v2257 = vmul.f32 %v2238, %v2247
  %v2258 = vmul.f32 %v2238, %v2251
  %v2259 = vmul.f32 %v2238, %v2255
  %v2260 = vadd.f32 %v2232, %v2256
  %v2261 = vadd.f32 %v2233, %v2257
  %v2262 = vadd.f32 %v2234, %v2258
  %v2263 = vadd.f32 %v2235, %v2259
  %2264 = vset.pattern.permute.xlu0 3
  %2265 = vperm.xlu0 %2264, %v2182
  %v2266 = vpop.permute.xlu0 %2265
  %v2268 = vlaneseq
  %v2269 = vshrl.u32 %v2268, 7
  %v2270 = vsub.s32 3, %v2269
  %v2271 = vrot.slane %v2174, %v2270
  %v2272 = vlaneseq
  %v2273 = vshrl.u32 %v2272, 7
  %v2274 = vsub.s32 3, %v2273
  %v2275 = vrot.slane %v2175, %v2274
  %v2276 = vlaneseq
  %v2277 = vshrl.u32 %v2276, 7
  %v2278 = vsub.s32 3, %v2277
  %v2279 = vrot.slane %v2176, %v2278
  %v2280 = vlaneseq
  %v2281 = vshrl.u32 %v2280, 7
  %v2282 = vsub.s32 3, %v2281
  %v2283 = vrot.slane %v2177, %v2282
  %v2284 = vmul.f32 %v2266, %v2271
  %v2285 = vmul.f32 %v2266, %v2275
  %v2286 = vmul.f32 %v2266, %v2279
  %v2287 = vmul.f32 %v2266, %v2283
  %v2288 = vadd.f32 %v2260, %v2284
  %v2289 = vadd.f32 %v2261, %v2285
  %v2290 = vadd.f32 %v2262, %v2286
  %v2291 = vadd.f32 %v2263, %v2287
  %2292 = vset.pattern.permute.xlu0 4
  %2293 = vperm.xlu0 %2292, %v2182
  %v2294 = vpop.permute.xlu0 %2293
  %v2296 = vlaneseq
  %v2297 = vshrl.u32 %v2296, 7
  %v2298 = vsub.s32 4, %v2297
  %v2299 = vrot.slane %v2174, %v2298
  %v2300 = vlaneseq
  %v2301 = vshrl.u32 %v2300, 7
  %v2302 = vsub.s32 4, %v2301
  %v2303 = vrot.slane %v2175, %v2302
  %v2304 = vlaneseq
  %v2305 = vshrl.u32 %v2304, 7
  %v2306 = vsub.s32 4, %v2305
  %v2307 = vrot.slane %v2176, %v2306
  %v2308 = vlaneseq
  %v2309 = vshrl.u32 %v2308, 7
  %v2310 = vsub.s32 4, %v2309
  %v2311 = vrot.slane %v2177, %v2310
  %v2312 = vmul.f32 %v2294, %v2299
  %v2313 = vmul.f32 %v2294, %v2303
  %v2314 = vmul.f32 %v2294, %v2307
  %v2315 = vmul.f32 %v2294, %v2311
  %v2316 = vadd.f32 %v2288, %v2312
  %v2317 = vadd.f32 %v2289, %v2313
  %v2318 = vadd.f32 %v2290, %v2314
  %v2319 = vadd.f32 %v2291, %v2315
  %2320 = vset.pattern.permute.xlu0 5
  %2321 = vperm.xlu0 %2320, %v2182
  %v2322 = vpop.permute.xlu0 %2321
  %v2324 = vlaneseq
  %v2325 = vshrl.u32 %v2324, 7
  %v2326 = vsub.s32 5, %v2325
  %v2327 = vrot.slane %v2174, %v2326
  %v2328 = vlaneseq
  %v2329 = vshrl.u32 %v2328, 7
  %v2330 = vsub.s32 5, %v2329
  %v2331 = vrot.slane %v2175, %v2330
  %v2332 = vlaneseq
  %v2333 = vshrl.u32 %v2332, 7
  %v2334 = vsub.s32 5, %v2333
  %v2335 = vrot.slane %v2176, %v2334
  %v2336 = vlaneseq
  %v2337 = vshrl.u32 %v2336, 7
  %v2338 = vsub.s32 5, %v2337
  %v2339 = vrot.slane %v2177, %v2338
  %v2340 = vmul.f32 %v2322, %v2327
  %v2341 = vmul.f32 %v2322, %v2331
  %v2342 = vmul.f32 %v2322, %v2335
  %v2343 = vmul.f32 %v2322, %v2339
  %v2344 = vadd.f32 %v2316, %v2340
  %v2345 = vadd.f32 %v2317, %v2341
  %v2346 = vadd.f32 %v2318, %v2342
  %v2347 = vadd.f32 %v2319, %v2343
  %2348 = vset.pattern.permute.xlu0 6
  %2349 = vperm.xlu0 %2348, %v2182
  %v2350 = vpop.permute.xlu0 %2349
  %v2352 = vlaneseq
  %v2353 = vshrl.u32 %v2352, 7
  %v2354 = vsub.s32 6, %v2353
  %v2355 = vrot.slane %v2174, %v2354
  %v2356 = vlaneseq
  %v2357 = vshrl.u32 %v2356, 7
  %v2358 = vsub.s32 6, %v2357
  %v2359 = vrot.slane %v2175, %v2358
  %v2360 = vlaneseq
  %v2361 = vshrl.u32 %v2360, 7
  %v2362 = vsub.s32 6, %v2361
  %v2363 = vrot.slane %v2176, %v2362
  %v2364 = vlaneseq
  %v2365 = vshrl.u32 %v2364, 7
  %v2366 = vsub.s32 6, %v2365
  %v2367 = vrot.slane %v2177, %v2366
  %v2368 = vmul.f32 %v2350, %v2355
  %v2369 = vmul.f32 %v2350, %v2359
  %v2370 = vmul.f32 %v2350, %v2363
  %v2371 = vmul.f32 %v2350, %v2367
  %v2372 = vadd.f32 %v2344, %v2368
  %v2373 = vadd.f32 %v2345, %v2369
  %v2374 = vadd.f32 %v2346, %v2370
  %v2375 = vadd.f32 %v2347, %v2371
  %2376 = vset.pattern.permute.xlu0 7
  %2377 = vperm.xlu0 %2376, %v2182
  %v2378 = vpop.permute.xlu0 %2377
  %v2380 = vlaneseq
  %v2381 = vshrl.u32 %v2380, 7
  %v2382 = vsub.s32 7, %v2381
  %v2383 = vrot.slane %v2174, %v2382
  %v2384 = vlaneseq
  %v2385 = vshrl.u32 %v2384, 7
  %v2386 = vsub.s32 7, %v2385
  %v2387 = vrot.slane %v2175, %v2386
  %v2388 = vlaneseq
  %v2389 = vshrl.u32 %v2388, 7
  %v2390 = vsub.s32 7, %v2389
  %v2391 = vrot.slane %v2176, %v2390
  %v2392 = vlaneseq
  %v2393 = vshrl.u32 %v2392, 7
  %v2394 = vsub.s32 7, %v2393
  %v2395 = vrot.slane %v2177, %v2394
  %v2396 = vmul.f32 %v2378, %v2383
  %v2397 = vmul.f32 %v2378, %v2387
  %v2398 = vmul.f32 %v2378, %v2391
  %v2399 = vmul.f32 %v2378, %v2395
  %v2400 = vadd.f32 %v2372, %v2396
  %v2401 = vadd.f32 %v2373, %v2397
  %v2402 = vadd.f32 %v2374, %v2398
  %v2403 = vadd.f32 %v2375, %v2399
  %2405 = vset.pattern.permute.xlu0 0
  %2406 = vperm.xlu0 %2405, %v198
  %v2407 = vpop.permute.xlu0 %2406
  %v2409 = vadd.f32 %v2400, %v2407
  %v2410 = vadd.f32 %v2401, %v2407
  %v2411 = vadd.f32 %v2402, %v2407
  %v2412 = vadd.f32 %v2403, %v2407
  %v2413 = vmax.f32 %v2409, 0.0
  %v2414 = vmax.f32 %v2410, 0.0
  %v2415 = vmax.f32 %v2411, 0.0
  %v2416 = vmax.f32 %v2412, 0.0
  %v2417 = vlaneseq
  %v2418 = vshrl.u32 %v2417, 7
  %v2419 = vsub.s32 0, %v2418
  %v2420 = vrot.slane %v2178, %v2419
  %v2421 = vlaneseq
  %v2422 = vshrl.u32 %v2421, 7
  %v2423 = vsub.s32 0, %v2422
  %v2424 = vrot.slane %v2179, %v2423
  %v2425 = vlaneseq
  %v2426 = vshrl.u32 %v2425, 7
  %v2427 = vsub.s32 0, %v2426
  %v2428 = vrot.slane %v2180, %v2427
  %v2429 = vlaneseq
  %v2430 = vshrl.u32 %v2429, 7
  %v2431 = vsub.s32 0, %v2430
  %v2432 = vrot.slane %v2181, %v2431
  %v2433 = vmul.f32 %v2186, %v2420
  %v2434 = vmul.f32 %v2186, %v2424
  %v2435 = vmul.f32 %v2186, %v2428
  %v2436 = vmul.f32 %v2186, %v2432
  %v2437 = vlaneseq
  %v2438 = vshrl.u32 %v2437, 7
  %v2439 = vsub.s32 1, %v2438
  %v2440 = vrot.slane %v2178, %v2439
  %v2441 = vlaneseq
  %v2442 = vshrl.u32 %v2441, 7
  %v2443 = vsub.s32 1, %v2442
  %v2444 = vrot.slane %v2179, %v2443
  %v2445 = vlaneseq
  %v2446 = vshrl.u32 %v2445, 7
  %v2447 = vsub.s32 1, %v2446
  %v2448 = vrot.slane %v2180, %v2447
  %v2449 = vlaneseq
  %v2450 = vshrl.u32 %v2449, 7
  %v2451 = vsub.s32 1, %v2450
  %v2452 = vrot.slane %v2181, %v2451
  %v2453 = vmul.f32 %v2210, %v2440
  %v2454 = vmul.f32 %v2210, %v2444
  %v2455 = vmul.f32 %v2210, %v2448
  %v2456 = vmul.f32 %v2210, %v2452
  %v2457 = vadd.f32 %v2433, %v2453
  %v2458 = vadd.f32 %v2434, %v2454
  %v2459 = vadd.f32 %v2435, %v2455
  %v2460 = vadd.f32 %v2436, %v2456
  %v2461 = vlaneseq
  %v2462 = vshrl.u32 %v2461, 7
  %v2463 = vsub.s32 2, %v2462
  %v2464 = vrot.slane %v2178, %v2463
  %v2465 = vlaneseq
  %v2466 = vshrl.u32 %v2465, 7
  %v2467 = vsub.s32 2, %v2466
  %v2468 = vrot.slane %v2179, %v2467
  %v2469 = vlaneseq
  %v2470 = vshrl.u32 %v2469, 7
  %v2471 = vsub.s32 2, %v2470
  %v2472 = vrot.slane %v2180, %v2471
  %v2473 = vlaneseq
  %v2474 = vshrl.u32 %v2473, 7
  %v2475 = vsub.s32 2, %v2474
  %v2476 = vrot.slane %v2181, %v2475
  %v2477 = vmul.f32 %v2238, %v2464
  %v2478 = vmul.f32 %v2238, %v2468
  %v2479 = vmul.f32 %v2238, %v2472
  %v2480 = vmul.f32 %v2238, %v2476
  %v2481 = vadd.f32 %v2457, %v2477
  %v2482 = vadd.f32 %v2458, %v2478
  %v2483 = vadd.f32 %v2459, %v2479
  %v2484 = vadd.f32 %v2460, %v2480
  %v2485 = vlaneseq
  %v2486 = vshrl.u32 %v2485, 7
  %v2487 = vsub.s32 3, %v2486
  %v2488 = vrot.slane %v2178, %v2487
  %v2489 = vlaneseq
  %v2490 = vshrl.u32 %v2489, 7
  %v2491 = vsub.s32 3, %v2490
  %v2492 = vrot.slane %v2179, %v2491
  %v2493 = vlaneseq
  %v2494 = vshrl.u32 %v2493, 7
  %v2495 = vsub.s32 3, %v2494
  %v2496 = vrot.slane %v2180, %v2495
  %v2497 = vlaneseq
  %v2498 = vshrl.u32 %v2497, 7
  %v2499 = vsub.s32 3, %v2498
  %v2500 = vrot.slane %v2181, %v2499
  %v2501 = vmul.f32 %v2266, %v2488
  %v2502 = vmul.f32 %v2266, %v2492
  %v2503 = vmul.f32 %v2266, %v2496
  %v2504 = vmul.f32 %v2266, %v2500
  %v2505 = vadd.f32 %v2481, %v2501
  %v2506 = vadd.f32 %v2482, %v2502
  %v2507 = vadd.f32 %v2483, %v2503
  %v2508 = vadd.f32 %v2484, %v2504
  %v2509 = vlaneseq
  %v2510 = vshrl.u32 %v2509, 7
  %v2511 = vsub.s32 4, %v2510
  %v2512 = vrot.slane %v2178, %v2511
  %v2513 = vlaneseq
  %v2514 = vshrl.u32 %v2513, 7
  %v2515 = vsub.s32 4, %v2514
  %v2516 = vrot.slane %v2179, %v2515
  %v2517 = vlaneseq
  %v2518 = vshrl.u32 %v2517, 7
  %v2519 = vsub.s32 4, %v2518
  %v2520 = vrot.slane %v2180, %v2519
  %v2521 = vlaneseq
  %v2522 = vshrl.u32 %v2521, 7
  %v2523 = vsub.s32 4, %v2522
  %v2524 = vrot.slane %v2181, %v2523
  %v2525 = vmul.f32 %v2294, %v2512
  %v2526 = vmul.f32 %v2294, %v2516
  %v2527 = vmul.f32 %v2294, %v2520
  %v2528 = vmul.f32 %v2294, %v2524
  %v2529 = vadd.f32 %v2505, %v2525
  %v2530 = vadd.f32 %v2506, %v2526
  %v2531 = vadd.f32 %v2507, %v2527
  %v2532 = vadd.f32 %v2508, %v2528
  %v2533 = vlaneseq
  %v2534 = vshrl.u32 %v2533, 7
  %v2535 = vsub.s32 5, %v2534
  %v2536 = vrot.slane %v2178, %v2535
  %v2537 = vlaneseq
  %v2538 = vshrl.u32 %v2537, 7
  %v2539 = vsub.s32 5, %v2538
  %v2540 = vrot.slane %v2179, %v2539
  %v2541 = vlaneseq
  %v2542 = vshrl.u32 %v2541, 7
  %v2543 = vsub.s32 5, %v2542
  %v2544 = vrot.slane %v2180, %v2543
  %v2545 = vlaneseq
  %v2546 = vshrl.u32 %v2545, 7
  %v2547 = vsub.s32 5, %v2546
  %v2548 = vrot.slane %v2181, %v2547
  %v2549 = vmul.f32 %v2322, %v2536
  %v2550 = vmul.f32 %v2322, %v2540
  %v2551 = vmul.f32 %v2322, %v2544
  %v2552 = vmul.f32 %v2322, %v2548
  %v2553 = vadd.f32 %v2529, %v2549
  %v2554 = vadd.f32 %v2530, %v2550
  %v2555 = vadd.f32 %v2531, %v2551
  %v2556 = vadd.f32 %v2532, %v2552
  %v2557 = vlaneseq
  %v2558 = vshrl.u32 %v2557, 7
  %v2559 = vsub.s32 6, %v2558
  %v2560 = vrot.slane %v2178, %v2559
  %v2561 = vlaneseq
  %v2562 = vshrl.u32 %v2561, 7
  %v2563 = vsub.s32 6, %v2562
  %v2564 = vrot.slane %v2179, %v2563
  %v2565 = vlaneseq
  %v2566 = vshrl.u32 %v2565, 7
  %v2567 = vsub.s32 6, %v2566
  %v2568 = vrot.slane %v2180, %v2567
  %v2569 = vlaneseq
  %v2570 = vshrl.u32 %v2569, 7
  %v2571 = vsub.s32 6, %v2570
  %v2572 = vrot.slane %v2181, %v2571
  %v2573 = vmul.f32 %v2350, %v2560
  %v2574 = vmul.f32 %v2350, %v2564
  %v2575 = vmul.f32 %v2350, %v2568
  %v2576 = vmul.f32 %v2350, %v2572
  %v2577 = vadd.f32 %v2553, %v2573
  %v2578 = vadd.f32 %v2554, %v2574
  %v2579 = vadd.f32 %v2555, %v2575
  %v2580 = vadd.f32 %v2556, %v2576
  %v2581 = vlaneseq
  %v2582 = vshrl.u32 %v2581, 7
  %v2583 = vsub.s32 7, %v2582
  %v2584 = vrot.slane %v2178, %v2583
  %v2585 = vlaneseq
  %v2586 = vshrl.u32 %v2585, 7
  %v2587 = vsub.s32 7, %v2586
  %v2588 = vrot.slane %v2179, %v2587
  %v2589 = vlaneseq
  %v2590 = vshrl.u32 %v2589, 7
  %v2591 = vsub.s32 7, %v2590
  %v2592 = vrot.slane %v2180, %v2591
  %v2593 = vlaneseq
  %v2594 = vshrl.u32 %v2593, 7
  %v2595 = vsub.s32 7, %v2594
  %v2596 = vrot.slane %v2181, %v2595
  %v2597 = vmul.f32 %v2378, %v2584
  %v2598 = vmul.f32 %v2378, %v2588
  %v2599 = vmul.f32 %v2378, %v2592
  %v2600 = vmul.f32 %v2378, %v2596
  %v2601 = vadd.f32 %v2577, %v2597
  %v2602 = vadd.f32 %v2578, %v2598
  %v2603 = vadd.f32 %v2579, %v2599
  %v2604 = vadd.f32 %v2580, %v2600
  %v2605 = vadd.f32 %v2601, %v2407
  %v2606 = vadd.f32 %v2602, %v2407
  %v2607 = vadd.f32 %v2603, %v2407
  %v2608 = vadd.f32 %v2604, %v2407
  %v2609 = vmax.f32 %v2605, 0.0
  %v2610 = vmax.f32 %v2606, 0.0
  %v2611 = vmax.f32 %v2607, 0.0
  %v2612 = vmax.f32 %v2608, 0.0
  %v2617 = vrot.slane %v2609, 4
  %v2618 = vrot.slane %v2610, 4
  %v2619 = vrot.slane %v2611, 4
  %v2620 = vrot.slane %v2612, 4
  %v2625 = vsel %vm171, %v2413, %v2617
  %v2626 = vsel %vm171, %v2414, %v2618
  %v2627 = vsel %vm171, %v2415, %v2619
  %v2628 = vsel %vm171, %v2416, %v2620
  %v2633 = vrot.slane %v2625, 4
  %v2634 = vrot.slane %v2626, 4
  %v2635 = vrot.slane %v2627, 4
  %v2636 = vrot.slane %v2628, 4
  %v2641 = vrot.slane %v88, 1
  %v2642 = vrot.slane %v89, 1
  %v2643 = vrot.slane %v90, 1
  %v2644 = vrot.slane %v91, 1
  %v2649 = vrot.slane %v88, 2
  %v2650 = vrot.slane %v89, 2
  %v2651 = vrot.slane %v90, 2
  %v2652 = vrot.slane %v91, 2
  %v2657 = vrot.slane %v88, 3
  %v2658 = vrot.slane %v89, 3
  %v2659 = vrot.slane %v90, 3
  %v2660 = vrot.slane %v91, 3
  %v2665 = vsel %vm156, %v84, %v96
  %v2666 = vsel %vm156, %v85, %v97
  %v2667 = vsel %vm156, %v86, %v98
  %v2668 = vsel %vm156, %v87, %v99
  %v2669 = vsel %vm161, %v2665, %v104
  %v2670 = vsel %vm161, %v2666, %v105
  %v2671 = vsel %vm161, %v2667, %v106
  %v2672 = vsel %vm161, %v2668, %v107
  %v2673 = vsel %vm166, %v2669, %v112
  %v2674 = vsel %vm166, %v2670, %v113
  %v2675 = vsel %vm166, %v2671, %v114
  %v2676 = vsel %vm166, %v2672, %v115
  %v2677 = vsel %vm171, %v2673, %v2633
  %v2678 = vsel %vm171, %v2674, %v2634
  %v2679 = vsel %vm171, %v2675, %v2635
  %v2680 = vsel %vm171, %v2676, %v2636
  %v2681 = vsel %vm156, %v88, %v2641
  %v2682 = vsel %vm156, %v89, %v2642
  %v2683 = vsel %vm156, %v90, %v2643
  %v2684 = vsel %vm156, %v91, %v2644
  %v2685 = vsel %vm161, %v2681, %v2649
  %v2686 = vsel %vm161, %v2682, %v2650
  %v2687 = vsel %vm161, %v2683, %v2651
  %v2688 = vsel %vm161, %v2684, %v2652
  %v2689 = vsel %vm166, %v2685, %v2657
  %v2690 = vsel %vm166, %v2686, %v2658
  %v2691 = vsel %vm166, %v2687, %v2659
  %v2692 = vsel %vm166, %v2688, %v2660
  %v2693 = vsel %vm171, %v2689, %v2625
  %v2694 = vsel %vm171, %v2690, %v2626
  %v2695 = vsel %vm171, %v2691, %v2627
  %v2696 = vsel %vm171, %v2692, %v2628
  %2697 = vst [vmem:[%s6] sm:$0xff] %v2677
  %2698 = vst [vmem:[%s6 + $0x8] sm:$0xff] %v2678
  %2699 = vst [vmem:[%s6 + $0x10] sm:$0xff] %v2679
  %2700 = vst [vmem:[%s6 + $0x18] sm:$0xff] %v2680
  %2701 = vst [vmem:[%s6 + $0x20] sm:$0xff] %v2693
  %2702 = vst [vmem:[%s6 + $0x28] sm:$0xff] %v2694
  %2703 = vst [vmem:[%s6 + $0x30] sm:$0xff] %v2695
  %2704 = vst [vmem:[%s6 + $0x38] sm:$0xff] %v2696
  // Predicated region
  $region26: #{shuffle_xception_forward.1} parent=0 // pred_check
    _
  $region27: #{shuffle_xception_forward.1} parent=0 // pred_check_branch
    %2706 = sbr.rel (0) target = $region29
  $region28: #{shuffle_xception_forward.1} parent=0 // pred_region
    _
  $region29: #{shuffle_xception_forward.1} parent=0 // pred_fallthru
    _
  // Predicated region
  $region30: #{shuffle_xception_forward.1} parent=0 // pred_check
    _
  $region31: #{shuffle_xception_forward.1} parent=0 // pred_check_branch
    %2708 = sbr.rel (0) target = $region33
  $region32: #{shuffle_xception_forward.1} parent=0 // pred_region
    _
  $region33: #{shuffle_xception_forward.1} parent=0 // pred_fallthru
    _

</llo_original>
